<compile_context>
chip_gen: v5e
topology: v5e:2x2
jax: 0.10.0
libtpu: 0.0.40
codegen_flags: <defaults>
</compile_context>

<pallas_src>
import functools

import jax
import jax.numpy as jnp
from jax.experimental import pallas as pl
from jax.experimental.pallas import tpu as pltpu

NEG_SLOPE = 0.01   # nn.LeakyReLU default
EPS = 1e-12        # F.normalize default eps


def _leaky_relu(x):
    return jnp.where(x >= 0, x, NEG_SLOPE * x)


def _round_up(x, m):
    return ((x + m - 1) // m) * m


def vdgs_kernel(d_shs,
                x_ref,
                w1_ref, b1_ref,
                w2_ref, b2_ref,
                w3h_ref, b3h_ref,
                o_ref):
    # x_ref: (TN, D) row tile of concat([shs_flat, viewdirs, rotations, scales]).
    x = x_ref[...].astype(jnp.float32)

    # F.normalize(p=2, dim=1) applied only to the first d_shs columns (flattened SH
    # coefficients).  x / max(||x||, eps) == x * rsqrt(max(sum(x^2), eps^2)).
    col = jax.lax.broadcasted_iota(jnp.int32, x.shape, 1)
    is_shs = col < d_shs
    sq = jnp.where(is_shs, x * x, 0.0)
    sumsq = jnp.sum(sq, axis=-1, keepdims=True)                  # (TN, 1)
    inv = jax.lax.rsqrt(jnp.maximum(sumsq, EPS * EPS))           # EUP, no VPU divide
    xn = jnp.where(is_shs, x * inv, x)

    # Layer 1: (TN, D) @ (D, 64)  -- bf16 operands, f32 accumulate.
    h = jnp.dot(xn.astype(jnp.bfloat16), w1_ref[...],
                preferred_element_type=jnp.float32) + b1_ref[...]
    h = _leaky_relu(h)

    # Layer 2: (TN, 64) @ (64, 32)
    h = jnp.dot(h.astype(jnp.bfloat16), w2_ref[...],
                preferred_element_type=jnp.float32) + b2_ref[...]
    h = _leaky_relu(h)

    # Folded [Linear(32,32) ; Linear(32,1)] + Tanh head: (TN, 32) @ (32, 1)
    y = jnp.dot(h.astype(jnp.bfloat16), w3h_ref[...],
                preferred_element_type=jnp.float32) + b3h_ref[...]
    o_ref[...] = jnp.tanh(y).astype(o_ref.dtype)


def init_vdgs_params(key, input_size, output_size=1, net_width=32):
    """Deterministic synthetic parameters with the shapes nn.Linear implies."""
    factor = 2
    ks = jax.random.split(key, 10)

    def lin(kw, kb, fan_in, fan_out):
        bound = 1.0 / jnp.sqrt(fan_in)
        w = jax.random.uniform(kw, (fan_in, fan_out), jnp.float32, -bound, bound)
        b = jax.random.uniform(kb, (1, fan_out), jnp.float32, -bound, bound)
        return w, b

    w1, b1 = lin(ks[0], ks[1], input_size, net_width * factor)   # (in, 64), (1, 64)
    w2, b2 = lin(ks[2], ks[3], net_width * factor, net_width)    # (64, 32)
    w3, b3 = lin(ks[4], ks[5], net_width, net_width)             # (32, 32)
    wh, bh = lin(ks[6], ks[7], net_width, output_size)           # (32, 1)
    # `rotation` branch (Linear(input_size, 50) + Sigmoid) is unused in forward;
    # initialized only for shape parity with the PyTorch module.
    wr, br = lin(ks[8], ks[9], input_size, 50)
    return dict(w1=w1, b1=b1, w2=w2, b2=b2, w3=w3, b3=b3,
                wh=wh, bh=bh, wr=wr, br=br)


def vdgs_forward(params, shs, rotations, scales, viewdirs, tile_n=1024):
    N = shs.shape[0]
    shs_flat = shs.reshape(N, -1)
    # concat order in the PyTorch forward: [shs, viewdirs, rotations, scales]
    x = jnp.concatenate([shs_flat, viewdirs, rotations, scales],
                        axis=1).astype(jnp.float32)
    d_shs = shs_flat.shape[1]
    D = x.shape[1]
    assert params["w1"].shape[0] == D, (params["w1"].shape, D)

    # bf16 matmul operands (f32 accumulation inside the kernel), f32 biases.
    w1 = params["w1"].astype(jnp.bfloat16)
    b1 = params["b1"].astype(jnp.float32)
    w2 = params["w2"].astype(jnp.bfloat16)
    b2 = params["b2"].astype(jnp.float32)
    # Fold Linear(32,32) into Linear(32,1): no nonlinearity between them.
    w3h = (params["w3"] @ params["wh"]).astype(jnp.bfloat16)                # (32, out)
    b3h = (params["b3"] @ params["wh"] + params["bh"]).astype(jnp.float32)  # (1, out)
    out_size = params["wh"].shape[1]

    # Effective row tile: large to amortize the ~0.35us per-grid-step overhead, but
    # never bigger than the (padded) problem; keep >= 2 grid steps when there is
    # enough work so both v7x TensorCores get tiles.
    tile_eff = max(8, min(tile_n, _round_up(N, 8)))
    n_pad = _round_up(N, tile_eff)
    if n_pad // tile_eff < 2 and N > 256:
        tile_eff = _round_up(pl.cdiv(N, 2), 8)
        n_pad = _round_up(N, tile_eff)
    if n_pad != N:
        x = jnp.pad(x, ((0, n_pad - N), (0, 0)))   # zero rows -> finite garbage, sliced off
    grid = (n_pad // tile_eff,)

    def row_spec(d):
        return pl.BlockSpec((tile_eff, d), lambda i: (i, 0))

    def full_spec(arr):
        return pl.BlockSpec(arr.shape, lambda i: (0, 0))

    out = pl.pallas_call(
        functools.partial(vdgs_kernel, d_shs),
        out_shape=jax.ShapeDtypeStruct((n_pad, out_size), jnp.float32),
        grid_spec=pltpu.PrefetchScalarGridSpec(
            num_scalar_prefetch=0,
            grid=grid,
            in_specs=[
                row_spec(D),                              # features (row tiled)
                full_spec(w1), full_spec(b1),
                full_spec(w2), full_spec(b2),
                full_spec(w3h), full_spec(b3h),
            ],
            out_specs=row_spec(out_size),
        ),
        compiler_params=pltpu.CompilerParams(
            dimension_semantics=("parallel",)),
    )(x, w1, b1, w2, b2, w3h, b3h)
    return out[:N]


def vdgs_reference(params, shs, rotations, scales, viewdirs):
    """Pure-JAX f32 reference mirroring the PyTorch forward (unfused)."""
    N = shs.shape[0]
    shs_flat = shs.reshape(N, -1)
    norm = jnp.sqrt(jnp.sum(shs_flat * shs_flat, axis=1, keepdims=True))
    shs_flat = shs_flat / jnp.maximum(norm, EPS)
    x = jnp.concatenate([shs_flat, viewdirs, rotations, scales], axis=1)
    h = _leaky_relu(x @ params["w1"] + params["b1"])
    h = _leaky_relu(h @ params["w2"] + params["b2"])
    h = h @ params["w3"] + params["b3"]
    y = h @ params["wh"] + params["bh"]
    return jnp.tanh(y)


if __name__ == "__main__":
    key = jax.random.PRNGKey(0)
    k_shs, k_rot, k_scl, k_vd, k_par = jax.random.split(key, 5)

    # Small demo shapes; N is deliberately NOT a multiple of the tile so the padding
    # path and a 2-step ("parallel") grid are exercised.
    N = 2000
    n_sh = 4          # SH coefficients per channel -> shs flattens to 12 features
    shs = jax.random.normal(k_shs, (N, n_sh, 3), jnp.float32)
    rotations = jax.random.normal(k_rot, (N, 4), jnp.float32)
    scales = jax.random.normal(k_scl, (N, 3), jnp.float32)
    viewdirs = jax.random.normal(k_vd, (N, 3), jnp.float32)

    input_size = n_sh * 3 + 3 + 4 + 3   # 22, matching the concat in forward
    params = init_vdgs_params(k_par, input_size, output_size=1, net_width=32)

    out = jax.block_until_ready(
        vdgs_forward(params, shs, rotations, scales, viewdirs))
    ref = vdgs_reference(params, shs, rotations, scales, viewdirs)

    assert out.shape == (N, 1), out.shape
    # bf16 matmul operands + folded tail shift rounding slightly vs. the f32 reference.
    max_err = float(jnp.max(jnp.abs(out - ref)))
    assert max_err < 5e-2, f"mismatch vs reference: max abs err = {max_err}"

    print("KERNEL_OK")
</pallas_src>

<mosaic_0001>
module attributes {stable_mosaic.version = 11 : i64} {
  func.func @vdgs_kernel(%arg0: i32, %arg1: memref<1024x22xf32, #tpu.memory_space<vmem>>, %arg2: memref<22x64xbf16, #tpu.memory_space<vmem>>, %arg3: memref<1x64xf32, #tpu.memory_space<vmem>>, %arg4: memref<64x32xbf16, #tpu.memory_space<vmem>>, %arg5: memref<1x32xf32, #tpu.memory_space<vmem>>, %arg6: memref<32x1xbf16, #tpu.memory_space<vmem>>, %arg7: memref<1x1xf32, #tpu.memory_space<vmem>>, %arg8: memref<1024x1xf32, #tpu.memory_space<vmem>>) attributes {dimension_semantics = [#tpu.dimension_semantics<parallel>], iteration_bounds = array<i64: 2>, scalar_prefetch = 0 : i64, scratch_operands = 0 : i64, tpu.core_type = #tpu.core_type<tc>, window_params = [{transform_indices = @transform_0, window_bounds = array<i64: 1024, 22>}, {pipeline_mode = #tpu.pipeline_mode<synchronous>, transform_indices = @transform_1, window_bounds = array<i64: 22, 64>}, {pipeline_mode = #tpu.pipeline_mode<synchronous>, transform_indices = @transform_2, window_bounds = array<i64: 1, 64>}, {pipeline_mode = #tpu.pipeline_mode<synchronous>, transform_indices = @transform_3, window_bounds = array<i64: 64, 32>}, {pipeline_mode = #tpu.pipeline_mode<synchronous>, transform_indices = @transform_4, window_bounds = array<i64: 1, 32>}, {pipeline_mode = #tpu.pipeline_mode<synchronous>, transform_indices = @transform_5, window_bounds = array<i64: 32, 1>}, {pipeline_mode = #tpu.pipeline_mode<synchronous>, transform_indices = @transform_6, window_bounds = array<i64: 1, 1>}, {transform_indices = @transform_7, window_bounds = array<i64: 1024, 1>}]} {
    %c0 = arith.constant 0 : index
    %c0_0 = arith.constant 0 : index
    %0 = vector.load %arg1[%c0, %c0_0] : memref<1024x22xf32, #tpu.memory_space<vmem>>, vector<1024x22xf32>
    %1 = tpu.iota {dimensions = array<i32: 1>} : vector<1024x22xi32>
    %c12_i32 = arith.constant 12 : i32
    %2 = vector.broadcast %c12_i32 : i32 to vector<1024x22xi32>
    %3 = arith.cmpi slt, %1, %2 : vector<1024x22xi32>
    %4 = arith.mulf %0, %0 : vector<1024x22xf32>
    %cst = arith.constant 0.000000e+00 : f32
    %5 = vector.broadcast %cst : f32 to vector<1024x22xf32>
    %6 = arith.select %3, %4, %5 : vector<1024x22xi1>, vector<1024x22xf32>
    %cst_1 = arith.constant dense<0.000000e+00> : vector<1024xf32>
    %7 = vector.multi_reduction <add>, %6, %cst_1 [1] : vector<1024x22xf32> to vector<1024xf32>
    %8 = vector.shape_cast %7 : vector<1024xf32> to vector<1024x1xf32>
    %cst_2 = arith.constant 1.000000e-24 : f32
    %9 = vector.broadcast %cst_2 : f32 to vector<1024x1xf32>
    %10 = arith.maximumf %8, %9 : vector<1024x1xf32>
    %11 = math.rsqrt %10 : vector<1024x1xf32>
    %12 = vector.broadcast %11 : vector<1024x1xf32> to vector<1024x22xf32>
    %13 = arith.mulf %0, %12 : vector<1024x22xf32>
    %14 = arith.select %3, %13, %0 : vector<1024x22xi1>, vector<1024x22xf32>
    %15 = arith.truncf %14 : vector<1024x22xf32> to vector<1024x22xbf16>
    %c0_3 = arith.constant 0 : index
    %c0_4 = arith.constant 0 : index
    %16 = vector.load %arg2[%c0_3, %c0_4] : memref<22x64xbf16, #tpu.memory_space<vmem>>, vector<22x64xbf16>
    %cst_5 = arith.constant dense<0.000000e+00> : vector<1024x64xf32>
    %17 = tpu.matmul %15, %16, %cst_5 {dimension_numbers = #tpu.dot_dimension_numbers<[1], [0], [0], [1], [0, 0, 1, 1], [], []>} : vector<1024x22xbf16>, vector<22x64xbf16>, vector<1024x64xf32> -> vector<1024x64xf32>
    %c0_6 = arith.constant 0 : index
    %c0_7 = arith.constant 0 : index
    %18 = vector.load %arg3[%c0_6, %c0_7] : memref<1x64xf32, #tpu.memory_space<vmem>>, vector<1x64xf32>
    %19 = vector.broadcast %18 : vector<1x64xf32> to vector<1024x64xf32>
    %20 = arith.addf %17, %19 : vector<1024x64xf32>
    %cst_8 = arith.constant 0.000000e+00 : f32
    %21 = vector.broadcast %cst_8 : f32 to vector<1024x64xf32>
    %22 = arith.cmpf oge, %20, %21 : vector<1024x64xf32>
    %cst_9 = arith.constant 0.00999999977 : f32
    %23 = vector.broadcast %cst_9 : f32 to vector<1024x64xf32>
    %24 = arith.mulf %23, %20 : vector<1024x64xf32>
    %25 = arith.select %22, %20, %24 : vector<1024x64xi1>, vector<1024x64xf32>
    %26 = arith.truncf %25 : vector<1024x64xf32> to vector<1024x64xbf16>
    %c0_10 = arith.constant 0 : index
    %c0_11 = arith.constant 0 : index
    %27 = vector.load %arg4[%c0_10, %c0_11] : memref<64x32xbf16, #tpu.memory_space<vmem>>, vector<64x32xbf16>
    %cst_12 = arith.constant dense<0.000000e+00> : vector<1024x32xf32>
    %28 = tpu.matmul %26, %27, %cst_12 {dimension_numbers = #tpu.dot_dimension_numbers<[1], [0], [0], [1], [0, 0, 1, 1], [], []>} : vector<1024x64xbf16>, vector<64x32xbf16>, vector<1024x32xf32> -> vector<1024x32xf32>
    %c0_13 = arith.constant 0 : index
    %c0_14 = arith.constant 0 : index
    %29 = vector.load %arg5[%c0_13, %c0_14] : memref<1x32xf32, #tpu.memory_space<vmem>>, vector<1x32xf32>
    %30 = vector.broadcast %29 : vector<1x32xf32> to vector<1024x32xf32>
    %31 = arith.addf %28, %30 : vector<1024x32xf32>
    %cst_15 = arith.constant 0.000000e+00 : f32
    %32 = vector.broadcast %cst_15 : f32 to vector<1024x32xf32>
    %33 = arith.cmpf oge, %31, %32 : vector<1024x32xf32>
    %cst_16 = arith.constant 0.00999999977 : f32
    %34 = vector.broadcast %cst_16 : f32 to vector<1024x32xf32>
    %35 = arith.mulf %34, %31 : vector<1024x32xf32>
    %36 = arith.select %33, %31, %35 : vector<1024x32xi1>, vector<1024x32xf32>
    %37 = arith.truncf %36 : vector<1024x32xf32> to vector<1024x32xbf16>
    %c0_17 = arith.constant 0 : index
    %c0_18 = arith.constant 0 : index
    %38 = vector.load %arg6[%c0_17, %c0_18] : memref<32x1xbf16, #tpu.memory_space<vmem>>, vector<32x1xbf16>
    %cst_19 = arith.constant dense<0.000000e+00> : vector<1024x1xf32>
    %39 = tpu.matmul %37, %38, %cst_19 {dimension_numbers = #tpu.dot_dimension_numbers<[1], [0], [0], [1], [0, 0, 1, 1], [], []>} : vector<1024x32xbf16>, vector<32x1xbf16>, vector<1024x1xf32> -> vector<1024x1xf32>
    %c0_20 = arith.constant 0 : index
    %c0_21 = arith.constant 0 : index
    %40 = vector.load %arg7[%c0_20, %c0_21] : memref<1x1xf32, #tpu.memory_space<vmem>>, vector<1x1xf32>
    %41 = vector.broadcast %40 : vector<1x1xf32> to vector<1024x1xf32>
    %42 = arith.addf %39, %41 : vector<1024x1xf32>
    %43 = math.tanh %42 : vector<1024x1xf32>
    %c0_22 = arith.constant 0 : index
    %c0_23 = arith.constant 0 : index
    %44 = vector.load %arg8[%c0_22, %c0_23] : memref<1024x1xf32, #tpu.memory_space<vmem>>, vector<1024x1xf32>
    tpu.vector_store %arg8[%c0_22, %c0_23], %43 {strides = array<i32>} : memref<1024x1xf32, #tpu.memory_space<vmem>>, vector<1024x1xf32>,
    return
  }
  func.func @transform_0(%arg0: i32) -> (i32, i32) {
    %c0_i32 = arith.constant 0 : i32
    %c0_i32_0 = arith.constant 0 : i32
    return %arg0, %c0_i32 : i32, i32
  }
  func.func @transform_1(%arg0: i32) -> (i32, i32) {
    %c0_i32 = arith.constant 0 : i32
    %c0_i32_0 = arith.constant 0 : i32
    %c0_i32_1 = arith.constant 0 : i32
    return %c0_i32, %c0_i32_0 : i32, i32
  }
  func.func @transform_2(%arg0: i32) -> (i32, i32) {
    %c0_i32 = arith.constant 0 : i32
    %c0_i32_0 = arith.constant 0 : i32
    %c0_i32_1 = arith.constant 0 : i32
    return %c0_i32, %c0_i32_0 : i32, i32
  }
  func.func @transform_3(%arg0: i32) -> (i32, i32) {
    %c0_i32 = arith.constant 0 : i32
    %c0_i32_0 = arith.constant 0 : i32
    %c0_i32_1 = arith.constant 0 : i32
    return %c0_i32, %c0_i32_0 : i32, i32
  }
  func.func @transform_4(%arg0: i32) -> (i32, i32) {
    %c0_i32 = arith.constant 0 : i32
    %c0_i32_0 = arith.constant 0 : i32
    %c0_i32_1 = arith.constant 0 : i32
    return %c0_i32, %c0_i32_0 : i32, i32
  }
  func.func @transform_5(%arg0: i32) -> (i32, i32) {
    %c0_i32 = arith.constant 0 : i32
    %c0_i32_0 = arith.constant 0 : i32
    %c0_i32_1 = arith.constant 0 : i32
    return %c0_i32, %c0_i32_0 : i32, i32
  }
  func.func @transform_6(%arg0: i32) -> (i32, i32) {
    %c0_i32 = arith.constant 0 : i32
    %c0_i32_0 = arith.constant 0 : i32
    %c0_i32_1 = arith.constant 0 : i32
    return %c0_i32, %c0_i32_0 : i32, i32
  }
  func.func @transform_7(%arg0: i32) -> (i32, i32) {
    %c0_i32 = arith.constant 0 : i32
    %c0_i32_0 = arith.constant 0 : i32
    return %arg0, %c0_i32 : i32, i32
  }
}

</mosaic_0001>

<llo_original>
// kernel: tpu_custom_call.1
$region0: #{tpu_custom_call.1}
  #allocation0 [shape = 'u32[]', space=smem, size = 0x4, offset = 0x4, fixed_abs, tag = 'smem constant byte address 0x4 - core index']
  #allocation1 [shape = 'u32[72,128]{1,0:T(1,128)}', space=vmem, size = 0x9000, scoped, tag = 'internal scratch']
  #allocation2 [shape = 'f32[1,1]{1,0:T(1,128)S(1)}', space=vmem, size = 0x200, scoped, tag = 'scoped memory for tpu_custom_call.1']
  %s0 = inlined_call_operand.vmem [shape: f32[2048,22], index: 0, kind: input, shape index: {}]
  %s1 = inlined_call_operand.vmem [shape: bf16[22,64], index: 1, kind: input, shape index: {}]
  %s2 = inlined_call_operand.vmem [shape: f32[1,64], index: 2, kind: input, shape index: {}]
  %s3 = inlined_call_operand.vmem [shape: bf16[64,32], index: 3, kind: input, shape index: {}]
  %s4 = inlined_call_operand.vmem [shape: f32[1,32], index: 4, kind: input, shape index: {}]
  %s5 = inlined_call_operand.vmem [shape: bf16[32,1], index: 5, kind: input, shape index: {}]
  %s6 = inlined_call_operand.<no memory space> [shape: f32[1,1], index: 6, kind: input, shape index: {}]
  %s7 = inlined_call_operand.vmem [shape: f32[2048,1], index: 7, kind: output, shape index: {}]
  %s8 = sld [smem:[#allocation0]]
  $region61: #{tpu_custom_call.1} parent=0
    _
  %s10 = ssub.s32 1, %s8
  %s11 = scalar_select 0, %s10, %s8
  %v12 = vstv %s6
  %13 = vst [vmem:[#allocation2] sm:$0x1] %v12
  loop: start=0, step=1, limit=4
  $region2: #{tpu_custom_call.1} parent=0 // loop_pre_header
    _
  $region3: #{tpu_custom_call.1} parent=0 // loop_header
    %s15 = sphi 0, %s19
    %p16 = scmp.ge.s32.totalorder %s15, 4
    %s25 = sphi 0, %s27
    %s28 = sphi 0, %s25
    %s29 = sphi 0, %s28
    %s45 = sphi 0, %s29
    %s49 = sphi 0, %s49
    %s51 = sphi 0, %s49
    %s52 = sphi 0, %s51
    %s66 = sphi 0, %s52
    %s70 = sphi 0, %s70
    %s72 = sphi 0, %s70
    %s73 = sphi 0, %s72
    %s87 = sphi 0, %s73
    %s91 = sphi 0, %s91
    %s93 = sphi 0, %s91
    %s94 = sphi 0, %s93
    %s108 = sphi 0, %s94
    %s112 = sphi 0, %s112
    %s114 = sphi 0, %s112
    %s115 = sphi 0, %s114
    %s129 = sphi 0, %s115
    %s133 = sphi 0, %s133
    %s135 = sphi 0, %s133
    %s136 = sphi 0, %s135
    %s150 = sphi 0, %s136
    %s154 = sphi 0, %s154
    %s156 = sphi 0, %s154
    %s157 = sphi 0, %s156
    %s171 = sphi 0, %s157
    %s177 = sphi 0, %s179
    %s180 = sphi 0, %s177
    %s181 = sphi 0, %s180
    %s197 = sphi 0, %s181
  $region4: #{tpu_custom_call.1} parent=0 // loop_header_branch
    %18 = sbr.rel (%p16) target = $region8
  $region5: #{tpu_custom_call.1} parent=0 // loop_body
    %s20 = ssub.s32 %s15, 1
    %s21 = ssub.s32 %s15, 2
    %s22 = sadd.s32 %s15, 1
    %s23 = ssub.s32 %s15, %s22
    %p24 = scmp.eq.s32.totalorder %s23, 0
    %s26 = sadd.s32 %s25, 1
    %s27 = scalar_select %p24, %s25, %s26
    %p30 = pneg %p24
    %p31 = scmp.eq.s32.totalorder %s15, 1
    %p32 = por %p30, %p31
    %p33 = scmp.ne.s32.totalorder %s25, %s28
    %p34 = scmp.eq.s32.totalorder %s15, 0
    %p35 = por %p33, %p34
    %p36 = scmp.ne.s32.totalorder %s25, %s28
    %p37 = scmp.eq.s32.totalorder %s20, 1
    %p38 = por %p36, %p37
    %p39 = scmp.ne.s32.totalorder %s28, %s29
    %p40 = scmp.eq.s32.totalorder %s20, 0
    %p41 = por %p39, %p40
    %p42 = scmp.ne.s32.totalorder %s28, %s29
    %p43 = scmp.eq.s32.totalorder %s21, 1
    %p44 = por %p42, %p43
    %p46 = scmp.ne.s32.totalorder %s29, %s45
    %p47 = scmp.eq.s32.totalorder %s21, 0
    %p48 = por %p46, %p47
    %s50 = sadd.s32 %s49, 1
    %p53 = scmp.eq.s32.totalorder %s15, 1
    %p54 = scmp.ne.s32.totalorder %s49, %s51
    %p55 = scmp.eq.s32.totalorder %s15, 0
    %p56 = por %p54, %p55
    %p57 = scmp.ne.s32.totalorder %s49, %s51
    %p58 = scmp.eq.s32.totalorder %s20, 1
    %p59 = por %p57, %p58
    %p60 = scmp.ne.s32.totalorder %s51, %s52
    %p61 = scmp.eq.s32.totalorder %s20, 0
    %p62 = por %p60, %p61
    %p63 = scmp.ne.s32.totalorder %s51, %s52
    %p64 = scmp.eq.s32.totalorder %s21, 1
    %p65 = por %p63, %p64
    %p67 = scmp.ne.s32.totalorder %s52, %s66
    %p68 = scmp.eq.s32.totalorder %s21, 0
    %p69 = por %p67, %p68
    %s71 = sadd.s32 %s70, 1
    %p74 = scmp.eq.s32.totalorder %s15, 1
    %p75 = scmp.ne.s32.totalorder %s70, %s72
    %p76 = scmp.eq.s32.totalorder %s15, 0
    %p77 = por %p75, %p76
    %p78 = scmp.ne.s32.totalorder %s70, %s72
    %p79 = scmp.eq.s32.totalorder %s20, 1
    %p80 = por %p78, %p79
    %p81 = scmp.ne.s32.totalorder %s72, %s73
    %p82 = scmp.eq.s32.totalorder %s20, 0
    %p83 = por %p81, %p82
    %p84 = scmp.ne.s32.totalorder %s72, %s73
    %p85 = scmp.eq.s32.totalorder %s21, 1
    %p86 = por %p84, %p85
    %p88 = scmp.ne.s32.totalorder %s73, %s87
    %p89 = scmp.eq.s32.totalorder %s21, 0
    %p90 = por %p88, %p89
    %s92 = sadd.s32 %s91, 1
    %p95 = scmp.eq.s32.totalorder %s15, 1
    %p96 = scmp.ne.s32.totalorder %s91, %s93
    %p97 = scmp.eq.s32.totalorder %s15, 0
    %p98 = por %p96, %p97
    %p99 = scmp.ne.s32.totalorder %s91, %s93
    %p100 = scmp.eq.s32.totalorder %s20, 1
    %p101 = por %p99, %p100
    %p102 = scmp.ne.s32.totalorder %s93, %s94
    %p103 = scmp.eq.s32.totalorder %s20, 0
    %p104 = por %p102, %p103
    %p105 = scmp.ne.s32.totalorder %s93, %s94
    %p106 = scmp.eq.s32.totalorder %s21, 1
    %p107 = por %p105, %p106
    %p109 = scmp.ne.s32.totalorder %s94, %s108
    %p110 = scmp.eq.s32.totalorder %s21, 0
    %p111 = por %p109, %p110
    %s113 = sadd.s32 %s112, 1
    %p116 = scmp.eq.s32.totalorder %s15, 1
    %p117 = scmp.ne.s32.totalorder %s112, %s114
    %p118 = scmp.eq.s32.totalorder %s15, 0
    %p119 = por %p117, %p118
    %p120 = scmp.ne.s32.totalorder %s112, %s114
    %p121 = scmp.eq.s32.totalorder %s20, 1
    %p122 = por %p120, %p121
    %p123 = scmp.ne.s32.totalorder %s114, %s115
    %p124 = scmp.eq.s32.totalorder %s20, 0
    %p125 = por %p123, %p124
    %p126 = scmp.ne.s32.totalorder %s114, %s115
    %p127 = scmp.eq.s32.totalorder %s21, 1
    %p128 = por %p126, %p127
    %p130 = scmp.ne.s32.totalorder %s115, %s129
    %p131 = scmp.eq.s32.totalorder %s21, 0
    %p132 = por %p130, %p131
    %s134 = sadd.s32 %s133, 1
    %p137 = scmp.eq.s32.totalorder %s15, 1
    %p138 = scmp.ne.s32.totalorder %s133, %s135
    %p139 = scmp.eq.s32.totalorder %s15, 0
    %p140 = por %p138, %p139
    %p141 = scmp.ne.s32.totalorder %s133, %s135
    %p142 = scmp.eq.s32.totalorder %s20, 1
    %p143 = por %p141, %p142
    %p144 = scmp.ne.s32.totalorder %s135, %s136
    %p145 = scmp.eq.s32.totalorder %s20, 0
    %p146 = por %p144, %p145
    %p147 = scmp.ne.s32.totalorder %s135, %s136
    %p148 = scmp.eq.s32.totalorder %s21, 1
    %p149 = por %p147, %p148
    %p151 = scmp.ne.s32.totalorder %s136, %s150
    %p152 = scmp.eq.s32.totalorder %s21, 0
    %p153 = por %p151, %p152
    %s155 = sadd.s32 %s154, 1
    %p158 = scmp.eq.s32.totalorder %s15, 1
    %p159 = scmp.ne.s32.totalorder %s154, %s156
    %p160 = scmp.eq.s32.totalorder %s15, 0
    %p161 = por %p159, %p160
    %p162 = scmp.ne.s32.totalorder %s154, %s156
    %p163 = scmp.eq.s32.totalorder %s20, 1
    %p164 = por %p162, %p163
    %p165 = scmp.ne.s32.totalorder %s156, %s157
    %p166 = scmp.eq.s32.totalorder %s20, 0
    %p167 = por %p165, %p166
    %p168 = scmp.ne.s32.totalorder %s156, %s157
    %p169 = scmp.eq.s32.totalorder %s21, 1
    %p170 = por %p168, %p169
    %p172 = scmp.ne.s32.totalorder %s157, %s171
    %p173 = scmp.eq.s32.totalorder %s21, 0
    %p174 = por %p172, %p173
    %s175 = ssub.s32 %s15, %s22
    %p176 = scmp.eq.s32.totalorder %s175, 0
    %s178 = sadd.s32 %s177, 1
    %s179 = scalar_select %p176, %s177, %s178
    %p182 = pneg %p176
    %p183 = scmp.eq.s32.totalorder %s15, 1
    %p184 = por %p182, %p183
    %p185 = scmp.ne.s32.totalorder %s177, %s180
    %p186 = scmp.eq.s32.totalorder %s15, 0
    %p187 = por %p185, %p186
    %p188 = scmp.ne.s32.totalorder %s177, %s180
    %p189 = scmp.eq.s32.totalorder %s20, 1
    %p190 = por %p188, %p189
    %p191 = scmp.ne.s32.totalorder %s180, %s181
    %p192 = scmp.eq.s32.totalorder %s20, 0
    %p193 = por %p191, %p192
    %p194 = scmp.ne.s32.totalorder %s180, %s181
    %p195 = scmp.eq.s32.totalorder %s21, 1
    %p196 = por %p194, %p195
    %p198 = scmp.ne.s32.totalorder %s181, %s197
    %p199 = scmp.eq.s32.totalorder %s21, 0
    %p200 = por %p198, %p199
    %p201 = scmp.le.s32.totalorder 1, %s15
    %p202 = scmp.lt.s32.totalorder %s15, 3
    %p203 = pnand %p201, %p202
    %p204 = pneg %p203
    // Predicated region
    $region9: #{tpu_custom_call.1} parent=5 // pred_check
      _
    $region10: #{tpu_custom_call.1} parent=5 // pred_check_branch
      %206 = sbr.rel (%p203) target = $region12
    $region11: #{tpu_custom_call.1} parent=5 // pred_region
      %s207 = ssub.s32 %s15, 1
      // Predicated region
      $region13: #{tpu_custom_call.1} parent=11 // pred_check
        %p208 = pneg %p62
      $region14: #{tpu_custom_call.1} parent=11 // pred_check_branch
        %210 = sbr.rel (%p208) target = $region16
      $region15: #{tpu_custom_call.1} parent=11 // pred_region
        _
      $region16: #{tpu_custom_call.1} parent=11 // pred_fallthru
        _
      // Predicated region
      $region17: #{tpu_custom_call.1} parent=11 // pred_check
        %p211 = pneg %p83
      $region18: #{tpu_custom_call.1} parent=11 // pred_check_branch
        %213 = sbr.rel (%p211) target = $region20
      $region19: #{tpu_custom_call.1} parent=11 // pred_region
        _
      $region20: #{tpu_custom_call.1} parent=11 // pred_fallthru
        _
      // Predicated region
      $region21: #{tpu_custom_call.1} parent=11 // pred_check
        %p214 = pneg %p104
      $region22: #{tpu_custom_call.1} parent=11 // pred_check_branch
        %216 = sbr.rel (%p214) target = $region24
      $region23: #{tpu_custom_call.1} parent=11 // pred_region
        _
      $region24: #{tpu_custom_call.1} parent=11 // pred_fallthru
        _
      // Predicated region
      $region25: #{tpu_custom_call.1} parent=11 // pred_check
        %p217 = pneg %p125
      $region26: #{tpu_custom_call.1} parent=11 // pred_check_branch
        %219 = sbr.rel (%p217) target = $region28
      $region27: #{tpu_custom_call.1} parent=11 // pred_region
        _
      $region28: #{tpu_custom_call.1} parent=11 // pred_fallthru
        _
      // Predicated region
      $region29: #{tpu_custom_call.1} parent=11 // pred_check
        %p220 = pneg %p146
      $region30: #{tpu_custom_call.1} parent=11 // pred_check_branch
        %222 = sbr.rel (%p220) target = $region32
      $region31: #{tpu_custom_call.1} parent=11 // pred_region
        _
      $region32: #{tpu_custom_call.1} parent=11 // pred_fallthru
        _
      // Predicated region
      $region33: #{tpu_custom_call.1} parent=11 // pred_check
        %p223 = pneg %p167
      $region34: #{tpu_custom_call.1} parent=11 // pred_check_branch
        %225 = sbr.rel (%p223) target = $region36
      $region35: #{tpu_custom_call.1} parent=11 // pred_region
        _
      $region36: #{tpu_custom_call.1} parent=11 // pred_fallthru
        _
    $region12: #{tpu_custom_call.1} parent=5 // pred_fallthru
      _
    %p226 = scmp.lt.s32.totalorder %s15, 2
    // Predicated region
    $region37: #{tpu_custom_call.1} parent=5 // pred_check
      %p227 = pneg %p226
    $region38: #{tpu_custom_call.1} parent=5 // pred_check_branch
      %229 = sbr.rel (%p227) target = $region40
    $region39: #{tpu_custom_call.1} parent=5 // pred_region
      // Predicated region
      $region41: #{tpu_custom_call.1} parent=39 // pred_check
        %p230 = pneg %p35
      $region42: #{tpu_custom_call.1} parent=39 // pred_check_branch
        %232 = sbr.rel (%p230) target = $region44
      $region43: #{tpu_custom_call.1} parent=39 // pred_region
        %s233 = smul.u32 128, %s15
        %p234 = scmp.lt.s32.totalorder %s233, 255
        %s235 = scalar_select %p234, %s233, 255
        %s236 = smul.addr %s235, 8
        %s237 = scalar_lea.vmem %s0, %s236
        %s238 = smul.u32 128, %s15
      $region44: #{tpu_custom_call.1} parent=39 // pred_fallthru
        _
    $region40: #{tpu_custom_call.1} parent=5 // pred_fallthru
      _
    %p239 = scmp.le.s32.totalorder 1, %s15
    %p240 = scmp.lt.s32.totalorder %s15, 3
    %p241 = pnand %p239, %p240
    %p242 = pneg %p241
    // Predicated region
    $region45: #{tpu_custom_call.1} parent=5 // pred_check
      _
    $region46: #{tpu_custom_call.1} parent=5 // pred_check_branch
      %244 = sbr.rel (%p241) target = $region48
    $region47: #{tpu_custom_call.1} parent=5 // pred_region
      %s245 = ssub.s32 %s15, 1
      %s246 = smul.u32 128, %s20
      %p247 = scmp.lt.s32.totalorder %s246, 255
      %s248 = scalar_select %p247, %s246, 255
      %s249 = smul.addr %s248, 8
      %s250 = scalar_lea.vmem %s0, %s249
      %p251 = pneg %p41
      %p252 = pneg %p38
      %p253 = pneg %p62
      %p254 = pneg %p59
      %p255 = pneg %p83
      %p256 = pneg %p80
      %p257 = pneg %p104
      %p258 = pneg %p101
      %p259 = pneg %p125
      %p260 = pneg %p122
      %p261 = pneg %p146
      %p262 = pneg %p143
      %p263 = pneg %p167
      %p264 = pneg %p164
      %p265 = pneg %p193
      %p266 = pneg %p190
      %s267 = smul.u32 128, %s20
      %p268 = scmp.lt.s32.totalorder %s267, 255
      %s269 = scalar_select %p268, %s267, 255
      %s270 = smul.addr %s269, 8
      %s271 = scalar_lea.vmem %s7, %s270
      %s272 = smul.u32 128, %s20
      %p273 = scmp.lt.s32.totalorder %s272, 255
      %s274 = scalar_select %p273, %s272, 255
      %s275 = smul.addr %s274, 8
      %s276 = scalar_lea.vmem %s0, %s275
      %s277 = smul.u32 128, %s20
      %s278 = smul.u32 128, %s20
      %p279 = scmp.lt.s32.totalorder %s278, 255
      %s280 = scalar_select %p279, %s278, 255
      %s281 = smul.addr %s280, 8
      %s282 = scalar_lea.vmem %s7, %s281
      %s283 = smul.u32 128, %s20
      %v285 = vld [vmem:[%s276] sm:$0xff]
      %v286 = vld [vmem:[%s276 + $0x8] sm:$0xff]
      %v287 = vld [vmem:[%s276 + $0x10] sm:$0xff]
      %v288 = vld [vmem:[%s276 + $0x18] sm:$0xff]
      %v289 = vld [vmem:[%s276 + $0x20] sm:$0xff]
      %v290 = vld [vmem:[%s276 + $0x28] sm:$0xff]
      %v291 = vld [vmem:[%s276 + $0x30] sm:$0xff]
      %v292 = vld [vmem:[%s276 + $0x38] sm:$0xff]
      %v293 = vld [vmem:[%s276 + $0x40] sm:$0xff]
      %v294 = vld [vmem:[%s276 + $0x48] sm:$0xff]
      %v295 = vld [vmem:[%s276 + $0x50] sm:$0xff]
      %v296 = vld [vmem:[%s276 + $0x58] sm:$0xff]
      %v297 = vld [vmem:[%s276 + $0x60] sm:$0xff]
      %v298 = vld [vmem:[%s276 + $0x68] sm:$0xff]
      %v299 = vld [vmem:[%s276 + $0x70] sm:$0xff]
      %v300 = vld [vmem:[%s276 + $0x78] sm:$0xff]
      %v301 = vld [vmem:[%s276 + $0x80] sm:$0xff]
      %v302 = vld [vmem:[%s276 + $0x88] sm:$0xff]
      %v303 = vld [vmem:[%s276 + $0x90] sm:$0xff]
      %v304 = vld [vmem:[%s276 + $0x98] sm:$0xff]
      %v305 = vld [vmem:[%s276 + $0xa0] sm:$0xff]
      %v306 = vld [vmem:[%s276 + $0xa8] sm:$0xff]
      %v307 = vld [vmem:[%s276 + $0xb0] sm:$0xff]
      %v308 = vld [vmem:[%s276 + $0xb8] sm:$0xff]
      %v309 = vld [vmem:[%s276 + $0xc0] sm:$0xff]
      %v310 = vld [vmem:[%s276 + $0xc8] sm:$0xff]
      %v311 = vld [vmem:[%s276 + $0xd0] sm:$0xff]
      %v312 = vld [vmem:[%s276 + $0xd8] sm:$0xff]
      %v313 = vld [vmem:[%s276 + $0xe0] sm:$0xff]
      %v314 = vld [vmem:[%s276 + $0xe8] sm:$0xff]
      %v315 = vld [vmem:[%s276 + $0xf0] sm:$0xff]
      %v316 = vld [vmem:[%s276 + $0xf8] sm:$0xff]
      %v317 = vld [vmem:[%s276 + $0x100] sm:$0xff]
      %v318 = vld [vmem:[%s276 + $0x108] sm:$0xff]
      %v319 = vld [vmem:[%s276 + $0x110] sm:$0xff]
      %v320 = vld [vmem:[%s276 + $0x118] sm:$0xff]
      %v321 = vld [vmem:[%s276 + $0x120] sm:$0xff]
      %v322 = vld [vmem:[%s276 + $0x128] sm:$0xff]
      %v323 = vld [vmem:[%s276 + $0x130] sm:$0xff]
      %v324 = vld [vmem:[%s276 + $0x138] sm:$0xff]
      %v325 = vld [vmem:[%s276 + $0x140] sm:$0xff]
      %v326 = vld [vmem:[%s276 + $0x148] sm:$0xff]
      %v327 = vld [vmem:[%s276 + $0x150] sm:$0xff]
      %v328 = vld [vmem:[%s276 + $0x158] sm:$0xff]
      %v329 = vld [vmem:[%s276 + $0x160] sm:$0xff]
      %v330 = vld [vmem:[%s276 + $0x168] sm:$0xff]
      %v331 = vld [vmem:[%s276 + $0x170] sm:$0xff]
      %v332 = vld [vmem:[%s276 + $0x178] sm:$0xff]
      %v333 = vld [vmem:[%s276 + $0x180] sm:$0xff]
      %v334 = vld [vmem:[%s276 + $0x188] sm:$0xff]
      %v335 = vld [vmem:[%s276 + $0x190] sm:$0xff]
      %v336 = vld [vmem:[%s276 + $0x198] sm:$0xff]
      %v337 = vld [vmem:[%s276 + $0x1a0] sm:$0xff]
      %v338 = vld [vmem:[%s276 + $0x1a8] sm:$0xff]
      %v339 = vld [vmem:[%s276 + $0x1b0] sm:$0xff]
      %v340 = vld [vmem:[%s276 + $0x1b8] sm:$0xff]
      %v341 = vld [vmem:[%s276 + $0x1c0] sm:$0xff]
      %v342 = vld [vmem:[%s276 + $0x1c8] sm:$0xff]
      %v343 = vld [vmem:[%s276 + $0x1d0] sm:$0xff]
      %v344 = vld [vmem:[%s276 + $0x1d8] sm:$0xff]
      %v345 = vld [vmem:[%s276 + $0x1e0] sm:$0xff]
      %v346 = vld [vmem:[%s276 + $0x1e8] sm:$0xff]
      %v347 = vld [vmem:[%s276 + $0x1f0] sm:$0xff]
      %v348 = vld [vmem:[%s276 + $0x1f8] sm:$0xff]
      %v349 = vld [vmem:[%s276 + $0x200] sm:$0xff]
      %v350 = vld [vmem:[%s276 + $0x208] sm:$0xff]
      %v351 = vld [vmem:[%s276 + $0x210] sm:$0xff]
      %v352 = vld [vmem:[%s276 + $0x218] sm:$0xff]
      %v353 = vld [vmem:[%s276 + $0x220] sm:$0xff]
      %v354 = vld [vmem:[%s276 + $0x228] sm:$0xff]
      %v355 = vld [vmem:[%s276 + $0x230] sm:$0xff]
      %v356 = vld [vmem:[%s276 + $0x238] sm:$0xff]
      %v357 = vld [vmem:[%s276 + $0x240] sm:$0xff]
      %v358 = vld [vmem:[%s276 + $0x248] sm:$0xff]
      %v359 = vld [vmem:[%s276 + $0x250] sm:$0xff]
      %v360 = vld [vmem:[%s276 + $0x258] sm:$0xff]
      %v361 = vld [vmem:[%s276 + $0x260] sm:$0xff]
      %v362 = vld [vmem:[%s276 + $0x268] sm:$0xff]
      %v363 = vld [vmem:[%s276 + $0x270] sm:$0xff]
      %v364 = vld [vmem:[%s276 + $0x278] sm:$0xff]
      %v365 = vld [vmem:[%s276 + $0x280] sm:$0xff]
      %v366 = vld [vmem:[%s276 + $0x288] sm:$0xff]
      %v367 = vld [vmem:[%s276 + $0x290] sm:$0xff]
      %v368 = vld [vmem:[%s276 + $0x298] sm:$0xff]
      %v369 = vld [vmem:[%s276 + $0x2a0] sm:$0xff]
      %v370 = vld [vmem:[%s276 + $0x2a8] sm:$0xff]
      %v371 = vld [vmem:[%s276 + $0x2b0] sm:$0xff]
      %v372 = vld [vmem:[%s276 + $0x2b8] sm:$0xff]
      %v373 = vld [vmem:[%s276 + $0x2c0] sm:$0xff]
      %v374 = vld [vmem:[%s276 + $0x2c8] sm:$0xff]
      %v375 = vld [vmem:[%s276 + $0x2d0] sm:$0xff]
      %v376 = vld [vmem:[%s276 + $0x2d8] sm:$0xff]
      %v377 = vld [vmem:[%s276 + $0x2e0] sm:$0xff]
      %v378 = vld [vmem:[%s276 + $0x2e8] sm:$0xff]
      %v379 = vld [vmem:[%s276 + $0x2f0] sm:$0xff]
      %v380 = vld [vmem:[%s276 + $0x2f8] sm:$0xff]
      %v381 = vld [vmem:[%s276 + $0x300] sm:$0xff]
      %v382 = vld [vmem:[%s276 + $0x308] sm:$0xff]
      %v383 = vld [vmem:[%s276 + $0x310] sm:$0xff]
      %v384 = vld [vmem:[%s276 + $0x318] sm:$0xff]
      %v385 = vld [vmem:[%s276 + $0x320] sm:$0xff]
      %v386 = vld [vmem:[%s276 + $0x328] sm:$0xff]
      %v387 = vld [vmem:[%s276 + $0x330] sm:$0xff]
      %v388 = vld [vmem:[%s276 + $0x338] sm:$0xff]
      %v389 = vld [vmem:[%s276 + $0x340] sm:$0xff]
      %v390 = vld [vmem:[%s276 + $0x348] sm:$0xff]
      %v391 = vld [vmem:[%s276 + $0x350] sm:$0xff]
      %v392 = vld [vmem:[%s276 + $0x358] sm:$0xff]
      %v393 = vld [vmem:[%s276 + $0x360] sm:$0xff]
      %v394 = vld [vmem:[%s276 + $0x368] sm:$0xff]
      %v395 = vld [vmem:[%s276 + $0x370] sm:$0xff]
      %v396 = vld [vmem:[%s276 + $0x378] sm:$0xff]
      %v397 = vld [vmem:[%s276 + $0x380] sm:$0xff]
      %v398 = vld [vmem:[%s276 + $0x388] sm:$0xff]
      %v399 = vld [vmem:[%s276 + $0x390] sm:$0xff]
      %v400 = vld [vmem:[%s276 + $0x398] sm:$0xff]
      %v401 = vld [vmem:[%s276 + $0x3a0] sm:$0xff]
      %v402 = vld [vmem:[%s276 + $0x3a8] sm:$0xff]
      %v403 = vld [vmem:[%s276 + $0x3b0] sm:$0xff]
      %v404 = vld [vmem:[%s276 + $0x3b8] sm:$0xff]
      %v405 = vld [vmem:[%s276 + $0x3c0] sm:$0xff]
      %v406 = vld [vmem:[%s276 + $0x3c8] sm:$0xff]
      %v407 = vld [vmem:[%s276 + $0x3d0] sm:$0xff]
      %v408 = vld [vmem:[%s276 + $0x3d8] sm:$0xff]
      %v409 = vld [vmem:[%s276 + $0x3e0] sm:$0xff]
      %v410 = vld [vmem:[%s276 + $0x3e8] sm:$0xff]
      %v411 = vld [vmem:[%s276 + $0x3f0] sm:$0xff]
      %v412 = vld [vmem:[%s276 + $0x3f8] sm:$0xff]
      %v413 = vlaneseq
      %v414 = vand.u32 %v413, 127
      %vm415 = vcmp.lt.s32.totalorder %v414, 12
      %v416 = vmul.f32 %v285, %v285
      %v417 = vmul.f32 %v286, %v286
      %v418 = vmul.f32 %v287, %v287
      %v419 = vmul.f32 %v288, %v288
      %v420 = vmul.f32 %v289, %v289
      %v421 = vmul.f32 %v290, %v290
      %v422 = vmul.f32 %v291, %v291
      %v423 = vmul.f32 %v292, %v292
      %v424 = vmul.f32 %v293, %v293
      %v425 = vmul.f32 %v294, %v294
      %v426 = vmul.f32 %v295, %v295
      %v427 = vmul.f32 %v296, %v296
      %v428 = vmul.f32 %v297, %v297
      %v429 = vmul.f32 %v298, %v298
      %v430 = vmul.f32 %v299, %v299
      %v431 = vmul.f32 %v300, %v300
      %v432 = vmul.f32 %v301, %v301
      %v433 = vmul.f32 %v302, %v302
      %v434 = vmul.f32 %v303, %v303
      %v435 = vmul.f32 %v304, %v304
      %v436 = vmul.f32 %v305, %v305
      %v437 = vmul.f32 %v306, %v306
      %v438 = vmul.f32 %v307, %v307
      %v439 = vmul.f32 %v308, %v308
      %v440 = vmul.f32 %v309, %v309
      %v441 = vmul.f32 %v310, %v310
      %v442 = vmul.f32 %v311, %v311
      %v443 = vmul.f32 %v312, %v312
      %v444 = vmul.f32 %v313, %v313
      %v445 = vmul.f32 %v314, %v314
      %v446 = vmul.f32 %v315, %v315
      %v447 = vmul.f32 %v316, %v316
      %v448 = vmul.f32 %v317, %v317
      %v449 = vmul.f32 %v318, %v318
      %v450 = vmul.f32 %v319, %v319
      %v451 = vmul.f32 %v320, %v320
      %v452 = vmul.f32 %v321, %v321
      %v453 = vmul.f32 %v322, %v322
      %v454 = vmul.f32 %v323, %v323
      %v455 = vmul.f32 %v324, %v324
      %v456 = vmul.f32 %v325, %v325
      %v457 = vmul.f32 %v326, %v326
      %v458 = vmul.f32 %v327, %v327
      %v459 = vmul.f32 %v328, %v328
      %v460 = vmul.f32 %v329, %v329
      %v461 = vmul.f32 %v330, %v330
      %v462 = vmul.f32 %v331, %v331
      %v463 = vmul.f32 %v332, %v332
      %v464 = vmul.f32 %v333, %v333
      %v465 = vmul.f32 %v334, %v334
      %v466 = vmul.f32 %v335, %v335
      %v467 = vmul.f32 %v336, %v336
      %v468 = vmul.f32 %v337, %v337
      %v469 = vmul.f32 %v338, %v338
      %v470 = vmul.f32 %v339, %v339
      %v471 = vmul.f32 %v340, %v340
      %v472 = vmul.f32 %v341, %v341
      %v473 = vmul.f32 %v342, %v342
      %v474 = vmul.f32 %v343, %v343
      %v475 = vmul.f32 %v344, %v344
      %v476 = vmul.f32 %v345, %v345
      %v477 = vmul.f32 %v346, %v346
      %v478 = vmul.f32 %v347, %v347
      %v479 = vmul.f32 %v348, %v348
      %v480 = vmul.f32 %v349, %v349
      %v481 = vmul.f32 %v350, %v350
      %v482 = vmul.f32 %v351, %v351
      %v483 = vmul.f32 %v352, %v352
      %v484 = vmul.f32 %v353, %v353
      %v485 = vmul.f32 %v354, %v354
      %v486 = vmul.f32 %v355, %v355
      %v487 = vmul.f32 %v356, %v356
      %v488 = vmul.f32 %v357, %v357
      %v489 = vmul.f32 %v358, %v358
      %v490 = vmul.f32 %v359, %v359
      %v491 = vmul.f32 %v360, %v360
      %v492 = vmul.f32 %v361, %v361
      %v493 = vmul.f32 %v362, %v362
      %v494 = vmul.f32 %v363, %v363
      %v495 = vmul.f32 %v364, %v364
      %v496 = vmul.f32 %v365, %v365
      %v497 = vmul.f32 %v366, %v366
      %v498 = vmul.f32 %v367, %v367
      %v499 = vmul.f32 %v368, %v368
      %v500 = vmul.f32 %v369, %v369
      %v501 = vmul.f32 %v370, %v370
      %v502 = vmul.f32 %v371, %v371
      %v503 = vmul.f32 %v372, %v372
      %v504 = vmul.f32 %v373, %v373
      %v505 = vmul.f32 %v374, %v374
      %v506 = vmul.f32 %v375, %v375
      %v507 = vmul.f32 %v376, %v376
      %v508 = vmul.f32 %v377, %v377
      %v509 = vmul.f32 %v378, %v378
      %v510 = vmul.f32 %v379, %v379
      %v511 = vmul.f32 %v380, %v380
      %v512 = vmul.f32 %v381, %v381
      %v513 = vmul.f32 %v382, %v382
      %v514 = vmul.f32 %v383, %v383
      %v515 = vmul.f32 %v384, %v384
      %v516 = vmul.f32 %v385, %v385
      %v517 = vmul.f32 %v386, %v386
      %v518 = vmul.f32 %v387, %v387
      %v519 = vmul.f32 %v388, %v388
      %v520 = vmul.f32 %v389, %v389
      %v521 = vmul.f32 %v390, %v390
      %v522 = vmul.f32 %v391, %v391
      %v523 = vmul.f32 %v392, %v392
      %v524 = vmul.f32 %v393, %v393
      %v525 = vmul.f32 %v394, %v394
      %v526 = vmul.f32 %v395, %v395
      %v527 = vmul.f32 %v396, %v396
      %v528 = vmul.f32 %v397, %v397
      %v529 = vmul.f32 %v398, %v398
      %v530 = vmul.f32 %v399, %v399
      %v531 = vmul.f32 %v400, %v400
      %v532 = vmul.f32 %v401, %v401
      %v533 = vmul.f32 %v402, %v402
      %v534 = vmul.f32 %v403, %v403
      %v535 = vmul.f32 %v404, %v404
      %v536 = vmul.f32 %v405, %v405
      %v537 = vmul.f32 %v406, %v406
      %v538 = vmul.f32 %v407, %v407
      %v539 = vmul.f32 %v408, %v408
      %v540 = vmul.f32 %v409, %v409
      %v541 = vmul.f32 %v410, %v410
      %v542 = vmul.f32 %v411, %v411
      %v543 = vmul.f32 %v412, %v412
      %v544 = vsel %vm415, %v416, 0.0
      %v545 = vsel %vm415, %v417, 0.0
      %v546 = vsel %vm415, %v418, 0.0
      %v547 = vsel %vm415, %v419, 0.0
      %v548 = vsel %vm415, %v420, 0.0
      %v549 = vsel %vm415, %v421, 0.0
      %v550 = vsel %vm415, %v422, 0.0
      %v551 = vsel %vm415, %v423, 0.0
      %v552 = vsel %vm415, %v424, 0.0
      %v553 = vsel %vm415, %v425, 0.0
      %v554 = vsel %vm415, %v426, 0.0
      %v555 = vsel %vm415, %v427, 0.0
      %v556 = vsel %vm415, %v428, 0.0
      %v557 = vsel %vm415, %v429, 0.0
      %v558 = vsel %vm415, %v430, 0.0
      %v559 = vsel %vm415, %v431, 0.0
      %v560 = vsel %vm415, %v432, 0.0
      %v561 = vsel %vm415, %v433, 0.0
      %v562 = vsel %vm415, %v434, 0.0
      %v563 = vsel %vm415, %v435, 0.0
      %v564 = vsel %vm415, %v436, 0.0
      %v565 = vsel %vm415, %v437, 0.0
      %v566 = vsel %vm415, %v438, 0.0
      %v567 = vsel %vm415, %v439, 0.0
      %v568 = vsel %vm415, %v440, 0.0
      %v569 = vsel %vm415, %v441, 0.0
      %v570 = vsel %vm415, %v442, 0.0
      %v571 = vsel %vm415, %v443, 0.0
      %v572 = vsel %vm415, %v444, 0.0
      %v573 = vsel %vm415, %v445, 0.0
      %v574 = vsel %vm415, %v446, 0.0
      %v575 = vsel %vm415, %v447, 0.0
      %v576 = vsel %vm415, %v448, 0.0
      %v577 = vsel %vm415, %v449, 0.0
      %v578 = vsel %vm415, %v450, 0.0
      %v579 = vsel %vm415, %v451, 0.0
      %v580 = vsel %vm415, %v452, 0.0
      %v581 = vsel %vm415, %v453, 0.0
      %v582 = vsel %vm415, %v454, 0.0
      %v583 = vsel %vm415, %v455, 0.0
      %v584 = vsel %vm415, %v456, 0.0
      %v585 = vsel %vm415, %v457, 0.0
      %v586 = vsel %vm415, %v458, 0.0
      %v587 = vsel %vm415, %v459, 0.0
      %v588 = vsel %vm415, %v460, 0.0
      %v589 = vsel %vm415, %v461, 0.0
      %v590 = vsel %vm415, %v462, 0.0
      %v591 = vsel %vm415, %v463, 0.0
      %v592 = vsel %vm415, %v464, 0.0
      %v593 = vsel %vm415, %v465, 0.0
      %v594 = vsel %vm415, %v466, 0.0
      %v595 = vsel %vm415, %v467, 0.0
      %v596 = vsel %vm415, %v468, 0.0
      %v597 = vsel %vm415, %v469, 0.0
      %v598 = vsel %vm415, %v470, 0.0
      %v599 = vsel %vm415, %v471, 0.0
      %v600 = vsel %vm415, %v472, 0.0
      %v601 = vsel %vm415, %v473, 0.0
      %v602 = vsel %vm415, %v474, 0.0
      %v603 = vsel %vm415, %v475, 0.0
      %v604 = vsel %vm415, %v476, 0.0
      %v605 = vsel %vm415, %v477, 0.0
      %v606 = vsel %vm415, %v478, 0.0
      %v607 = vsel %vm415, %v479, 0.0
      %v608 = vsel %vm415, %v480, 0.0
      %v609 = vsel %vm415, %v481, 0.0
      %v610 = vsel %vm415, %v482, 0.0
      %v611 = vsel %vm415, %v483, 0.0
      %v612 = vsel %vm415, %v484, 0.0
      %v613 = vsel %vm415, %v485, 0.0
      %v614 = vsel %vm415, %v486, 0.0
      %v615 = vsel %vm415, %v487, 0.0
      %v616 = vsel %vm415, %v488, 0.0
      %v617 = vsel %vm415, %v489, 0.0
      %v618 = vsel %vm415, %v490, 0.0
      %v619 = vsel %vm415, %v491, 0.0
      %v620 = vsel %vm415, %v492, 0.0
      %v621 = vsel %vm415, %v493, 0.0
      %v622 = vsel %vm415, %v494, 0.0
      %v623 = vsel %vm415, %v495, 0.0
      %v624 = vsel %vm415, %v496, 0.0
      %v625 = vsel %vm415, %v497, 0.0
      %v626 = vsel %vm415, %v498, 0.0
      %v627 = vsel %vm415, %v499, 0.0
      %v628 = vsel %vm415, %v500, 0.0
      %v629 = vsel %vm415, %v501, 0.0
      %v630 = vsel %vm415, %v502, 0.0
      %v631 = vsel %vm415, %v503, 0.0
      %v632 = vsel %vm415, %v504, 0.0
      %v633 = vsel %vm415, %v505, 0.0
      %v634 = vsel %vm415, %v506, 0.0
      %v635 = vsel %vm415, %v507, 0.0
      %v636 = vsel %vm415, %v508, 0.0
      %v637 = vsel %vm415, %v509, 0.0
      %v638 = vsel %vm415, %v510, 0.0
      %v639 = vsel %vm415, %v511, 0.0
      %v640 = vsel %vm415, %v512, 0.0
      %v641 = vsel %vm415, %v513, 0.0
      %v642 = vsel %vm415, %v514, 0.0
      %v643 = vsel %vm415, %v515, 0.0
      %v644 = vsel %vm415, %v516, 0.0
      %v645 = vsel %vm415, %v517, 0.0
      %v646 = vsel %vm415, %v518, 0.0
      %v647 = vsel %vm415, %v519, 0.0
      %v648 = vsel %vm415, %v520, 0.0
      %v649 = vsel %vm415, %v521, 0.0
      %v650 = vsel %vm415, %v522, 0.0
      %v651 = vsel %vm415, %v523, 0.0
      %v652 = vsel %vm415, %v524, 0.0
      %v653 = vsel %vm415, %v525, 0.0
      %v654 = vsel %vm415, %v526, 0.0
      %v655 = vsel %vm415, %v527, 0.0
      %v656 = vsel %vm415, %v528, 0.0
      %v657 = vsel %vm415, %v529, 0.0
      %v658 = vsel %vm415, %v530, 0.0
      %v659 = vsel %vm415, %v531, 0.0
      %v660 = vsel %vm415, %v532, 0.0
      %v661 = vsel %vm415, %v533, 0.0
      %v662 = vsel %vm415, %v534, 0.0
      %v663 = vsel %vm415, %v535, 0.0
      %v664 = vsel %vm415, %v536, 0.0
      %v665 = vsel %vm415, %v537, 0.0
      %v666 = vsel %vm415, %v538, 0.0
      %v667 = vsel %vm415, %v539, 0.0
      %v668 = vsel %vm415, %v540, 0.0
      %v669 = vsel %vm415, %v541, 0.0
      %v670 = vsel %vm415, %v542, 0.0
      %v671 = vsel %vm415, %v543, 0.0
      %vm672 = vcmask 179200
      %v673 = vsel %vm672, %v544, 0.0
      %674 = vadd.xlane.f32.xlu0 %v673
      %v675 = vpop.xlane.xlu0 %674
      %v676 = vsel %vm672, %v545, 0.0
      %677 = vadd.xlane.f32.xlu0 %v676
      %v678 = vpop.xlane.xlu0 %677
      %v679 = vsel %vm672, %v546, 0.0
      %680 = vadd.xlane.f32.xlu0 %v679
      %v681 = vpop.xlane.xlu0 %680
      %v682 = vsel %vm672, %v547, 0.0
      %683 = vadd.xlane.f32.xlu0 %v682
      %v684 = vpop.xlane.xlu0 %683
      %v685 = vsel %vm672, %v548, 0.0
      %686 = vadd.xlane.f32.xlu0 %v685
      %v687 = vpop.xlane.xlu0 %686
      %v688 = vsel %vm672, %v549, 0.0
      %689 = vadd.xlane.f32.xlu0 %v688
      %v690 = vpop.xlane.xlu0 %689
      %v691 = vsel %vm672, %v550, 0.0
      %692 = vadd.xlane.f32.xlu0 %v691
      %v693 = vpop.xlane.xlu0 %692
      %v694 = vsel %vm672, %v551, 0.0
      %695 = vadd.xlane.f32.xlu0 %v694
      %v696 = vpop.xlane.xlu0 %695
      %v697 = vsel %vm672, %v552, 0.0
      %698 = vadd.xlane.f32.xlu0 %v697
      %v699 = vpop.xlane.xlu0 %698
      %v700 = vsel %vm672, %v553, 0.0
      %701 = vadd.xlane.f32.xlu0 %v700
      %v702 = vpop.xlane.xlu0 %701
      %v703 = vsel %vm672, %v554, 0.0
      %704 = vadd.xlane.f32.xlu0 %v703
      %v705 = vpop.xlane.xlu0 %704
      %v706 = vsel %vm672, %v555, 0.0
      %707 = vadd.xlane.f32.xlu0 %v706
      %v708 = vpop.xlane.xlu0 %707
      %v709 = vsel %vm672, %v556, 0.0
      %710 = vadd.xlane.f32.xlu0 %v709
      %v711 = vpop.xlane.xlu0 %710
      %v712 = vsel %vm672, %v557, 0.0
      %713 = vadd.xlane.f32.xlu0 %v712
      %v714 = vpop.xlane.xlu0 %713
      %v715 = vsel %vm672, %v558, 0.0
      %716 = vadd.xlane.f32.xlu0 %v715
      %v717 = vpop.xlane.xlu0 %716
      %v718 = vsel %vm672, %v559, 0.0
      %719 = vadd.xlane.f32.xlu0 %v718
      %v720 = vpop.xlane.xlu0 %719
      %v721 = vsel %vm672, %v560, 0.0
      %722 = vadd.xlane.f32.xlu0 %v721
      %v723 = vpop.xlane.xlu0 %722
      %v724 = vsel %vm672, %v561, 0.0
      %725 = vadd.xlane.f32.xlu0 %v724
      %v726 = vpop.xlane.xlu0 %725
      %v727 = vsel %vm672, %v562, 0.0
      %728 = vadd.xlane.f32.xlu0 %v727
      %v729 = vpop.xlane.xlu0 %728
      %v730 = vsel %vm672, %v563, 0.0
      %731 = vadd.xlane.f32.xlu0 %v730
      %v732 = vpop.xlane.xlu0 %731
      %v733 = vsel %vm672, %v564, 0.0
      %734 = vadd.xlane.f32.xlu0 %v733
      %v735 = vpop.xlane.xlu0 %734
      %v736 = vsel %vm672, %v565, 0.0
      %737 = vadd.xlane.f32.xlu0 %v736
      %v738 = vpop.xlane.xlu0 %737
      %v739 = vsel %vm672, %v566, 0.0
      %740 = vadd.xlane.f32.xlu0 %v739
      %v741 = vpop.xlane.xlu0 %740
      %v742 = vsel %vm672, %v567, 0.0
      %743 = vadd.xlane.f32.xlu0 %v742
      %v744 = vpop.xlane.xlu0 %743
      %v745 = vsel %vm672, %v568, 0.0
      %746 = vadd.xlane.f32.xlu0 %v745
      %v747 = vpop.xlane.xlu0 %746
      %v748 = vsel %vm672, %v569, 0.0
      %749 = vadd.xlane.f32.xlu0 %v748
      %v750 = vpop.xlane.xlu0 %749
      %v751 = vsel %vm672, %v570, 0.0
      %752 = vadd.xlane.f32.xlu0 %v751
      %v753 = vpop.xlane.xlu0 %752
      %v754 = vsel %vm672, %v571, 0.0
      %755 = vadd.xlane.f32.xlu0 %v754
      %v756 = vpop.xlane.xlu0 %755
      %v757 = vsel %vm672, %v572, 0.0
      %758 = vadd.xlane.f32.xlu0 %v757
      %v759 = vpop.xlane.xlu0 %758
      %v760 = vsel %vm672, %v573, 0.0
      %761 = vadd.xlane.f32.xlu0 %v760
      %v762 = vpop.xlane.xlu0 %761
      %v763 = vsel %vm672, %v574, 0.0
      %764 = vadd.xlane.f32.xlu0 %v763
      %v765 = vpop.xlane.xlu0 %764
      %v766 = vsel %vm672, %v575, 0.0
      %767 = vadd.xlane.f32.xlu0 %v766
      %v768 = vpop.xlane.xlu0 %767
      %v769 = vsel %vm672, %v576, 0.0
      %770 = vadd.xlane.f32.xlu0 %v769
      %v771 = vpop.xlane.xlu0 %770
      %v772 = vsel %vm672, %v577, 0.0
      %773 = vadd.xlane.f32.xlu0 %v772
      %v774 = vpop.xlane.xlu0 %773
      %v775 = vsel %vm672, %v578, 0.0
      %776 = vadd.xlane.f32.xlu0 %v775
      %v777 = vpop.xlane.xlu0 %776
      %v778 = vsel %vm672, %v579, 0.0
      %779 = vadd.xlane.f32.xlu0 %v778
      %v780 = vpop.xlane.xlu0 %779
      %v781 = vsel %vm672, %v580, 0.0
      %782 = vadd.xlane.f32.xlu0 %v781
      %v783 = vpop.xlane.xlu0 %782
      %v784 = vsel %vm672, %v581, 0.0
      %785 = vadd.xlane.f32.xlu0 %v784
      %v786 = vpop.xlane.xlu0 %785
      %v787 = vsel %vm672, %v582, 0.0
      %788 = vadd.xlane.f32.xlu0 %v787
      %v789 = vpop.xlane.xlu0 %788
      %v790 = vsel %vm672, %v583, 0.0
      %791 = vadd.xlane.f32.xlu0 %v790
      %v792 = vpop.xlane.xlu0 %791
      %v793 = vsel %vm672, %v584, 0.0
      %794 = vadd.xlane.f32.xlu0 %v793
      %v795 = vpop.xlane.xlu0 %794
      %v796 = vsel %vm672, %v585, 0.0
      %797 = vadd.xlane.f32.xlu0 %v796
      %v798 = vpop.xlane.xlu0 %797
      %v799 = vsel %vm672, %v586, 0.0
      %800 = vadd.xlane.f32.xlu0 %v799
      %v801 = vpop.xlane.xlu0 %800
      %v802 = vsel %vm672, %v587, 0.0
      %803 = vadd.xlane.f32.xlu0 %v802
      %v804 = vpop.xlane.xlu0 %803
      %v805 = vsel %vm672, %v588, 0.0
      %806 = vadd.xlane.f32.xlu0 %v805
      %v807 = vpop.xlane.xlu0 %806
      %v808 = vsel %vm672, %v589, 0.0
      %809 = vadd.xlane.f32.xlu0 %v808
      %v810 = vpop.xlane.xlu0 %809
      %v811 = vsel %vm672, %v590, 0.0
      %812 = vadd.xlane.f32.xlu0 %v811
      %v813 = vpop.xlane.xlu0 %812
      %v814 = vsel %vm672, %v591, 0.0
      %815 = vadd.xlane.f32.xlu0 %v814
      %v816 = vpop.xlane.xlu0 %815
      %v817 = vsel %vm672, %v592, 0.0
      %818 = vadd.xlane.f32.xlu0 %v817
      %v819 = vpop.xlane.xlu0 %818
      %v820 = vsel %vm672, %v593, 0.0
      %821 = vadd.xlane.f32.xlu0 %v820
      %v822 = vpop.xlane.xlu0 %821
      %v823 = vsel %vm672, %v594, 0.0
      %824 = vadd.xlane.f32.xlu0 %v823
      %v825 = vpop.xlane.xlu0 %824
      %v826 = vsel %vm672, %v595, 0.0
      %827 = vadd.xlane.f32.xlu0 %v826
      %v828 = vpop.xlane.xlu0 %827
      %v829 = vsel %vm672, %v596, 0.0
      %830 = vadd.xlane.f32.xlu0 %v829
      %v831 = vpop.xlane.xlu0 %830
      %v832 = vsel %vm672, %v597, 0.0
      %833 = vadd.xlane.f32.xlu0 %v832
      %v834 = vpop.xlane.xlu0 %833
      %v835 = vsel %vm672, %v598, 0.0
      %836 = vadd.xlane.f32.xlu0 %v835
      %v837 = vpop.xlane.xlu0 %836
      %v838 = vsel %vm672, %v599, 0.0
      %839 = vadd.xlane.f32.xlu0 %v838
      %v840 = vpop.xlane.xlu0 %839
      %v841 = vsel %vm672, %v600, 0.0
      %842 = vadd.xlane.f32.xlu0 %v841
      %v843 = vpop.xlane.xlu0 %842
      %v844 = vsel %vm672, %v601, 0.0
      %845 = vadd.xlane.f32.xlu0 %v844
      %v846 = vpop.xlane.xlu0 %845
      %v847 = vsel %vm672, %v602, 0.0
      %848 = vadd.xlane.f32.xlu0 %v847
      %v849 = vpop.xlane.xlu0 %848
      %v850 = vsel %vm672, %v603, 0.0
      %851 = vadd.xlane.f32.xlu0 %v850
      %v852 = vpop.xlane.xlu0 %851
      %v853 = vsel %vm672, %v604, 0.0
      %854 = vadd.xlane.f32.xlu0 %v853
      %v855 = vpop.xlane.xlu0 %854
      %v856 = vsel %vm672, %v605, 0.0
      %857 = vadd.xlane.f32.xlu0 %v856
      %v858 = vpop.xlane.xlu0 %857
      %v859 = vsel %vm672, %v606, 0.0
      %860 = vadd.xlane.f32.xlu0 %v859
      %v861 = vpop.xlane.xlu0 %860
      %v862 = vsel %vm672, %v607, 0.0
      %863 = vadd.xlane.f32.xlu0 %v862
      %v864 = vpop.xlane.xlu0 %863
      %v865 = vsel %vm672, %v608, 0.0
      %866 = vadd.xlane.f32.xlu0 %v865
      %v867 = vpop.xlane.xlu0 %866
      %v868 = vsel %vm672, %v609, 0.0
      %869 = vadd.xlane.f32.xlu0 %v868
      %v870 = vpop.xlane.xlu0 %869
      %v871 = vsel %vm672, %v610, 0.0
      %872 = vadd.xlane.f32.xlu0 %v871
      %v873 = vpop.xlane.xlu0 %872
      %v874 = vsel %vm672, %v611, 0.0
      %875 = vadd.xlane.f32.xlu0 %v874
      %v876 = vpop.xlane.xlu0 %875
      %v877 = vsel %vm672, %v612, 0.0
      %878 = vadd.xlane.f32.xlu0 %v877
      %v879 = vpop.xlane.xlu0 %878
      %v880 = vsel %vm672, %v613, 0.0
      %881 = vadd.xlane.f32.xlu0 %v880
      %v882 = vpop.xlane.xlu0 %881
      %v883 = vsel %vm672, %v614, 0.0
      %884 = vadd.xlane.f32.xlu0 %v883
      %v885 = vpop.xlane.xlu0 %884
      %v886 = vsel %vm672, %v615, 0.0
      %887 = vadd.xlane.f32.xlu0 %v886
      %v888 = vpop.xlane.xlu0 %887
      %v889 = vsel %vm672, %v616, 0.0
      %890 = vadd.xlane.f32.xlu0 %v889
      %v891 = vpop.xlane.xlu0 %890
      %v892 = vsel %vm672, %v617, 0.0
      %893 = vadd.xlane.f32.xlu0 %v892
      %v894 = vpop.xlane.xlu0 %893
      %v895 = vsel %vm672, %v618, 0.0
      %896 = vadd.xlane.f32.xlu0 %v895
      %v897 = vpop.xlane.xlu0 %896
      %v898 = vsel %vm672, %v619, 0.0
      %899 = vadd.xlane.f32.xlu0 %v898
      %v900 = vpop.xlane.xlu0 %899
      %v901 = vsel %vm672, %v620, 0.0
      %902 = vadd.xlane.f32.xlu0 %v901
      %v903 = vpop.xlane.xlu0 %902
      %v904 = vsel %vm672, %v621, 0.0
      %905 = vadd.xlane.f32.xlu0 %v904
      %v906 = vpop.xlane.xlu0 %905
      %v907 = vsel %vm672, %v622, 0.0
      %908 = vadd.xlane.f32.xlu0 %v907
      %v909 = vpop.xlane.xlu0 %908
      %v910 = vsel %vm672, %v623, 0.0
      %911 = vadd.xlane.f32.xlu0 %v910
      %v912 = vpop.xlane.xlu0 %911
      %v913 = vsel %vm672, %v624, 0.0
      %914 = vadd.xlane.f32.xlu0 %v913
      %v915 = vpop.xlane.xlu0 %914
      %v916 = vsel %vm672, %v625, 0.0
      %917 = vadd.xlane.f32.xlu0 %v916
      %v918 = vpop.xlane.xlu0 %917
      %v919 = vsel %vm672, %v626, 0.0
      %920 = vadd.xlane.f32.xlu0 %v919
      %v921 = vpop.xlane.xlu0 %920
      %v922 = vsel %vm672, %v627, 0.0
      %923 = vadd.xlane.f32.xlu0 %v922
      %v924 = vpop.xlane.xlu0 %923
      %v925 = vsel %vm672, %v628, 0.0
      %926 = vadd.xlane.f32.xlu0 %v925
      %v927 = vpop.xlane.xlu0 %926
      %v928 = vsel %vm672, %v629, 0.0
      %929 = vadd.xlane.f32.xlu0 %v928
      %v930 = vpop.xlane.xlu0 %929
      %v931 = vsel %vm672, %v630, 0.0
      %932 = vadd.xlane.f32.xlu0 %v931
      %v933 = vpop.xlane.xlu0 %932
      %v934 = vsel %vm672, %v631, 0.0
      %935 = vadd.xlane.f32.xlu0 %v934
      %v936 = vpop.xlane.xlu0 %935
      %v937 = vsel %vm672, %v632, 0.0
      %938 = vadd.xlane.f32.xlu0 %v937
      %v939 = vpop.xlane.xlu0 %938
      %v940 = vsel %vm672, %v633, 0.0
      %941 = vadd.xlane.f32.xlu0 %v940
      %v942 = vpop.xlane.xlu0 %941
      %v943 = vsel %vm672, %v634, 0.0
      %944 = vadd.xlane.f32.xlu0 %v943
      %v945 = vpop.xlane.xlu0 %944
      %v946 = vsel %vm672, %v635, 0.0
      %947 = vadd.xlane.f32.xlu0 %v946
      %v948 = vpop.xlane.xlu0 %947
      %v949 = vsel %vm672, %v636, 0.0
      %950 = vadd.xlane.f32.xlu0 %v949
      %v951 = vpop.xlane.xlu0 %950
      %v952 = vsel %vm672, %v637, 0.0
      %953 = vadd.xlane.f32.xlu0 %v952
      %v954 = vpop.xlane.xlu0 %953
      %v955 = vsel %vm672, %v638, 0.0
      %956 = vadd.xlane.f32.xlu0 %v955
      %v957 = vpop.xlane.xlu0 %956
      %v958 = vsel %vm672, %v639, 0.0
      %959 = vadd.xlane.f32.xlu0 %v958
      %v960 = vpop.xlane.xlu0 %959
      %v961 = vsel %vm672, %v640, 0.0
      %962 = vadd.xlane.f32.xlu0 %v961
      %v963 = vpop.xlane.xlu0 %962
      %v964 = vsel %vm672, %v641, 0.0
      %965 = vadd.xlane.f32.xlu0 %v964
      %v966 = vpop.xlane.xlu0 %965
      %v967 = vsel %vm672, %v642, 0.0
      %968 = vadd.xlane.f32.xlu0 %v967
      %v969 = vpop.xlane.xlu0 %968
      %v970 = vsel %vm672, %v643, 0.0
      %971 = vadd.xlane.f32.xlu0 %v970
      %v972 = vpop.xlane.xlu0 %971
      %v973 = vsel %vm672, %v644, 0.0
      %974 = vadd.xlane.f32.xlu0 %v973
      %v975 = vpop.xlane.xlu0 %974
      %v976 = vsel %vm672, %v645, 0.0
      %977 = vadd.xlane.f32.xlu0 %v976
      %v978 = vpop.xlane.xlu0 %977
      %v979 = vsel %vm672, %v646, 0.0
      %980 = vadd.xlane.f32.xlu0 %v979
      %v981 = vpop.xlane.xlu0 %980
      %v982 = vsel %vm672, %v647, 0.0
      %983 = vadd.xlane.f32.xlu0 %v982
      %v984 = vpop.xlane.xlu0 %983
      %v985 = vsel %vm672, %v648, 0.0
      %986 = vadd.xlane.f32.xlu0 %v985
      %v987 = vpop.xlane.xlu0 %986
      %v988 = vsel %vm672, %v649, 0.0
      %989 = vadd.xlane.f32.xlu0 %v988
      %v990 = vpop.xlane.xlu0 %989
      %v991 = vsel %vm672, %v650, 0.0
      %992 = vadd.xlane.f32.xlu0 %v991
      %v993 = vpop.xlane.xlu0 %992
      %v994 = vsel %vm672, %v651, 0.0
      %995 = vadd.xlane.f32.xlu0 %v994
      %v996 = vpop.xlane.xlu0 %995
      %v997 = vsel %vm672, %v652, 0.0
      %998 = vadd.xlane.f32.xlu0 %v997
      %v999 = vpop.xlane.xlu0 %998
      %v1000 = vsel %vm672, %v653, 0.0
      %1001 = vadd.xlane.f32.xlu0 %v1000
      %v1002 = vpop.xlane.xlu0 %1001
      %v1003 = vsel %vm672, %v654, 0.0
      %1004 = vadd.xlane.f32.xlu0 %v1003
      %v1005 = vpop.xlane.xlu0 %1004
      %v1006 = vsel %vm672, %v655, 0.0
      %1007 = vadd.xlane.f32.xlu0 %v1006
      %v1008 = vpop.xlane.xlu0 %1007
      %v1009 = vsel %vm672, %v656, 0.0
      %1010 = vadd.xlane.f32.xlu0 %v1009
      %v1011 = vpop.xlane.xlu0 %1010
      %v1012 = vsel %vm672, %v657, 0.0
      %1013 = vadd.xlane.f32.xlu0 %v1012
      %v1014 = vpop.xlane.xlu0 %1013
      %v1015 = vsel %vm672, %v658, 0.0
      %1016 = vadd.xlane.f32.xlu0 %v1015
      %v1017 = vpop.xlane.xlu0 %1016
      %v1018 = vsel %vm672, %v659, 0.0
      %1019 = vadd.xlane.f32.xlu0 %v1018
      %v1020 = vpop.xlane.xlu0 %1019
      %v1021 = vsel %vm672, %v660, 0.0
      %1022 = vadd.xlane.f32.xlu0 %v1021
      %v1023 = vpop.xlane.xlu0 %1022
      %v1024 = vsel %vm672, %v661, 0.0
      %1025 = vadd.xlane.f32.xlu0 %v1024
      %v1026 = vpop.xlane.xlu0 %1025
      %v1027 = vsel %vm672, %v662, 0.0
      %1028 = vadd.xlane.f32.xlu0 %v1027
      %v1029 = vpop.xlane.xlu0 %1028
      %v1030 = vsel %vm672, %v663, 0.0
      %1031 = vadd.xlane.f32.xlu0 %v1030
      %v1032 = vpop.xlane.xlu0 %1031
      %v1033 = vsel %vm672, %v664, 0.0
      %1034 = vadd.xlane.f32.xlu0 %v1033
      %v1035 = vpop.xlane.xlu0 %1034
      %v1036 = vsel %vm672, %v665, 0.0
      %1037 = vadd.xlane.f32.xlu0 %v1036
      %v1038 = vpop.xlane.xlu0 %1037
      %v1039 = vsel %vm672, %v666, 0.0
      %1040 = vadd.xlane.f32.xlu0 %v1039
      %v1041 = vpop.xlane.xlu0 %1040
      %v1042 = vsel %vm672, %v667, 0.0
      %1043 = vadd.xlane.f32.xlu0 %v1042
      %v1044 = vpop.xlane.xlu0 %1043
      %v1045 = vsel %vm672, %v668, 0.0
      %1046 = vadd.xlane.f32.xlu0 %v1045
      %v1047 = vpop.xlane.xlu0 %1046
      %v1048 = vsel %vm672, %v669, 0.0
      %1049 = vadd.xlane.f32.xlu0 %v1048
      %v1050 = vpop.xlane.xlu0 %1049
      %v1051 = vsel %vm672, %v670, 0.0
      %1052 = vadd.xlane.f32.xlu0 %v1051
      %v1053 = vpop.xlane.xlu0 %1052
      %v1054 = vsel %vm672, %v671, 0.0
      %1055 = vadd.xlane.f32.xlu0 %v1054
      %v1056 = vpop.xlane.xlu0 %1055
      %v1057 = vmax.f32 %v675, 1e-24
      %v1058 = vmax.f32 %v678, 1e-24
      %v1059 = vmax.f32 %v681, 1e-24
      %v1060 = vmax.f32 %v684, 1e-24
      %v1061 = vmax.f32 %v687, 1e-24
      %v1062 = vmax.f32 %v690, 1e-24
      %v1063 = vmax.f32 %v693, 1e-24
      %v1064 = vmax.f32 %v696, 1e-24
      %v1065 = vmax.f32 %v699, 1e-24
      %v1066 = vmax.f32 %v702, 1e-24
      %v1067 = vmax.f32 %v705, 1e-24
      %v1068 = vmax.f32 %v708, 1e-24
      %v1069 = vmax.f32 %v711, 1e-24
      %v1070 = vmax.f32 %v714, 1e-24
      %v1071 = vmax.f32 %v717, 1e-24
      %v1072 = vmax.f32 %v720, 1e-24
      %v1073 = vmax.f32 %v723, 1e-24
      %v1074 = vmax.f32 %v726, 1e-24
      %v1075 = vmax.f32 %v729, 1e-24
      %v1076 = vmax.f32 %v732, 1e-24
      %v1077 = vmax.f32 %v735, 1e-24
      %v1078 = vmax.f32 %v738, 1e-24
      %v1079 = vmax.f32 %v741, 1e-24
      %v1080 = vmax.f32 %v744, 1e-24
      %v1081 = vmax.f32 %v747, 1e-24
      %v1082 = vmax.f32 %v750, 1e-24
      %v1083 = vmax.f32 %v753, 1e-24
      %v1084 = vmax.f32 %v756, 1e-24
      %v1085 = vmax.f32 %v759, 1e-24
      %v1086 = vmax.f32 %v762, 1e-24
      %v1087 = vmax.f32 %v765, 1e-24
      %v1088 = vmax.f32 %v768, 1e-24
      %v1089 = vmax.f32 %v771, 1e-24
      %v1090 = vmax.f32 %v774, 1e-24
      %v1091 = vmax.f32 %v777, 1e-24
      %v1092 = vmax.f32 %v780, 1e-24
      %v1093 = vmax.f32 %v783, 1e-24
      %v1094 = vmax.f32 %v786, 1e-24
      %v1095 = vmax.f32 %v789, 1e-24
      %v1096 = vmax.f32 %v792, 1e-24
      %v1097 = vmax.f32 %v795, 1e-24
      %v1098 = vmax.f32 %v798, 1e-24
      %v1099 = vmax.f32 %v801, 1e-24
      %v1100 = vmax.f32 %v804, 1e-24
      %v1101 = vmax.f32 %v807, 1e-24
      %v1102 = vmax.f32 %v810, 1e-24
      %v1103 = vmax.f32 %v813, 1e-24
      %v1104 = vmax.f32 %v816, 1e-24
      %v1105 = vmax.f32 %v819, 1e-24
      %v1106 = vmax.f32 %v822, 1e-24
      %v1107 = vmax.f32 %v825, 1e-24
      %v1108 = vmax.f32 %v828, 1e-24
      %v1109 = vmax.f32 %v831, 1e-24
      %v1110 = vmax.f32 %v834, 1e-24
      %v1111 = vmax.f32 %v837, 1e-24
      %v1112 = vmax.f32 %v840, 1e-24
      %v1113 = vmax.f32 %v843, 1e-24
      %v1114 = vmax.f32 %v846, 1e-24
      %v1115 = vmax.f32 %v849, 1e-24
      %v1116 = vmax.f32 %v852, 1e-24
      %v1117 = vmax.f32 %v855, 1e-24
      %v1118 = vmax.f32 %v858, 1e-24
      %v1119 = vmax.f32 %v861, 1e-24
      %v1120 = vmax.f32 %v864, 1e-24
      %v1121 = vmax.f32 %v867, 1e-24
      %v1122 = vmax.f32 %v870, 1e-24
      %v1123 = vmax.f32 %v873, 1e-24
      %v1124 = vmax.f32 %v876, 1e-24
      %v1125 = vmax.f32 %v879, 1e-24
      %v1126 = vmax.f32 %v882, 1e-24
      %v1127 = vmax.f32 %v885, 1e-24
      %v1128 = vmax.f32 %v888, 1e-24
      %v1129 = vmax.f32 %v891, 1e-24
      %v1130 = vmax.f32 %v894, 1e-24
      %v1131 = vmax.f32 %v897, 1e-24
      %v1132 = vmax.f32 %v900, 1e-24
      %v1133 = vmax.f32 %v903, 1e-24
      %v1134 = vmax.f32 %v906, 1e-24
      %v1135 = vmax.f32 %v909, 1e-24
      %v1136 = vmax.f32 %v912, 1e-24
      %v1137 = vmax.f32 %v915, 1e-24
      %v1138 = vmax.f32 %v918, 1e-24
      %v1139 = vmax.f32 %v921, 1e-24
      %v1140 = vmax.f32 %v924, 1e-24
      %v1141 = vmax.f32 %v927, 1e-24
      %v1142 = vmax.f32 %v930, 1e-24
      %v1143 = vmax.f32 %v933, 1e-24
      %v1144 = vmax.f32 %v936, 1e-24
      %v1145 = vmax.f32 %v939, 1e-24
      %v1146 = vmax.f32 %v942, 1e-24
      %v1147 = vmax.f32 %v945, 1e-24
      %v1148 = vmax.f32 %v948, 1e-24
      %v1149 = vmax.f32 %v951, 1e-24
      %v1150 = vmax.f32 %v954, 1e-24
      %v1151 = vmax.f32 %v957, 1e-24
      %v1152 = vmax.f32 %v960, 1e-24
      %v1153 = vmax.f32 %v963, 1e-24
      %v1154 = vmax.f32 %v966, 1e-24
      %v1155 = vmax.f32 %v969, 1e-24
      %v1156 = vmax.f32 %v972, 1e-24
      %v1157 = vmax.f32 %v975, 1e-24
      %v1158 = vmax.f32 %v978, 1e-24
      %v1159 = vmax.f32 %v981, 1e-24
      %v1160 = vmax.f32 %v984, 1e-24
      %v1161 = vmax.f32 %v987, 1e-24
      %v1162 = vmax.f32 %v990, 1e-24
      %v1163 = vmax.f32 %v993, 1e-24
      %v1164 = vmax.f32 %v996, 1e-24
      %v1165 = vmax.f32 %v999, 1e-24
      %v1166 = vmax.f32 %v1002, 1e-24
      %v1167 = vmax.f32 %v1005, 1e-24
      %v1168 = vmax.f32 %v1008, 1e-24
      %v1169 = vmax.f32 %v1011, 1e-24
      %v1170 = vmax.f32 %v1014, 1e-24
      %v1171 = vmax.f32 %v1017, 1e-24
      %v1172 = vmax.f32 %v1020, 1e-24
      %v1173 = vmax.f32 %v1023, 1e-24
      %v1174 = vmax.f32 %v1026, 1e-24
      %v1175 = vmax.f32 %v1029, 1e-24
      %v1176 = vmax.f32 %v1032, 1e-24
      %v1177 = vmax.f32 %v1035, 1e-24
      %v1178 = vmax.f32 %v1038, 1e-24
      %v1179 = vmax.f32 %v1041, 1e-24
      %v1180 = vmax.f32 %v1044, 1e-24
      %v1181 = vmax.f32 %v1047, 1e-24
      %v1182 = vmax.f32 %v1050, 1e-24
      %v1183 = vmax.f32 %v1053, 1e-24
      %v1184 = vmax.f32 %v1056, 1e-24
      %v1185 = vrsqrt.pop %v1057
      %v1186 = vmul.f32 %v1185, %v1057
      %v1187 = vmul.f32 %v1186, %v1185
      %v1188 = vmul.f32 0.5, %v1187
      %v1189 = vsub.f32 1.5, %v1188
      %v1190 = vmul.f32 %v1185, %v1189
      %vm1191 = vweird.f32 %v1057
      %vm1192 = vweird.f32 %v1185
      %vm1193 = vmor %vm1191, %vm1192
      %v1194 = vsel %vm1193, %v1185, %v1190
      %v1195 = vrsqrt.pop %v1058
      %v1196 = vmul.f32 %v1195, %v1058
      %v1197 = vmul.f32 %v1196, %v1195
      %v1198 = vmul.f32 0.5, %v1197
      %v1199 = vsub.f32 1.5, %v1198
      %v1200 = vmul.f32 %v1195, %v1199
      %vm1201 = vweird.f32 %v1058
      %vm1202 = vweird.f32 %v1195
      %vm1203 = vmor %vm1201, %vm1202
      %v1204 = vsel %vm1203, %v1195, %v1200
      %v1205 = vrsqrt.pop %v1059
      %v1206 = vmul.f32 %v1205, %v1059
      %v1207 = vmul.f32 %v1206, %v1205
      %v1208 = vmul.f32 0.5, %v1207
      %v1209 = vsub.f32 1.5, %v1208
      %v1210 = vmul.f32 %v1205, %v1209
      %vm1211 = vweird.f32 %v1059
      %vm1212 = vweird.f32 %v1205
      %vm1213 = vmor %vm1211, %vm1212
      %v1214 = vsel %vm1213, %v1205, %v1210
      %v1215 = vrsqrt.pop %v1060
      %v1216 = vmul.f32 %v1215, %v1060
      %v1217 = vmul.f32 %v1216, %v1215
      %v1218 = vmul.f32 0.5, %v1217
      %v1219 = vsub.f32 1.5, %v1218
      %v1220 = vmul.f32 %v1215, %v1219
      %vm1221 = vweird.f32 %v1060
      %vm1222 = vweird.f32 %v1215
      %vm1223 = vmor %vm1221, %vm1222
      %v1224 = vsel %vm1223, %v1215, %v1220
      %v1225 = vrsqrt.pop %v1061
      %v1226 = vmul.f32 %v1225, %v1061
      %v1227 = vmul.f32 %v1226, %v1225
      %v1228 = vmul.f32 0.5, %v1227
      %v1229 = vsub.f32 1.5, %v1228
      %v1230 = vmul.f32 %v1225, %v1229
      %vm1231 = vweird.f32 %v1061
      %vm1232 = vweird.f32 %v1225
      %vm1233 = vmor %vm1231, %vm1232
      %v1234 = vsel %vm1233, %v1225, %v1230
      %v1235 = vrsqrt.pop %v1062
      %v1236 = vmul.f32 %v1235, %v1062
      %v1237 = vmul.f32 %v1236, %v1235
      %v1238 = vmul.f32 0.5, %v1237
      %v1239 = vsub.f32 1.5, %v1238
      %v1240 = vmul.f32 %v1235, %v1239
      %vm1241 = vweird.f32 %v1062
      %vm1242 = vweird.f32 %v1235
      %vm1243 = vmor %vm1241, %vm1242
      %v1244 = vsel %vm1243, %v1235, %v1240
      %v1245 = vrsqrt.pop %v1063
      %v1246 = vmul.f32 %v1245, %v1063
      %v1247 = vmul.f32 %v1246, %v1245
      %v1248 = vmul.f32 0.5, %v1247
      %v1249 = vsub.f32 1.5, %v1248
      %v1250 = vmul.f32 %v1245, %v1249
      %vm1251 = vweird.f32 %v1063
      %vm1252 = vweird.f32 %v1245
      %vm1253 = vmor %vm1251, %vm1252
      %v1254 = vsel %vm1253, %v1245, %v1250
      %v1255 = vrsqrt.pop %v1064
      %v1256 = vmul.f32 %v1255, %v1064
      %v1257 = vmul.f32 %v1256, %v1255
      %v1258 = vmul.f32 0.5, %v1257
      %v1259 = vsub.f32 1.5, %v1258
      %v1260 = vmul.f32 %v1255, %v1259
      %vm1261 = vweird.f32 %v1064
      %vm1262 = vweird.f32 %v1255
      %vm1263 = vmor %vm1261, %vm1262
      %v1264 = vsel %vm1263, %v1255, %v1260
      %v1265 = vrsqrt.pop %v1065
      %v1266 = vmul.f32 %v1265, %v1065
      %v1267 = vmul.f32 %v1266, %v1265
      %v1268 = vmul.f32 0.5, %v1267
      %v1269 = vsub.f32 1.5, %v1268
      %v1270 = vmul.f32 %v1265, %v1269
      %vm1271 = vweird.f32 %v1065
      %vm1272 = vweird.f32 %v1265
      %vm1273 = vmor %vm1271, %vm1272
      %v1274 = vsel %vm1273, %v1265, %v1270
      %v1275 = vrsqrt.pop %v1066
      %v1276 = vmul.f32 %v1275, %v1066
      %v1277 = vmul.f32 %v1276, %v1275
      %v1278 = vmul.f32 0.5, %v1277
      %v1279 = vsub.f32 1.5, %v1278
      %v1280 = vmul.f32 %v1275, %v1279
      %vm1281 = vweird.f32 %v1066
      %vm1282 = vweird.f32 %v1275
      %vm1283 = vmor %vm1281, %vm1282
      %v1284 = vsel %vm1283, %v1275, %v1280
      %v1285 = vrsqrt.pop %v1067
      %v1286 = vmul.f32 %v1285, %v1067
      %v1287 = vmul.f32 %v1286, %v1285
      %v1288 = vmul.f32 0.5, %v1287
      %v1289 = vsub.f32 1.5, %v1288
      %v1290 = vmul.f32 %v1285, %v1289
      %vm1291 = vweird.f32 %v1067
      %vm1292 = vweird.f32 %v1285
      %vm1293 = vmor %vm1291, %vm1292
      %v1294 = vsel %vm1293, %v1285, %v1290
      %v1295 = vrsqrt.pop %v1068
      %v1296 = vmul.f32 %v1295, %v1068
      %v1297 = vmul.f32 %v1296, %v1295
      %v1298 = vmul.f32 0.5, %v1297
      %v1299 = vsub.f32 1.5, %v1298
      %v1300 = vmul.f32 %v1295, %v1299
      %vm1301 = vweird.f32 %v1068
      %vm1302 = vweird.f32 %v1295
      %vm1303 = vmor %vm1301, %vm1302
      %v1304 = vsel %vm1303, %v1295, %v1300
      %v1305 = vrsqrt.pop %v1069
      %v1306 = vmul.f32 %v1305, %v1069
      %v1307 = vmul.f32 %v1306, %v1305
      %v1308 = vmul.f32 0.5, %v1307
      %v1309 = vsub.f32 1.5, %v1308
      %v1310 = vmul.f32 %v1305, %v1309
      %vm1311 = vweird.f32 %v1069
      %vm1312 = vweird.f32 %v1305
      %vm1313 = vmor %vm1311, %vm1312
      %v1314 = vsel %vm1313, %v1305, %v1310
      %v1315 = vrsqrt.pop %v1070
      %v1316 = vmul.f32 %v1315, %v1070
      %v1317 = vmul.f32 %v1316, %v1315
      %v1318 = vmul.f32 0.5, %v1317
      %v1319 = vsub.f32 1.5, %v1318
      %v1320 = vmul.f32 %v1315, %v1319
      %vm1321 = vweird.f32 %v1070
      %vm1322 = vweird.f32 %v1315
      %vm1323 = vmor %vm1321, %vm1322
      %v1324 = vsel %vm1323, %v1315, %v1320
      %v1325 = vrsqrt.pop %v1071
      %v1326 = vmul.f32 %v1325, %v1071
      %v1327 = vmul.f32 %v1326, %v1325
      %v1328 = vmul.f32 0.5, %v1327
      %v1329 = vsub.f32 1.5, %v1328
      %v1330 = vmul.f32 %v1325, %v1329
      %vm1331 = vweird.f32 %v1071
      %vm1332 = vweird.f32 %v1325
      %vm1333 = vmor %vm1331, %vm1332
      %v1334 = vsel %vm1333, %v1325, %v1330
      %v1335 = vrsqrt.pop %v1072
      %v1336 = vmul.f32 %v1335, %v1072
      %v1337 = vmul.f32 %v1336, %v1335
      %v1338 = vmul.f32 0.5, %v1337
      %v1339 = vsub.f32 1.5, %v1338
      %v1340 = vmul.f32 %v1335, %v1339
      %vm1341 = vweird.f32 %v1072
      %vm1342 = vweird.f32 %v1335
      %vm1343 = vmor %vm1341, %vm1342
      %v1344 = vsel %vm1343, %v1335, %v1340
      %v1345 = vrsqrt.pop %v1073
      %v1346 = vmul.f32 %v1345, %v1073
      %v1347 = vmul.f32 %v1346, %v1345
      %v1348 = vmul.f32 0.5, %v1347
      %v1349 = vsub.f32 1.5, %v1348
      %v1350 = vmul.f32 %v1345, %v1349
      %vm1351 = vweird.f32 %v1073
      %vm1352 = vweird.f32 %v1345
      %vm1353 = vmor %vm1351, %vm1352
      %v1354 = vsel %vm1353, %v1345, %v1350
      %v1355 = vrsqrt.pop %v1074
      %v1356 = vmul.f32 %v1355, %v1074
      %v1357 = vmul.f32 %v1356, %v1355
      %v1358 = vmul.f32 0.5, %v1357
      %v1359 = vsub.f32 1.5, %v1358
      %v1360 = vmul.f32 %v1355, %v1359
      %vm1361 = vweird.f32 %v1074
      %vm1362 = vweird.f32 %v1355
      %vm1363 = vmor %vm1361, %vm1362
      %v1364 = vsel %vm1363, %v1355, %v1360
      %v1365 = vrsqrt.pop %v1075
      %v1366 = vmul.f32 %v1365, %v1075
      %v1367 = vmul.f32 %v1366, %v1365
      %v1368 = vmul.f32 0.5, %v1367
      %v1369 = vsub.f32 1.5, %v1368
      %v1370 = vmul.f32 %v1365, %v1369
      %vm1371 = vweird.f32 %v1075
      %vm1372 = vweird.f32 %v1365
      %vm1373 = vmor %vm1371, %vm1372
      %v1374 = vsel %vm1373, %v1365, %v1370
      %v1375 = vrsqrt.pop %v1076
      %v1376 = vmul.f32 %v1375, %v1076
      %v1377 = vmul.f32 %v1376, %v1375
      %v1378 = vmul.f32 0.5, %v1377
      %v1379 = vsub.f32 1.5, %v1378
      %v1380 = vmul.f32 %v1375, %v1379
      %vm1381 = vweird.f32 %v1076
      %vm1382 = vweird.f32 %v1375
      %vm1383 = vmor %vm1381, %vm1382
      %v1384 = vsel %vm1383, %v1375, %v1380
      %v1385 = vrsqrt.pop %v1077
      %v1386 = vmul.f32 %v1385, %v1077
      %v1387 = vmul.f32 %v1386, %v1385
      %v1388 = vmul.f32 0.5, %v1387
      %v1389 = vsub.f32 1.5, %v1388
      %v1390 = vmul.f32 %v1385, %v1389
      %vm1391 = vweird.f32 %v1077
      %vm1392 = vweird.f32 %v1385
      %vm1393 = vmor %vm1391, %vm1392
      %v1394 = vsel %vm1393, %v1385, %v1390
      %v1395 = vrsqrt.pop %v1078
      %v1396 = vmul.f32 %v1395, %v1078
      %v1397 = vmul.f32 %v1396, %v1395
      %v1398 = vmul.f32 0.5, %v1397
      %v1399 = vsub.f32 1.5, %v1398
      %v1400 = vmul.f32 %v1395, %v1399
      %vm1401 = vweird.f32 %v1078
      %vm1402 = vweird.f32 %v1395
      %vm1403 = vmor %vm1401, %vm1402
      %v1404 = vsel %vm1403, %v1395, %v1400
      %v1405 = vrsqrt.pop %v1079
      %v1406 = vmul.f32 %v1405, %v1079
      %v1407 = vmul.f32 %v1406, %v1405
      %v1408 = vmul.f32 0.5, %v1407
      %v1409 = vsub.f32 1.5, %v1408
      %v1410 = vmul.f32 %v1405, %v1409
      %vm1411 = vweird.f32 %v1079
      %vm1412 = vweird.f32 %v1405
      %vm1413 = vmor %vm1411, %vm1412
      %v1414 = vsel %vm1413, %v1405, %v1410
      %v1415 = vrsqrt.pop %v1080
      %v1416 = vmul.f32 %v1415, %v1080
      %v1417 = vmul.f32 %v1416, %v1415
      %v1418 = vmul.f32 0.5, %v1417
      %v1419 = vsub.f32 1.5, %v1418
      %v1420 = vmul.f32 %v1415, %v1419
      %vm1421 = vweird.f32 %v1080
      %vm1422 = vweird.f32 %v1415
      %vm1423 = vmor %vm1421, %vm1422
      %v1424 = vsel %vm1423, %v1415, %v1420
      %v1425 = vrsqrt.pop %v1081
      %v1426 = vmul.f32 %v1425, %v1081
      %v1427 = vmul.f32 %v1426, %v1425
      %v1428 = vmul.f32 0.5, %v1427
      %v1429 = vsub.f32 1.5, %v1428
      %v1430 = vmul.f32 %v1425, %v1429
      %vm1431 = vweird.f32 %v1081
      %vm1432 = vweird.f32 %v1425
      %vm1433 = vmor %vm1431, %vm1432
      %v1434 = vsel %vm1433, %v1425, %v1430
      %v1435 = vrsqrt.pop %v1082
      %v1436 = vmul.f32 %v1435, %v1082
      %v1437 = vmul.f32 %v1436, %v1435
      %v1438 = vmul.f32 0.5, %v1437
      %v1439 = vsub.f32 1.5, %v1438
      %v1440 = vmul.f32 %v1435, %v1439
      %vm1441 = vweird.f32 %v1082
      %vm1442 = vweird.f32 %v1435
      %vm1443 = vmor %vm1441, %vm1442
      %v1444 = vsel %vm1443, %v1435, %v1440
      %v1445 = vrsqrt.pop %v1083
      %v1446 = vmul.f32 %v1445, %v1083
      %v1447 = vmul.f32 %v1446, %v1445
      %v1448 = vmul.f32 0.5, %v1447
      %v1449 = vsub.f32 1.5, %v1448
      %v1450 = vmul.f32 %v1445, %v1449
      %vm1451 = vweird.f32 %v1083
      %vm1452 = vweird.f32 %v1445
      %vm1453 = vmor %vm1451, %vm1452
      %v1454 = vsel %vm1453, %v1445, %v1450
      %v1455 = vrsqrt.pop %v1084
      %v1456 = vmul.f32 %v1455, %v1084
      %v1457 = vmul.f32 %v1456, %v1455
      %v1458 = vmul.f32 0.5, %v1457
      %v1459 = vsub.f32 1.5, %v1458
      %v1460 = vmul.f32 %v1455, %v1459
      %vm1461 = vweird.f32 %v1084
      %vm1462 = vweird.f32 %v1455
      %vm1463 = vmor %vm1461, %vm1462
      %v1464 = vsel %vm1463, %v1455, %v1460
      %v1465 = vrsqrt.pop %v1085
      %v1466 = vmul.f32 %v1465, %v1085
      %v1467 = vmul.f32 %v1466, %v1465
      %v1468 = vmul.f32 0.5, %v1467
      %v1469 = vsub.f32 1.5, %v1468
      %v1470 = vmul.f32 %v1465, %v1469
      %vm1471 = vweird.f32 %v1085
      %vm1472 = vweird.f32 %v1465
      %vm1473 = vmor %vm1471, %vm1472
      %v1474 = vsel %vm1473, %v1465, %v1470
      %v1475 = vrsqrt.pop %v1086
      %v1476 = vmul.f32 %v1475, %v1086
      %v1477 = vmul.f32 %v1476, %v1475
      %v1478 = vmul.f32 0.5, %v1477
      %v1479 = vsub.f32 1.5, %v1478
      %v1480 = vmul.f32 %v1475, %v1479
      %vm1481 = vweird.f32 %v1086
      %vm1482 = vweird.f32 %v1475
      %vm1483 = vmor %vm1481, %vm1482
      %v1484 = vsel %vm1483, %v1475, %v1480
      %v1485 = vrsqrt.pop %v1087
      %v1486 = vmul.f32 %v1485, %v1087
      %v1487 = vmul.f32 %v1486, %v1485
      %v1488 = vmul.f32 0.5, %v1487
      %v1489 = vsub.f32 1.5, %v1488
      %v1490 = vmul.f32 %v1485, %v1489
      %vm1491 = vweird.f32 %v1087
      %vm1492 = vweird.f32 %v1485
      %vm1493 = vmor %vm1491, %vm1492
      %v1494 = vsel %vm1493, %v1485, %v1490
      %v1495 = vrsqrt.pop %v1088
      %v1496 = vmul.f32 %v1495, %v1088
      %v1497 = vmul.f32 %v1496, %v1495
      %v1498 = vmul.f32 0.5, %v1497
      %v1499 = vsub.f32 1.5, %v1498
      %v1500 = vmul.f32 %v1495, %v1499
      %vm1501 = vweird.f32 %v1088
      %vm1502 = vweird.f32 %v1495
      %vm1503 = vmor %vm1501, %vm1502
      %v1504 = vsel %vm1503, %v1495, %v1500
      %v1505 = vrsqrt.pop %v1089
      %v1506 = vmul.f32 %v1505, %v1089
      %v1507 = vmul.f32 %v1506, %v1505
      %v1508 = vmul.f32 0.5, %v1507
      %v1509 = vsub.f32 1.5, %v1508
      %v1510 = vmul.f32 %v1505, %v1509
      %vm1511 = vweird.f32 %v1089
      %vm1512 = vweird.f32 %v1505
      %vm1513 = vmor %vm1511, %vm1512
      %v1514 = vsel %vm1513, %v1505, %v1510
      %v1515 = vrsqrt.pop %v1090
      %v1516 = vmul.f32 %v1515, %v1090
      %v1517 = vmul.f32 %v1516, %v1515
      %v1518 = vmul.f32 0.5, %v1517
      %v1519 = vsub.f32 1.5, %v1518
      %v1520 = vmul.f32 %v1515, %v1519
      %vm1521 = vweird.f32 %v1090
      %vm1522 = vweird.f32 %v1515
      %vm1523 = vmor %vm1521, %vm1522
      %v1524 = vsel %vm1523, %v1515, %v1520
      %v1525 = vrsqrt.pop %v1091
      %v1526 = vmul.f32 %v1525, %v1091
      %v1527 = vmul.f32 %v1526, %v1525
      %v1528 = vmul.f32 0.5, %v1527
      %v1529 = vsub.f32 1.5, %v1528
      %v1530 = vmul.f32 %v1525, %v1529
      %vm1531 = vweird.f32 %v1091
      %vm1532 = vweird.f32 %v1525
      %vm1533 = vmor %vm1531, %vm1532
      %v1534 = vsel %vm1533, %v1525, %v1530
      %v1535 = vrsqrt.pop %v1092
      %v1536 = vmul.f32 %v1535, %v1092
      %v1537 = vmul.f32 %v1536, %v1535
      %v1538 = vmul.f32 0.5, %v1537
      %v1539 = vsub.f32 1.5, %v1538
      %v1540 = vmul.f32 %v1535, %v1539
      %vm1541 = vweird.f32 %v1092
      %vm1542 = vweird.f32 %v1535
      %vm1543 = vmor %vm1541, %vm1542
      %v1544 = vsel %vm1543, %v1535, %v1540
      %v1545 = vrsqrt.pop %v1093
      %v1546 = vmul.f32 %v1545, %v1093
      %v1547 = vmul.f32 %v1546, %v1545
      %v1548 = vmul.f32 0.5, %v1547
      %v1549 = vsub.f32 1.5, %v1548
      %v1550 = vmul.f32 %v1545, %v1549
      %vm1551 = vweird.f32 %v1093
      %vm1552 = vweird.f32 %v1545
      %vm1553 = vmor %vm1551, %vm1552
      %v1554 = vsel %vm1553, %v1545, %v1550
      %v1555 = vrsqrt.pop %v1094
      %v1556 = vmul.f32 %v1555, %v1094
      %v1557 = vmul.f32 %v1556, %v1555
      %v1558 = vmul.f32 0.5, %v1557
      %v1559 = vsub.f32 1.5, %v1558
      %v1560 = vmul.f32 %v1555, %v1559
      %vm1561 = vweird.f32 %v1094
      %vm1562 = vweird.f32 %v1555
      %vm1563 = vmor %vm1561, %vm1562
      %v1564 = vsel %vm1563, %v1555, %v1560
      %v1565 = vrsqrt.pop %v1095
      %v1566 = vmul.f32 %v1565, %v1095
      %v1567 = vmul.f32 %v1566, %v1565
      %v1568 = vmul.f32 0.5, %v1567
      %v1569 = vsub.f32 1.5, %v1568
      %v1570 = vmul.f32 %v1565, %v1569
      %vm1571 = vweird.f32 %v1095
      %vm1572 = vweird.f32 %v1565
      %vm1573 = vmor %vm1571, %vm1572
      %v1574 = vsel %vm1573, %v1565, %v1570
      %v1575 = vrsqrt.pop %v1096
      %v1576 = vmul.f32 %v1575, %v1096
      %v1577 = vmul.f32 %v1576, %v1575
      %v1578 = vmul.f32 0.5, %v1577
      %v1579 = vsub.f32 1.5, %v1578
      %v1580 = vmul.f32 %v1575, %v1579
      %vm1581 = vweird.f32 %v1096
      %vm1582 = vweird.f32 %v1575
      %vm1583 = vmor %vm1581, %vm1582
      %v1584 = vsel %vm1583, %v1575, %v1580
      %v1585 = vrsqrt.pop %v1097
      %v1586 = vmul.f32 %v1585, %v1097
      %v1587 = vmul.f32 %v1586, %v1585
      %v1588 = vmul.f32 0.5, %v1587
      %v1589 = vsub.f32 1.5, %v1588
      %v1590 = vmul.f32 %v1585, %v1589
      %vm1591 = vweird.f32 %v1097
      %vm1592 = vweird.f32 %v1585
      %vm1593 = vmor %vm1591, %vm1592
      %v1594 = vsel %vm1593, %v1585, %v1590
      %v1595 = vrsqrt.pop %v1098
      %v1596 = vmul.f32 %v1595, %v1098
      %v1597 = vmul.f32 %v1596, %v1595
      %v1598 = vmul.f32 0.5, %v1597
      %v1599 = vsub.f32 1.5, %v1598
      %v1600 = vmul.f32 %v1595, %v1599
      %vm1601 = vweird.f32 %v1098
      %vm1602 = vweird.f32 %v1595
      %vm1603 = vmor %vm1601, %vm1602
      %v1604 = vsel %vm1603, %v1595, %v1600
      %v1605 = vrsqrt.pop %v1099
      %v1606 = vmul.f32 %v1605, %v1099
      %v1607 = vmul.f32 %v1606, %v1605
      %v1608 = vmul.f32 0.5, %v1607
      %v1609 = vsub.f32 1.5, %v1608
      %v1610 = vmul.f32 %v1605, %v1609
      %vm1611 = vweird.f32 %v1099
      %vm1612 = vweird.f32 %v1605
      %vm1613 = vmor %vm1611, %vm1612
      %v1614 = vsel %vm1613, %v1605, %v1610
      %v1615 = vrsqrt.pop %v1100
      %v1616 = vmul.f32 %v1615, %v1100
      %v1617 = vmul.f32 %v1616, %v1615
      %v1618 = vmul.f32 0.5, %v1617
      %v1619 = vsub.f32 1.5, %v1618
      %v1620 = vmul.f32 %v1615, %v1619
      %vm1621 = vweird.f32 %v1100
      %vm1622 = vweird.f32 %v1615
      %vm1623 = vmor %vm1621, %vm1622
      %v1624 = vsel %vm1623, %v1615, %v1620
      %v1625 = vrsqrt.pop %v1101
      %v1626 = vmul.f32 %v1625, %v1101
      %v1627 = vmul.f32 %v1626, %v1625
      %v1628 = vmul.f32 0.5, %v1627
      %v1629 = vsub.f32 1.5, %v1628
      %v1630 = vmul.f32 %v1625, %v1629
      %vm1631 = vweird.f32 %v1101
      %vm1632 = vweird.f32 %v1625
      %vm1633 = vmor %vm1631, %vm1632
      %v1634 = vsel %vm1633, %v1625, %v1630
      %v1635 = vrsqrt.pop %v1102
      %v1636 = vmul.f32 %v1635, %v1102
      %v1637 = vmul.f32 %v1636, %v1635
      %v1638 = vmul.f32 0.5, %v1637
      %v1639 = vsub.f32 1.5, %v1638
      %v1640 = vmul.f32 %v1635, %v1639
      %vm1641 = vweird.f32 %v1102
      %vm1642 = vweird.f32 %v1635
      %vm1643 = vmor %vm1641, %vm1642
      %v1644 = vsel %vm1643, %v1635, %v1640
      %v1645 = vrsqrt.pop %v1103
      %v1646 = vmul.f32 %v1645, %v1103
      %v1647 = vmul.f32 %v1646, %v1645
      %v1648 = vmul.f32 0.5, %v1647
      %v1649 = vsub.f32 1.5, %v1648
      %v1650 = vmul.f32 %v1645, %v1649
      %vm1651 = vweird.f32 %v1103
      %vm1652 = vweird.f32 %v1645
      %vm1653 = vmor %vm1651, %vm1652
      %v1654 = vsel %vm1653, %v1645, %v1650
      %v1655 = vrsqrt.pop %v1104
      %v1656 = vmul.f32 %v1655, %v1104
      %v1657 = vmul.f32 %v1656, %v1655
      %v1658 = vmul.f32 0.5, %v1657
      %v1659 = vsub.f32 1.5, %v1658
      %v1660 = vmul.f32 %v1655, %v1659
      %vm1661 = vweird.f32 %v1104
      %vm1662 = vweird.f32 %v1655
      %vm1663 = vmor %vm1661, %vm1662
      %v1664 = vsel %vm1663, %v1655, %v1660
      %v1665 = vrsqrt.pop %v1105
      %v1666 = vmul.f32 %v1665, %v1105
      %v1667 = vmul.f32 %v1666, %v1665
      %v1668 = vmul.f32 0.5, %v1667
      %v1669 = vsub.f32 1.5, %v1668
      %v1670 = vmul.f32 %v1665, %v1669
      %vm1671 = vweird.f32 %v1105
      %vm1672 = vweird.f32 %v1665
      %vm1673 = vmor %vm1671, %vm1672
      %v1674 = vsel %vm1673, %v1665, %v1670
      %v1675 = vrsqrt.pop %v1106
      %v1676 = vmul.f32 %v1675, %v1106
      %v1677 = vmul.f32 %v1676, %v1675
      %v1678 = vmul.f32 0.5, %v1677
      %v1679 = vsub.f32 1.5, %v1678
      %v1680 = vmul.f32 %v1675, %v1679
      %vm1681 = vweird.f32 %v1106
      %vm1682 = vweird.f32 %v1675
      %vm1683 = vmor %vm1681, %vm1682
      %v1684 = vsel %vm1683, %v1675, %v1680
      %v1685 = vrsqrt.pop %v1107
      %v1686 = vmul.f32 %v1685, %v1107
      %v1687 = vmul.f32 %v1686, %v1685
      %v1688 = vmul.f32 0.5, %v1687
      %v1689 = vsub.f32 1.5, %v1688
      %v1690 = vmul.f32 %v1685, %v1689
      %vm1691 = vweird.f32 %v1107
      %vm1692 = vweird.f32 %v1685
      %vm1693 = vmor %vm1691, %vm1692
      %v1694 = vsel %vm1693, %v1685, %v1690
      %v1695 = vrsqrt.pop %v1108
      %v1696 = vmul.f32 %v1695, %v1108
      %v1697 = vmul.f32 %v1696, %v1695
      %v1698 = vmul.f32 0.5, %v1697
      %v1699 = vsub.f32 1.5, %v1698
      %v1700 = vmul.f32 %v1695, %v1699
      %vm1701 = vweird.f32 %v1108
      %vm1702 = vweird.f32 %v1695
      %vm1703 = vmor %vm1701, %vm1702
      %v1704 = vsel %vm1703, %v1695, %v1700
      %v1705 = vrsqrt.pop %v1109
      %v1706 = vmul.f32 %v1705, %v1109
      %v1707 = vmul.f32 %v1706, %v1705
      %v1708 = vmul.f32 0.5, %v1707
      %v1709 = vsub.f32 1.5, %v1708
      %v1710 = vmul.f32 %v1705, %v1709
      %vm1711 = vweird.f32 %v1109
      %vm1712 = vweird.f32 %v1705
      %vm1713 = vmor %vm1711, %vm1712
      %v1714 = vsel %vm1713, %v1705, %v1710
      %v1715 = vrsqrt.pop %v1110
      %v1716 = vmul.f32 %v1715, %v1110
      %v1717 = vmul.f32 %v1716, %v1715
      %v1718 = vmul.f32 0.5, %v1717
      %v1719 = vsub.f32 1.5, %v1718
      %v1720 = vmul.f32 %v1715, %v1719
      %vm1721 = vweird.f32 %v1110
      %vm1722 = vweird.f32 %v1715
      %vm1723 = vmor %vm1721, %vm1722
      %v1724 = vsel %vm1723, %v1715, %v1720
      %v1725 = vrsqrt.pop %v1111
      %v1726 = vmul.f32 %v1725, %v1111
      %v1727 = vmul.f32 %v1726, %v1725
      %v1728 = vmul.f32 0.5, %v1727
      %v1729 = vsub.f32 1.5, %v1728
      %v1730 = vmul.f32 %v1725, %v1729
      %vm1731 = vweird.f32 %v1111
      %vm1732 = vweird.f32 %v1725
      %vm1733 = vmor %vm1731, %vm1732
      %v1734 = vsel %vm1733, %v1725, %v1730
      %v1735 = vrsqrt.pop %v1112
      %v1736 = vmul.f32 %v1735, %v1112
      %v1737 = vmul.f32 %v1736, %v1735
      %v1738 = vmul.f32 0.5, %v1737
      %v1739 = vsub.f32 1.5, %v1738
      %v1740 = vmul.f32 %v1735, %v1739
      %vm1741 = vweird.f32 %v1112
      %vm1742 = vweird.f32 %v1735
      %vm1743 = vmor %vm1741, %vm1742
      %v1744 = vsel %vm1743, %v1735, %v1740
      %v1745 = vrsqrt.pop %v1113
      %v1746 = vmul.f32 %v1745, %v1113
      %v1747 = vmul.f32 %v1746, %v1745
      %v1748 = vmul.f32 0.5, %v1747
      %v1749 = vsub.f32 1.5, %v1748
      %v1750 = vmul.f32 %v1745, %v1749
      %vm1751 = vweird.f32 %v1113
      %vm1752 = vweird.f32 %v1745
      %vm1753 = vmor %vm1751, %vm1752
      %v1754 = vsel %vm1753, %v1745, %v1750
      %v1755 = vrsqrt.pop %v1114
      %v1756 = vmul.f32 %v1755, %v1114
      %v1757 = vmul.f32 %v1756, %v1755
      %v1758 = vmul.f32 0.5, %v1757
      %v1759 = vsub.f32 1.5, %v1758
      %v1760 = vmul.f32 %v1755, %v1759
      %vm1761 = vweird.f32 %v1114
      %vm1762 = vweird.f32 %v1755
      %vm1763 = vmor %vm1761, %vm1762
      %v1764 = vsel %vm1763, %v1755, %v1760
      %v1765 = vrsqrt.pop %v1115
      %v1766 = vmul.f32 %v1765, %v1115
      %v1767 = vmul.f32 %v1766, %v1765
      %v1768 = vmul.f32 0.5, %v1767
      %v1769 = vsub.f32 1.5, %v1768
      %v1770 = vmul.f32 %v1765, %v1769
      %vm1771 = vweird.f32 %v1115
      %vm1772 = vweird.f32 %v1765
      %vm1773 = vmor %vm1771, %vm1772
      %v1774 = vsel %vm1773, %v1765, %v1770
      %v1775 = vrsqrt.pop %v1116
      %v1776 = vmul.f32 %v1775, %v1116
      %v1777 = vmul.f32 %v1776, %v1775
      %v1778 = vmul.f32 0.5, %v1777
      %v1779 = vsub.f32 1.5, %v1778
      %v1780 = vmul.f32 %v1775, %v1779
      %vm1781 = vweird.f32 %v1116
      %vm1782 = vweird.f32 %v1775
      %vm1783 = vmor %vm1781, %vm1782
      %v1784 = vsel %vm1783, %v1775, %v1780
      %v1785 = vrsqrt.pop %v1117
      %v1786 = vmul.f32 %v1785, %v1117
      %v1787 = vmul.f32 %v1786, %v1785
      %v1788 = vmul.f32 0.5, %v1787
      %v1789 = vsub.f32 1.5, %v1788
      %v1790 = vmul.f32 %v1785, %v1789
      %vm1791 = vweird.f32 %v1117
      %vm1792 = vweird.f32 %v1785
      %vm1793 = vmor %vm1791, %vm1792
      %v1794 = vsel %vm1793, %v1785, %v1790
      %v1795 = vrsqrt.pop %v1118
      %v1796 = vmul.f32 %v1795, %v1118
      %v1797 = vmul.f32 %v1796, %v1795
      %v1798 = vmul.f32 0.5, %v1797
      %v1799 = vsub.f32 1.5, %v1798
      %v1800 = vmul.f32 %v1795, %v1799
      %vm1801 = vweird.f32 %v1118
      %vm1802 = vweird.f32 %v1795
      %vm1803 = vmor %vm1801, %vm1802
      %v1804 = vsel %vm1803, %v1795, %v1800
      %v1805 = vrsqrt.pop %v1119
      %v1806 = vmul.f32 %v1805, %v1119
      %v1807 = vmul.f32 %v1806, %v1805
      %v1808 = vmul.f32 0.5, %v1807
      %v1809 = vsub.f32 1.5, %v1808
      %v1810 = vmul.f32 %v1805, %v1809
      %vm1811 = vweird.f32 %v1119
      %vm1812 = vweird.f32 %v1805
      %vm1813 = vmor %vm1811, %vm1812
      %v1814 = vsel %vm1813, %v1805, %v1810
      %v1815 = vrsqrt.pop %v1120
      %v1816 = vmul.f32 %v1815, %v1120
      %v1817 = vmul.f32 %v1816, %v1815
      %v1818 = vmul.f32 0.5, %v1817
      %v1819 = vsub.f32 1.5, %v1818
      %v1820 = vmul.f32 %v1815, %v1819
      %vm1821 = vweird.f32 %v1120
      %vm1822 = vweird.f32 %v1815
      %vm1823 = vmor %vm1821, %vm1822
      %v1824 = vsel %vm1823, %v1815, %v1820
      %v1825 = vrsqrt.pop %v1121
      %v1826 = vmul.f32 %v1825, %v1121
      %v1827 = vmul.f32 %v1826, %v1825
      %v1828 = vmul.f32 0.5, %v1827
      %v1829 = vsub.f32 1.5, %v1828
      %v1830 = vmul.f32 %v1825, %v1829
      %vm1831 = vweird.f32 %v1121
      %vm1832 = vweird.f32 %v1825
      %vm1833 = vmor %vm1831, %vm1832
      %v1834 = vsel %vm1833, %v1825, %v1830
      %v1835 = vrsqrt.pop %v1122
      %v1836 = vmul.f32 %v1835, %v1122
      %v1837 = vmul.f32 %v1836, %v1835
      %v1838 = vmul.f32 0.5, %v1837
      %v1839 = vsub.f32 1.5, %v1838
      %v1840 = vmul.f32 %v1835, %v1839
      %vm1841 = vweird.f32 %v1122
      %vm1842 = vweird.f32 %v1835
      %vm1843 = vmor %vm1841, %vm1842
      %v1844 = vsel %vm1843, %v1835, %v1840
      %v1845 = vrsqrt.pop %v1123
      %v1846 = vmul.f32 %v1845, %v1123
      %v1847 = vmul.f32 %v1846, %v1845
      %v1848 = vmul.f32 0.5, %v1847
      %v1849 = vsub.f32 1.5, %v1848
      %v1850 = vmul.f32 %v1845, %v1849
      %vm1851 = vweird.f32 %v1123
      %vm1852 = vweird.f32 %v1845
      %vm1853 = vmor %vm1851, %vm1852
      %v1854 = vsel %vm1853, %v1845, %v1850
      %v1855 = vrsqrt.pop %v1124
      %v1856 = vmul.f32 %v1855, %v1124
      %v1857 = vmul.f32 %v1856, %v1855
      %v1858 = vmul.f32 0.5, %v1857
      %v1859 = vsub.f32 1.5, %v1858
      %v1860 = vmul.f32 %v1855, %v1859
      %vm1861 = vweird.f32 %v1124
      %vm1862 = vweird.f32 %v1855
      %vm1863 = vmor %vm1861, %vm1862
      %v1864 = vsel %vm1863, %v1855, %v1860
      %v1865 = vrsqrt.pop %v1125
      %v1866 = vmul.f32 %v1865, %v1125
      %v1867 = vmul.f32 %v1866, %v1865
      %v1868 = vmul.f32 0.5, %v1867
      %v1869 = vsub.f32 1.5, %v1868
      %v1870 = vmul.f32 %v1865, %v1869
      %vm1871 = vweird.f32 %v1125
      %vm1872 = vweird.f32 %v1865
      %vm1873 = vmor %vm1871, %vm1872
      %v1874 = vsel %vm1873, %v1865, %v1870
      %v1875 = vrsqrt.pop %v1126
      %v1876 = vmul.f32 %v1875, %v1126
      %v1877 = vmul.f32 %v1876, %v1875
      %v1878 = vmul.f32 0.5, %v1877
      %v1879 = vsub.f32 1.5, %v1878
      %v1880 = vmul.f32 %v1875, %v1879
      %vm1881 = vweird.f32 %v1126
      %vm1882 = vweird.f32 %v1875
      %vm1883 = vmor %vm1881, %vm1882
      %v1884 = vsel %vm1883, %v1875, %v1880
      %v1885 = vrsqrt.pop %v1127
      %v1886 = vmul.f32 %v1885, %v1127
      %v1887 = vmul.f32 %v1886, %v1885
      %v1888 = vmul.f32 0.5, %v1887
      %v1889 = vsub.f32 1.5, %v1888
      %v1890 = vmul.f32 %v1885, %v1889
      %vm1891 = vweird.f32 %v1127
      %vm1892 = vweird.f32 %v1885
      %vm1893 = vmor %vm1891, %vm1892
      %v1894 = vsel %vm1893, %v1885, %v1890
      %v1895 = vrsqrt.pop %v1128
      %v1896 = vmul.f32 %v1895, %v1128
      %v1897 = vmul.f32 %v1896, %v1895
      %v1898 = vmul.f32 0.5, %v1897
      %v1899 = vsub.f32 1.5, %v1898
      %v1900 = vmul.f32 %v1895, %v1899
      %vm1901 = vweird.f32 %v1128
      %vm1902 = vweird.f32 %v1895
      %vm1903 = vmor %vm1901, %vm1902
      %v1904 = vsel %vm1903, %v1895, %v1900
      %v1905 = vrsqrt.pop %v1129
      %v1906 = vmul.f32 %v1905, %v1129
      %v1907 = vmul.f32 %v1906, %v1905
      %v1908 = vmul.f32 0.5, %v1907
      %v1909 = vsub.f32 1.5, %v1908
      %v1910 = vmul.f32 %v1905, %v1909
      %vm1911 = vweird.f32 %v1129
      %vm1912 = vweird.f32 %v1905
      %vm1913 = vmor %vm1911, %vm1912
      %v1914 = vsel %vm1913, %v1905, %v1910
      %v1915 = vrsqrt.pop %v1130
      %v1916 = vmul.f32 %v1915, %v1130
      %v1917 = vmul.f32 %v1916, %v1915
      %v1918 = vmul.f32 0.5, %v1917
      %v1919 = vsub.f32 1.5, %v1918
      %v1920 = vmul.f32 %v1915, %v1919
      %vm1921 = vweird.f32 %v1130
      %vm1922 = vweird.f32 %v1915
      %vm1923 = vmor %vm1921, %vm1922
      %v1924 = vsel %vm1923, %v1915, %v1920
      %v1925 = vrsqrt.pop %v1131
      %v1926 = vmul.f32 %v1925, %v1131
      %v1927 = vmul.f32 %v1926, %v1925
      %v1928 = vmul.f32 0.5, %v1927
      %v1929 = vsub.f32 1.5, %v1928
      %v1930 = vmul.f32 %v1925, %v1929
      %vm1931 = vweird.f32 %v1131
      %vm1932 = vweird.f32 %v1925
      %vm1933 = vmor %vm1931, %vm1932
      %v1934 = vsel %vm1933, %v1925, %v1930
      %v1935 = vrsqrt.pop %v1132
      %v1936 = vmul.f32 %v1935, %v1132
      %v1937 = vmul.f32 %v1936, %v1935
      %v1938 = vmul.f32 0.5, %v1937
      %v1939 = vsub.f32 1.5, %v1938
      %v1940 = vmul.f32 %v1935, %v1939
      %vm1941 = vweird.f32 %v1132
      %vm1942 = vweird.f32 %v1935
      %vm1943 = vmor %vm1941, %vm1942
      %v1944 = vsel %vm1943, %v1935, %v1940
      %v1945 = vrsqrt.pop %v1133
      %v1946 = vmul.f32 %v1945, %v1133
      %v1947 = vmul.f32 %v1946, %v1945
      %v1948 = vmul.f32 0.5, %v1947
      %v1949 = vsub.f32 1.5, %v1948
      %v1950 = vmul.f32 %v1945, %v1949
      %vm1951 = vweird.f32 %v1133
      %vm1952 = vweird.f32 %v1945
      %vm1953 = vmor %vm1951, %vm1952
      %v1954 = vsel %vm1953, %v1945, %v1950
      %v1955 = vrsqrt.pop %v1134
      %v1956 = vmul.f32 %v1955, %v1134
      %v1957 = vmul.f32 %v1956, %v1955
      %v1958 = vmul.f32 0.5, %v1957
      %v1959 = vsub.f32 1.5, %v1958
      %v1960 = vmul.f32 %v1955, %v1959
      %vm1961 = vweird.f32 %v1134
      %vm1962 = vweird.f32 %v1955
      %vm1963 = vmor %vm1961, %vm1962
      %v1964 = vsel %vm1963, %v1955, %v1960
      %v1965 = vrsqrt.pop %v1135
      %v1966 = vmul.f32 %v1965, %v1135
      %v1967 = vmul.f32 %v1966, %v1965
      %v1968 = vmul.f32 0.5, %v1967
      %v1969 = vsub.f32 1.5, %v1968
      %v1970 = vmul.f32 %v1965, %v1969
      %vm1971 = vweird.f32 %v1135
      %vm1972 = vweird.f32 %v1965
      %vm1973 = vmor %vm1971, %vm1972
      %v1974 = vsel %vm1973, %v1965, %v1970
      %v1975 = vrsqrt.pop %v1136
      %v1976 = vmul.f32 %v1975, %v1136
      %v1977 = vmul.f32 %v1976, %v1975
      %v1978 = vmul.f32 0.5, %v1977
      %v1979 = vsub.f32 1.5, %v1978
      %v1980 = vmul.f32 %v1975, %v1979
      %vm1981 = vweird.f32 %v1136
      %vm1982 = vweird.f32 %v1975
      %vm1983 = vmor %vm1981, %vm1982
      %v1984 = vsel %vm1983, %v1975, %v1980
      %v1985 = vrsqrt.pop %v1137
      %v1986 = vmul.f32 %v1985, %v1137
      %v1987 = vmul.f32 %v1986, %v1985
      %v1988 = vmul.f32 0.5, %v1987
      %v1989 = vsub.f32 1.5, %v1988
      %v1990 = vmul.f32 %v1985, %v1989
      %vm1991 = vweird.f32 %v1137
      %vm1992 = vweird.f32 %v1985
      %vm1993 = vmor %vm1991, %vm1992
      %v1994 = vsel %vm1993, %v1985, %v1990
      %v1995 = vrsqrt.pop %v1138
      %v1996 = vmul.f32 %v1995, %v1138
      %v1997 = vmul.f32 %v1996, %v1995
      %v1998 = vmul.f32 0.5, %v1997
      %v1999 = vsub.f32 1.5, %v1998
      %v2000 = vmul.f32 %v1995, %v1999
      %vm2001 = vweird.f32 %v1138
      %vm2002 = vweird.f32 %v1995
      %vm2003 = vmor %vm2001, %vm2002
      %v2004 = vsel %vm2003, %v1995, %v2000
      %v2005 = vrsqrt.pop %v1139
      %v2006 = vmul.f32 %v2005, %v1139
      %v2007 = vmul.f32 %v2006, %v2005
      %v2008 = vmul.f32 0.5, %v2007
      %v2009 = vsub.f32 1.5, %v2008
      %v2010 = vmul.f32 %v2005, %v2009
      %vm2011 = vweird.f32 %v1139
      %vm2012 = vweird.f32 %v2005
      %vm2013 = vmor %vm2011, %vm2012
      %v2014 = vsel %vm2013, %v2005, %v2010
      %v2015 = vrsqrt.pop %v1140
      %v2016 = vmul.f32 %v2015, %v1140
      %v2017 = vmul.f32 %v2016, %v2015
      %v2018 = vmul.f32 0.5, %v2017
      %v2019 = vsub.f32 1.5, %v2018
      %v2020 = vmul.f32 %v2015, %v2019
      %vm2021 = vweird.f32 %v1140
      %vm2022 = vweird.f32 %v2015
      %vm2023 = vmor %vm2021, %vm2022
      %v2024 = vsel %vm2023, %v2015, %v2020
      %v2025 = vrsqrt.pop %v1141
      %v2026 = vmul.f32 %v2025, %v1141
      %v2027 = vmul.f32 %v2026, %v2025
      %v2028 = vmul.f32 0.5, %v2027
      %v2029 = vsub.f32 1.5, %v2028
      %v2030 = vmul.f32 %v2025, %v2029
      %vm2031 = vweird.f32 %v1141
      %vm2032 = vweird.f32 %v2025
      %vm2033 = vmor %vm2031, %vm2032
      %v2034 = vsel %vm2033, %v2025, %v2030
      %v2035 = vrsqrt.pop %v1142
      %v2036 = vmul.f32 %v2035, %v1142
      %v2037 = vmul.f32 %v2036, %v2035
      %v2038 = vmul.f32 0.5, %v2037
      %v2039 = vsub.f32 1.5, %v2038
      %v2040 = vmul.f32 %v2035, %v2039
      %vm2041 = vweird.f32 %v1142
      %vm2042 = vweird.f32 %v2035
      %vm2043 = vmor %vm2041, %vm2042
      %v2044 = vsel %vm2043, %v2035, %v2040
      %v2045 = vrsqrt.pop %v1143
      %v2046 = vmul.f32 %v2045, %v1143
      %v2047 = vmul.f32 %v2046, %v2045
      %v2048 = vmul.f32 0.5, %v2047
      %v2049 = vsub.f32 1.5, %v2048
      %v2050 = vmul.f32 %v2045, %v2049
      %vm2051 = vweird.f32 %v1143
      %vm2052 = vweird.f32 %v2045
      %vm2053 = vmor %vm2051, %vm2052
      %v2054 = vsel %vm2053, %v2045, %v2050
      %v2055 = vrsqrt.pop %v1144
      %v2056 = vmul.f32 %v2055, %v1144
      %v2057 = vmul.f32 %v2056, %v2055
      %v2058 = vmul.f32 0.5, %v2057
      %v2059 = vsub.f32 1.5, %v2058
      %v2060 = vmul.f32 %v2055, %v2059
      %vm2061 = vweird.f32 %v1144
      %vm2062 = vweird.f32 %v2055
      %vm2063 = vmor %vm2061, %vm2062
      %v2064 = vsel %vm2063, %v2055, %v2060
      %v2065 = vrsqrt.pop %v1145
      %v2066 = vmul.f32 %v2065, %v1145
      %v2067 = vmul.f32 %v2066, %v2065
      %v2068 = vmul.f32 0.5, %v2067
      %v2069 = vsub.f32 1.5, %v2068
      %v2070 = vmul.f32 %v2065, %v2069
      %vm2071 = vweird.f32 %v1145
      %vm2072 = vweird.f32 %v2065
      %vm2073 = vmor %vm2071, %vm2072
      %v2074 = vsel %vm2073, %v2065, %v2070
      %v2075 = vrsqrt.pop %v1146
      %v2076 = vmul.f32 %v2075, %v1146
      %v2077 = vmul.f32 %v2076, %v2075
      %v2078 = vmul.f32 0.5, %v2077
      %v2079 = vsub.f32 1.5, %v2078
      %v2080 = vmul.f32 %v2075, %v2079
      %vm2081 = vweird.f32 %v1146
      %vm2082 = vweird.f32 %v2075
      %vm2083 = vmor %vm2081, %vm2082
      %v2084 = vsel %vm2083, %v2075, %v2080
      %v2085 = vrsqrt.pop %v1147
      %v2086 = vmul.f32 %v2085, %v1147
      %v2087 = vmul.f32 %v2086, %v2085
      %v2088 = vmul.f32 0.5, %v2087
      %v2089 = vsub.f32 1.5, %v2088
      %v2090 = vmul.f32 %v2085, %v2089
      %vm2091 = vweird.f32 %v1147
      %vm2092 = vweird.f32 %v2085
      %vm2093 = vmor %vm2091, %vm2092
      %v2094 = vsel %vm2093, %v2085, %v2090
      %v2095 = vrsqrt.pop %v1148
      %v2096 = vmul.f32 %v2095, %v1148
      %v2097 = vmul.f32 %v2096, %v2095
      %v2098 = vmul.f32 0.5, %v2097
      %v2099 = vsub.f32 1.5, %v2098
      %v2100 = vmul.f32 %v2095, %v2099
      %vm2101 = vweird.f32 %v1148
      %vm2102 = vweird.f32 %v2095
      %vm2103 = vmor %vm2101, %vm2102
      %v2104 = vsel %vm2103, %v2095, %v2100
      %v2105 = vrsqrt.pop %v1149
      %v2106 = vmul.f32 %v2105, %v1149
      %v2107 = vmul.f32 %v2106, %v2105
      %v2108 = vmul.f32 0.5, %v2107
      %v2109 = vsub.f32 1.5, %v2108
      %v2110 = vmul.f32 %v2105, %v2109
      %vm2111 = vweird.f32 %v1149
      %vm2112 = vweird.f32 %v2105
      %vm2113 = vmor %vm2111, %vm2112
      %v2114 = vsel %vm2113, %v2105, %v2110
      %v2115 = vrsqrt.pop %v1150
      %v2116 = vmul.f32 %v2115, %v1150
      %v2117 = vmul.f32 %v2116, %v2115
      %v2118 = vmul.f32 0.5, %v2117
      %v2119 = vsub.f32 1.5, %v2118
      %v2120 = vmul.f32 %v2115, %v2119
      %vm2121 = vweird.f32 %v1150
      %vm2122 = vweird.f32 %v2115
      %vm2123 = vmor %vm2121, %vm2122
      %v2124 = vsel %vm2123, %v2115, %v2120
      %v2125 = vrsqrt.pop %v1151
      %v2126 = vmul.f32 %v2125, %v1151
      %v2127 = vmul.f32 %v2126, %v2125
      %v2128 = vmul.f32 0.5, %v2127
      %v2129 = vsub.f32 1.5, %v2128
      %v2130 = vmul.f32 %v2125, %v2129
      %vm2131 = vweird.f32 %v1151
      %vm2132 = vweird.f32 %v2125
      %vm2133 = vmor %vm2131, %vm2132
      %v2134 = vsel %vm2133, %v2125, %v2130
      %v2135 = vrsqrt.pop %v1152
      %v2136 = vmul.f32 %v2135, %v1152
      %v2137 = vmul.f32 %v2136, %v2135
      %v2138 = vmul.f32 0.5, %v2137
      %v2139 = vsub.f32 1.5, %v2138
      %v2140 = vmul.f32 %v2135, %v2139
      %vm2141 = vweird.f32 %v1152
      %vm2142 = vweird.f32 %v2135
      %vm2143 = vmor %vm2141, %vm2142
      %v2144 = vsel %vm2143, %v2135, %v2140
      %v2145 = vrsqrt.pop %v1153
      %v2146 = vmul.f32 %v2145, %v1153
      %v2147 = vmul.f32 %v2146, %v2145
      %v2148 = vmul.f32 0.5, %v2147
      %v2149 = vsub.f32 1.5, %v2148
      %v2150 = vmul.f32 %v2145, %v2149
      %vm2151 = vweird.f32 %v1153
      %vm2152 = vweird.f32 %v2145
      %vm2153 = vmor %vm2151, %vm2152
      %v2154 = vsel %vm2153, %v2145, %v2150
      %v2155 = vrsqrt.pop %v1154
      %v2156 = vmul.f32 %v2155, %v1154
      %v2157 = vmul.f32 %v2156, %v2155
      %v2158 = vmul.f32 0.5, %v2157
      %v2159 = vsub.f32 1.5, %v2158
      %v2160 = vmul.f32 %v2155, %v2159
      %vm2161 = vweird.f32 %v1154
      %vm2162 = vweird.f32 %v2155
      %vm2163 = vmor %vm2161, %vm2162
      %v2164 = vsel %vm2163, %v2155, %v2160
      %v2165 = vrsqrt.pop %v1155
      %v2166 = vmul.f32 %v2165, %v1155
      %v2167 = vmul.f32 %v2166, %v2165
      %v2168 = vmul.f32 0.5, %v2167
      %v2169 = vsub.f32 1.5, %v2168
      %v2170 = vmul.f32 %v2165, %v2169
      %vm2171 = vweird.f32 %v1155
      %vm2172 = vweird.f32 %v2165
      %vm2173 = vmor %vm2171, %vm2172
      %v2174 = vsel %vm2173, %v2165, %v2170
      %v2175 = vrsqrt.pop %v1156
      %v2176 = vmul.f32 %v2175, %v1156
      %v2177 = vmul.f32 %v2176, %v2175
      %v2178 = vmul.f32 0.5, %v2177
      %v2179 = vsub.f32 1.5, %v2178
      %v2180 = vmul.f32 %v2175, %v2179
      %vm2181 = vweird.f32 %v1156
      %vm2182 = vweird.f32 %v2175
      %vm2183 = vmor %vm2181, %vm2182
      %v2184 = vsel %vm2183, %v2175, %v2180
      %v2185 = vrsqrt.pop %v1157
      %v2186 = vmul.f32 %v2185, %v1157
      %v2187 = vmul.f32 %v2186, %v2185
      %v2188 = vmul.f32 0.5, %v2187
      %v2189 = vsub.f32 1.5, %v2188
      %v2190 = vmul.f32 %v2185, %v2189
      %vm2191 = vweird.f32 %v1157
      %vm2192 = vweird.f32 %v2185
      %vm2193 = vmor %vm2191, %vm2192
      %v2194 = vsel %vm2193, %v2185, %v2190
      %v2195 = vrsqrt.pop %v1158
      %v2196 = vmul.f32 %v2195, %v1158
      %v2197 = vmul.f32 %v2196, %v2195
      %v2198 = vmul.f32 0.5, %v2197
      %v2199 = vsub.f32 1.5, %v2198
      %v2200 = vmul.f32 %v2195, %v2199
      %vm2201 = vweird.f32 %v1158
      %vm2202 = vweird.f32 %v2195
      %vm2203 = vmor %vm2201, %vm2202
      %v2204 = vsel %vm2203, %v2195, %v2200
      %v2205 = vrsqrt.pop %v1159
      %v2206 = vmul.f32 %v2205, %v1159
      %v2207 = vmul.f32 %v2206, %v2205
      %v2208 = vmul.f32 0.5, %v2207
      %v2209 = vsub.f32 1.5, %v2208
      %v2210 = vmul.f32 %v2205, %v2209
      %vm2211 = vweird.f32 %v1159
      %vm2212 = vweird.f32 %v2205
      %vm2213 = vmor %vm2211, %vm2212
      %v2214 = vsel %vm2213, %v2205, %v2210
      %v2215 = vrsqrt.pop %v1160
      %v2216 = vmul.f32 %v2215, %v1160
      %v2217 = vmul.f32 %v2216, %v2215
      %v2218 = vmul.f32 0.5, %v2217
      %v2219 = vsub.f32 1.5, %v2218
      %v2220 = vmul.f32 %v2215, %v2219
      %vm2221 = vweird.f32 %v1160
      %vm2222 = vweird.f32 %v2215
      %vm2223 = vmor %vm2221, %vm2222
      %v2224 = vsel %vm2223, %v2215, %v2220
      %v2225 = vrsqrt.pop %v1161
      %v2226 = vmul.f32 %v2225, %v1161
      %v2227 = vmul.f32 %v2226, %v2225
      %v2228 = vmul.f32 0.5, %v2227
      %v2229 = vsub.f32 1.5, %v2228
      %v2230 = vmul.f32 %v2225, %v2229
      %vm2231 = vweird.f32 %v1161
      %vm2232 = vweird.f32 %v2225
      %vm2233 = vmor %vm2231, %vm2232
      %v2234 = vsel %vm2233, %v2225, %v2230
      %v2235 = vrsqrt.pop %v1162
      %v2236 = vmul.f32 %v2235, %v1162
      %v2237 = vmul.f32 %v2236, %v2235
      %v2238 = vmul.f32 0.5, %v2237
      %v2239 = vsub.f32 1.5, %v2238
      %v2240 = vmul.f32 %v2235, %v2239
      %vm2241 = vweird.f32 %v1162
      %vm2242 = vweird.f32 %v2235
      %vm2243 = vmor %vm2241, %vm2242
      %v2244 = vsel %vm2243, %v2235, %v2240
      %v2245 = vrsqrt.pop %v1163
      %v2246 = vmul.f32 %v2245, %v1163
      %v2247 = vmul.f32 %v2246, %v2245
      %v2248 = vmul.f32 0.5, %v2247
      %v2249 = vsub.f32 1.5, %v2248
      %v2250 = vmul.f32 %v2245, %v2249
      %vm2251 = vweird.f32 %v1163
      %vm2252 = vweird.f32 %v2245
      %vm2253 = vmor %vm2251, %vm2252
      %v2254 = vsel %vm2253, %v2245, %v2250
      %v2255 = vrsqrt.pop %v1164
      %v2256 = vmul.f32 %v2255, %v1164
      %v2257 = vmul.f32 %v2256, %v2255
      %v2258 = vmul.f32 0.5, %v2257
      %v2259 = vsub.f32 1.5, %v2258
      %v2260 = vmul.f32 %v2255, %v2259
      %vm2261 = vweird.f32 %v1164
      %vm2262 = vweird.f32 %v2255
      %vm2263 = vmor %vm2261, %vm2262
      %v2264 = vsel %vm2263, %v2255, %v2260
      %v2265 = vrsqrt.pop %v1165
      %v2266 = vmul.f32 %v2265, %v1165
      %v2267 = vmul.f32 %v2266, %v2265
      %v2268 = vmul.f32 0.5, %v2267
      %v2269 = vsub.f32 1.5, %v2268
      %v2270 = vmul.f32 %v2265, %v2269
      %vm2271 = vweird.f32 %v1165
      %vm2272 = vweird.f32 %v2265
      %vm2273 = vmor %vm2271, %vm2272
      %v2274 = vsel %vm2273, %v2265, %v2270
      %v2275 = vrsqrt.pop %v1166
      %v2276 = vmul.f32 %v2275, %v1166
      %v2277 = vmul.f32 %v2276, %v2275
      %v2278 = vmul.f32 0.5, %v2277
      %v2279 = vsub.f32 1.5, %v2278
      %v2280 = vmul.f32 %v2275, %v2279
      %vm2281 = vweird.f32 %v1166
      %vm2282 = vweird.f32 %v2275
      %vm2283 = vmor %vm2281, %vm2282
      %v2284 = vsel %vm2283, %v2275, %v2280
      %v2285 = vrsqrt.pop %v1167
      %v2286 = vmul.f32 %v2285, %v1167
      %v2287 = vmul.f32 %v2286, %v2285
      %v2288 = vmul.f32 0.5, %v2287
      %v2289 = vsub.f32 1.5, %v2288
      %v2290 = vmul.f32 %v2285, %v2289
      %vm2291 = vweird.f32 %v1167
      %vm2292 = vweird.f32 %v2285
      %vm2293 = vmor %vm2291, %vm2292
      %v2294 = vsel %vm2293, %v2285, %v2290
      %v2295 = vrsqrt.pop %v1168
      %v2296 = vmul.f32 %v2295, %v1168
      %v2297 = vmul.f32 %v2296, %v2295
      %v2298 = vmul.f32 0.5, %v2297
      %v2299 = vsub.f32 1.5, %v2298
      %v2300 = vmul.f32 %v2295, %v2299
      %vm2301 = vweird.f32 %v1168
      %vm2302 = vweird.f32 %v2295
      %vm2303 = vmor %vm2301, %vm2302
      %v2304 = vsel %vm2303, %v2295, %v2300
      %v2305 = vrsqrt.pop %v1169
      %v2306 = vmul.f32 %v2305, %v1169
      %v2307 = vmul.f32 %v2306, %v2305
      %v2308 = vmul.f32 0.5, %v2307
      %v2309 = vsub.f32 1.5, %v2308
      %v2310 = vmul.f32 %v2305, %v2309
      %vm2311 = vweird.f32 %v1169
      %vm2312 = vweird.f32 %v2305
      %vm2313 = vmor %vm2311, %vm2312
      %v2314 = vsel %vm2313, %v2305, %v2310
      %v2315 = vrsqrt.pop %v1170
      %v2316 = vmul.f32 %v2315, %v1170
      %v2317 = vmul.f32 %v2316, %v2315
      %v2318 = vmul.f32 0.5, %v2317
      %v2319 = vsub.f32 1.5, %v2318
      %v2320 = vmul.f32 %v2315, %v2319
      %vm2321 = vweird.f32 %v1170
      %vm2322 = vweird.f32 %v2315
      %vm2323 = vmor %vm2321, %vm2322
      %v2324 = vsel %vm2323, %v2315, %v2320
      %v2325 = vrsqrt.pop %v1171
      %v2326 = vmul.f32 %v2325, %v1171
      %v2327 = vmul.f32 %v2326, %v2325
      %v2328 = vmul.f32 0.5, %v2327
      %v2329 = vsub.f32 1.5, %v2328
      %v2330 = vmul.f32 %v2325, %v2329
      %vm2331 = vweird.f32 %v1171
      %vm2332 = vweird.f32 %v2325
      %vm2333 = vmor %vm2331, %vm2332
      %v2334 = vsel %vm2333, %v2325, %v2330
      %v2335 = vrsqrt.pop %v1172
      %v2336 = vmul.f32 %v2335, %v1172
      %v2337 = vmul.f32 %v2336, %v2335
      %v2338 = vmul.f32 0.5, %v2337
      %v2339 = vsub.f32 1.5, %v2338
      %v2340 = vmul.f32 %v2335, %v2339
      %vm2341 = vweird.f32 %v1172
      %vm2342 = vweird.f32 %v2335
      %vm2343 = vmor %vm2341, %vm2342
      %v2344 = vsel %vm2343, %v2335, %v2340
      %v2345 = vrsqrt.pop %v1173
      %v2346 = vmul.f32 %v2345, %v1173
      %v2347 = vmul.f32 %v2346, %v2345
      %v2348 = vmul.f32 0.5, %v2347
      %v2349 = vsub.f32 1.5, %v2348
      %v2350 = vmul.f32 %v2345, %v2349
      %vm2351 = vweird.f32 %v1173
      %vm2352 = vweird.f32 %v2345
      %vm2353 = vmor %vm2351, %vm2352
      %v2354 = vsel %vm2353, %v2345, %v2350
      %v2355 = vrsqrt.pop %v1174
      %v2356 = vmul.f32 %v2355, %v1174
      %v2357 = vmul.f32 %v2356, %v2355
      %v2358 = vmul.f32 0.5, %v2357
      %v2359 = vsub.f32 1.5, %v2358
      %v2360 = vmul.f32 %v2355, %v2359
      %vm2361 = vweird.f32 %v1174
      %vm2362 = vweird.f32 %v2355
      %vm2363 = vmor %vm2361, %vm2362
      %v2364 = vsel %vm2363, %v2355, %v2360
      %v2365 = vrsqrt.pop %v1175
      %v2366 = vmul.f32 %v2365, %v1175
      %v2367 = vmul.f32 %v2366, %v2365
      %v2368 = vmul.f32 0.5, %v2367
      %v2369 = vsub.f32 1.5, %v2368
      %v2370 = vmul.f32 %v2365, %v2369
      %vm2371 = vweird.f32 %v1175
      %vm2372 = vweird.f32 %v2365
      %vm2373 = vmor %vm2371, %vm2372
      %v2374 = vsel %vm2373, %v2365, %v2370
      %v2375 = vrsqrt.pop %v1176
      %v2376 = vmul.f32 %v2375, %v1176
      %v2377 = vmul.f32 %v2376, %v2375
      %v2378 = vmul.f32 0.5, %v2377
      %v2379 = vsub.f32 1.5, %v2378
      %v2380 = vmul.f32 %v2375, %v2379
      %vm2381 = vweird.f32 %v1176
      %vm2382 = vweird.f32 %v2375
      %vm2383 = vmor %vm2381, %vm2382
      %v2384 = vsel %vm2383, %v2375, %v2380
      %v2385 = vrsqrt.pop %v1177
      %v2386 = vmul.f32 %v2385, %v1177
      %v2387 = vmul.f32 %v2386, %v2385
      %v2388 = vmul.f32 0.5, %v2387
      %v2389 = vsub.f32 1.5, %v2388
      %v2390 = vmul.f32 %v2385, %v2389
      %vm2391 = vweird.f32 %v1177
      %vm2392 = vweird.f32 %v2385
      %vm2393 = vmor %vm2391, %vm2392
      %v2394 = vsel %vm2393, %v2385, %v2390
      %v2395 = vrsqrt.pop %v1178
      %v2396 = vmul.f32 %v2395, %v1178
      %v2397 = vmul.f32 %v2396, %v2395
      %v2398 = vmul.f32 0.5, %v2397
      %v2399 = vsub.f32 1.5, %v2398
      %v2400 = vmul.f32 %v2395, %v2399
      %vm2401 = vweird.f32 %v1178
      %vm2402 = vweird.f32 %v2395
      %vm2403 = vmor %vm2401, %vm2402
      %v2404 = vsel %vm2403, %v2395, %v2400
      %v2405 = vrsqrt.pop %v1179
      %v2406 = vmul.f32 %v2405, %v1179
      %v2407 = vmul.f32 %v2406, %v2405
      %v2408 = vmul.f32 0.5, %v2407
      %v2409 = vsub.f32 1.5, %v2408
      %v2410 = vmul.f32 %v2405, %v2409
      %vm2411 = vweird.f32 %v1179
      %vm2412 = vweird.f32 %v2405
      %vm2413 = vmor %vm2411, %vm2412
      %v2414 = vsel %vm2413, %v2405, %v2410
      %v2415 = vrsqrt.pop %v1180
      %v2416 = vmul.f32 %v2415, %v1180
      %v2417 = vmul.f32 %v2416, %v2415
      %v2418 = vmul.f32 0.5, %v2417
      %v2419 = vsub.f32 1.5, %v2418
      %v2420 = vmul.f32 %v2415, %v2419
      %vm2421 = vweird.f32 %v1180
      %vm2422 = vweird.f32 %v2415
      %vm2423 = vmor %vm2421, %vm2422
      %v2424 = vsel %vm2423, %v2415, %v2420
      %v2425 = vrsqrt.pop %v1181
      %v2426 = vmul.f32 %v2425, %v1181
      %v2427 = vmul.f32 %v2426, %v2425
      %v2428 = vmul.f32 0.5, %v2427
      %v2429 = vsub.f32 1.5, %v2428
      %v2430 = vmul.f32 %v2425, %v2429
      %vm2431 = vweird.f32 %v1181
      %vm2432 = vweird.f32 %v2425
      %vm2433 = vmor %vm2431, %vm2432
      %v2434 = vsel %vm2433, %v2425, %v2430
      %v2435 = vrsqrt.pop %v1182
      %v2436 = vmul.f32 %v2435, %v1182
      %v2437 = vmul.f32 %v2436, %v2435
      %v2438 = vmul.f32 0.5, %v2437
      %v2439 = vsub.f32 1.5, %v2438
      %v2440 = vmul.f32 %v2435, %v2439
      %vm2441 = vweird.f32 %v1182
      %vm2442 = vweird.f32 %v2435
      %vm2443 = vmor %vm2441, %vm2442
      %v2444 = vsel %vm2443, %v2435, %v2440
      %v2445 = vrsqrt.pop %v1183
      %v2446 = vmul.f32 %v2445, %v1183
      %v2447 = vmul.f32 %v2446, %v2445
      %v2448 = vmul.f32 0.5, %v2447
      %v2449 = vsub.f32 1.5, %v2448
      %v2450 = vmul.f32 %v2445, %v2449
      %vm2451 = vweird.f32 %v1183
      %vm2452 = vweird.f32 %v2445
      %vm2453 = vmor %vm2451, %vm2452
      %v2454 = vsel %vm2453, %v2445, %v2450
      %v2455 = vrsqrt.pop %v1184
      %v2456 = vmul.f32 %v2455, %v1184
      %v2457 = vmul.f32 %v2456, %v2455
      %v2458 = vmul.f32 0.5, %v2457
      %v2459 = vsub.f32 1.5, %v2458
      %v2460 = vmul.f32 %v2455, %v2459
      %vm2461 = vweird.f32 %v1184
      %vm2462 = vweird.f32 %v2455
      %vm2463 = vmor %vm2461, %vm2462
      %v2464 = vsel %vm2463, %v2455, %v2460
      %v2465 = vmul.f32 %v285, %v1194
      %v2466 = vmul.f32 %v286, %v1204
      %v2467 = vmul.f32 %v287, %v1214
      %v2468 = vmul.f32 %v288, %v1224
      %v2469 = vmul.f32 %v289, %v1234
      %v2470 = vmul.f32 %v290, %v1244
      %v2471 = vmul.f32 %v291, %v1254
      %v2472 = vmul.f32 %v292, %v1264
      %v2473 = vmul.f32 %v293, %v1274
      %v2474 = vmul.f32 %v294, %v1284
      %v2475 = vmul.f32 %v295, %v1294
      %v2476 = vmul.f32 %v296, %v1304
      %v2477 = vmul.f32 %v297, %v1314
      %v2478 = vmul.f32 %v298, %v1324
      %v2479 = vmul.f32 %v299, %v1334
      %v2480 = vmul.f32 %v300, %v1344
      %v2481 = vmul.f32 %v301, %v1354
      %v2482 = vmul.f32 %v302, %v1364
      %v2483 = vmul.f32 %v303, %v1374
      %v2484 = vmul.f32 %v304, %v1384
      %v2485 = vmul.f32 %v305, %v1394
      %v2486 = vmul.f32 %v306, %v1404
      %v2487 = vmul.f32 %v307, %v1414
      %v2488 = vmul.f32 %v308, %v1424
      %v2489 = vmul.f32 %v309, %v1434
      %v2490 = vmul.f32 %v310, %v1444
      %v2491 = vmul.f32 %v311, %v1454
      %v2492 = vmul.f32 %v312, %v1464
      %v2493 = vmul.f32 %v313, %v1474
      %v2494 = vmul.f32 %v314, %v1484
      %v2495 = vmul.f32 %v315, %v1494
      %v2496 = vmul.f32 %v316, %v1504
      %v2497 = vmul.f32 %v317, %v1514
      %v2498 = vmul.f32 %v318, %v1524
      %v2499 = vmul.f32 %v319, %v1534
      %v2500 = vmul.f32 %v320, %v1544
      %v2501 = vmul.f32 %v321, %v1554
      %v2502 = vmul.f32 %v322, %v1564
      %v2503 = vmul.f32 %v323, %v1574
      %v2504 = vmul.f32 %v324, %v1584
      %v2505 = vmul.f32 %v325, %v1594
      %v2506 = vmul.f32 %v326, %v1604
      %v2507 = vmul.f32 %v327, %v1614
      %v2508 = vmul.f32 %v328, %v1624
      %v2509 = vmul.f32 %v329, %v1634
      %v2510 = vmul.f32 %v330, %v1644
      %v2511 = vmul.f32 %v331, %v1654
      %v2512 = vmul.f32 %v332, %v1664
      %v2513 = vmul.f32 %v333, %v1674
      %v2514 = vmul.f32 %v334, %v1684
      %v2515 = vmul.f32 %v335, %v1694
      %v2516 = vmul.f32 %v336, %v1704
      %v2517 = vmul.f32 %v337, %v1714
      %v2518 = vmul.f32 %v338, %v1724
      %v2519 = vmul.f32 %v339, %v1734
      %v2520 = vmul.f32 %v340, %v1744
      %v2521 = vmul.f32 %v341, %v1754
      %v2522 = vmul.f32 %v342, %v1764
      %v2523 = vmul.f32 %v343, %v1774
      %v2524 = vmul.f32 %v344, %v1784
      %v2525 = vmul.f32 %v345, %v1794
      %v2526 = vmul.f32 %v346, %v1804
      %v2527 = vmul.f32 %v347, %v1814
      %v2528 = vmul.f32 %v348, %v1824
      %v2529 = vmul.f32 %v349, %v1834
      %v2530 = vmul.f32 %v350, %v1844
      %v2531 = vmul.f32 %v351, %v1854
      %v2532 = vmul.f32 %v352, %v1864
      %v2533 = vmul.f32 %v353, %v1874
      %v2534 = vmul.f32 %v354, %v1884
      %v2535 = vmul.f32 %v355, %v1894
      %v2536 = vmul.f32 %v356, %v1904
      %v2537 = vmul.f32 %v357, %v1914
      %v2538 = vmul.f32 %v358, %v1924
      %v2539 = vmul.f32 %v359, %v1934
      %v2540 = vmul.f32 %v360, %v1944
      %v2541 = vmul.f32 %v361, %v1954
      %v2542 = vmul.f32 %v362, %v1964
      %v2543 = vmul.f32 %v363, %v1974
      %v2544 = vmul.f32 %v364, %v1984
      %v2545 = vmul.f32 %v365, %v1994
      %v2546 = vmul.f32 %v366, %v2004
      %v2547 = vmul.f32 %v367, %v2014
      %v2548 = vmul.f32 %v368, %v2024
      %v2549 = vmul.f32 %v369, %v2034
      %v2550 = vmul.f32 %v370, %v2044
      %v2551 = vmul.f32 %v371, %v2054
      %v2552 = vmul.f32 %v372, %v2064
      %v2553 = vmul.f32 %v373, %v2074
      %v2554 = vmul.f32 %v374, %v2084
      %v2555 = vmul.f32 %v375, %v2094
      %v2556 = vmul.f32 %v376, %v2104
      %v2557 = vmul.f32 %v377, %v2114
      %v2558 = vmul.f32 %v378, %v2124
      %v2559 = vmul.f32 %v379, %v2134
      %v2560 = vmul.f32 %v380, %v2144
      %v2561 = vmul.f32 %v381, %v2154
      %v2562 = vmul.f32 %v382, %v2164
      %v2563 = vmul.f32 %v383, %v2174
      %v2564 = vmul.f32 %v384, %v2184
      %v2565 = vmul.f32 %v385, %v2194
      %v2566 = vmul.f32 %v386, %v2204
      %v2567 = vmul.f32 %v387, %v2214
      %v2568 = vmul.f32 %v388, %v2224
      %v2569 = vmul.f32 %v389, %v2234
      %v2570 = vmul.f32 %v390, %v2244
      %v2571 = vmul.f32 %v391, %v2254
      %v2572 = vmul.f32 %v392, %v2264
      %v2573 = vmul.f32 %v393, %v2274
      %v2574 = vmul.f32 %v394, %v2284
      %v2575 = vmul.f32 %v395, %v2294
      %v2576 = vmul.f32 %v396, %v2304
      %v2577 = vmul.f32 %v397, %v2314
      %v2578 = vmul.f32 %v398, %v2324
      %v2579 = vmul.f32 %v399, %v2334
      %v2580 = vmul.f32 %v400, %v2344
      %v2581 = vmul.f32 %v401, %v2354
      %v2582 = vmul.f32 %v402, %v2364
      %v2583 = vmul.f32 %v403, %v2374
      %v2584 = vmul.f32 %v404, %v2384
      %v2585 = vmul.f32 %v405, %v2394
      %v2586 = vmul.f32 %v406, %v2404
      %v2587 = vmul.f32 %v407, %v2414
      %v2588 = vmul.f32 %v408, %v2424
      %v2589 = vmul.f32 %v409, %v2434
      %v2590 = vmul.f32 %v410, %v2444
      %v2591 = vmul.f32 %v411, %v2454
      %v2592 = vmul.f32 %v412, %v2464
      %v2593 = vsel %vm415, %v2465, %v285
      %v2594 = vsel %vm415, %v2466, %v286
      %v2595 = vsel %vm415, %v2467, %v287
      %v2596 = vsel %vm415, %v2468, %v288
      %v2597 = vsel %vm415, %v2469, %v289
      %v2598 = vsel %vm415, %v2470, %v290
      %v2599 = vsel %vm415, %v2471, %v291
      %v2600 = vsel %vm415, %v2472, %v292
      %v2601 = vsel %vm415, %v2473, %v293
      %v2602 = vsel %vm415, %v2474, %v294
      %v2603 = vsel %vm415, %v2475, %v295
      %v2604 = vsel %vm415, %v2476, %v296
      %v2605 = vsel %vm415, %v2477, %v297
      %v2606 = vsel %vm415, %v2478, %v298
      %v2607 = vsel %vm415, %v2479, %v299
      %v2608 = vsel %vm415, %v2480, %v300
      %v2609 = vsel %vm415, %v2481, %v301
      %v2610 = vsel %vm415, %v2482, %v302
      %v2611 = vsel %vm415, %v2483, %v303
      %v2612 = vsel %vm415, %v2484, %v304
      %v2613 = vsel %vm415, %v2485, %v305
      %v2614 = vsel %vm415, %v2486, %v306
      %v2615 = vsel %vm415, %v2487, %v307
      %v2616 = vsel %vm415, %v2488, %v308
      %v2617 = vsel %vm415, %v2489, %v309
      %v2618 = vsel %vm415, %v2490, %v310
      %v2619 = vsel %vm415, %v2491, %v311
      %v2620 = vsel %vm415, %v2492, %v312
      %v2621 = vsel %vm415, %v2493, %v313
      %v2622 = vsel %vm415, %v2494, %v314
      %v2623 = vsel %vm415, %v2495, %v315
      %v2624 = vsel %vm415, %v2496, %v316
      %v2625 = vsel %vm415, %v2497, %v317
      %v2626 = vsel %vm415, %v2498, %v318
      %v2627 = vsel %vm415, %v2499, %v319
      %v2628 = vsel %vm415, %v2500, %v320
      %v2629 = vsel %vm415, %v2501, %v321
      %v2630 = vsel %vm415, %v2502, %v322
      %v2631 = vsel %vm415, %v2503, %v323
      %v2632 = vsel %vm415, %v2504, %v324
      %v2633 = vsel %vm415, %v2505, %v325
      %v2634 = vsel %vm415, %v2506, %v326
      %v2635 = vsel %vm415, %v2507, %v327
      %v2636 = vsel %vm415, %v2508, %v328
      %v2637 = vsel %vm415, %v2509, %v329
      %v2638 = vsel %vm415, %v2510, %v330
      %v2639 = vsel %vm415, %v2511, %v331
      %v2640 = vsel %vm415, %v2512, %v332
      %v2641 = vsel %vm415, %v2513, %v333
      %v2642 = vsel %vm415, %v2514, %v334
      %v2643 = vsel %vm415, %v2515, %v335
      %v2644 = vsel %vm415, %v2516, %v336
      %v2645 = vsel %vm415, %v2517, %v337
      %v2646 = vsel %vm415, %v2518, %v338
      %v2647 = vsel %vm415, %v2519, %v339
      %v2648 = vsel %vm415, %v2520, %v340
      %v2649 = vsel %vm415, %v2521, %v341
      %v2650 = vsel %vm415, %v2522, %v342
      %v2651 = vsel %vm415, %v2523, %v343
      %v2652 = vsel %vm415, %v2524, %v344
      %v2653 = vsel %vm415, %v2525, %v345
      %v2654 = vsel %vm415, %v2526, %v346
      %v2655 = vsel %vm415, %v2527, %v347
      %v2656 = vsel %vm415, %v2528, %v348
      %v2657 = vsel %vm415, %v2529, %v349
      %v2658 = vsel %vm415, %v2530, %v350
      %v2659 = vsel %vm415, %v2531, %v351
      %v2660 = vsel %vm415, %v2532, %v352
      %v2661 = vsel %vm415, %v2533, %v353
      %v2662 = vsel %vm415, %v2534, %v354
      %v2663 = vsel %vm415, %v2535, %v355
      %v2664 = vsel %vm415, %v2536, %v356
      %v2665 = vsel %vm415, %v2537, %v357
      %v2666 = vsel %vm415, %v2538, %v358
      %v2667 = vsel %vm415, %v2539, %v359
      %v2668 = vsel %vm415, %v2540, %v360
      %v2669 = vsel %vm415, %v2541, %v361
      %v2670 = vsel %vm415, %v2542, %v362
      %v2671 = vsel %vm415, %v2543, %v363
      %v2672 = vsel %vm415, %v2544, %v364
      %v2673 = vsel %vm415, %v2545, %v365
      %v2674 = vsel %vm415, %v2546, %v366
      %v2675 = vsel %vm415, %v2547, %v367
      %v2676 = vsel %vm415, %v2548, %v368
      %v2677 = vsel %vm415, %v2549, %v369
      %v2678 = vsel %vm415, %v2550, %v370
      %v2679 = vsel %vm415, %v2551, %v371
      %v2680 = vsel %vm415, %v2552, %v372
      %v2681 = vsel %vm415, %v2553, %v373
      %v2682 = vsel %vm415, %v2554, %v374
      %v2683 = vsel %vm415, %v2555, %v375
      %v2684 = vsel %vm415, %v2556, %v376
      %v2685 = vsel %vm415, %v2557, %v377
      %v2686 = vsel %vm415, %v2558, %v378
      %v2687 = vsel %vm415, %v2559, %v379
      %v2688 = vsel %vm415, %v2560, %v380
      %v2689 = vsel %vm415, %v2561, %v381
      %v2690 = vsel %vm415, %v2562, %v382
      %v2691 = vsel %vm415, %v2563, %v383
      %v2692 = vsel %vm415, %v2564, %v384
      %v2693 = vsel %vm415, %v2565, %v385
      %v2694 = vsel %vm415, %v2566, %v386
      %v2695 = vsel %vm415, %v2567, %v387
      %v2696 = vsel %vm415, %v2568, %v388
      %v2697 = vsel %vm415, %v2569, %v389
      %v2698 = vsel %vm415, %v2570, %v390
      %v2699 = vsel %vm415, %v2571, %v391
      %v2700 = vsel %vm415, %v2572, %v392
      %v2701 = vsel %vm415, %v2573, %v393
      %v2702 = vsel %vm415, %v2574, %v394
      %v2703 = vsel %vm415, %v2575, %v395
      %v2704 = vsel %vm415, %v2576, %v396
      %v2705 = vsel %vm415, %v2577, %v397
      %v2706 = vsel %vm415, %v2578, %v398
      %v2707 = vsel %vm415, %v2579, %v399
      %v2708 = vsel %vm415, %v2580, %v400
      %v2709 = vsel %vm415, %v2581, %v401
      %v2710 = vsel %vm415, %v2582, %v402
      %v2711 = vsel %vm415, %v2583, %v403
      %v2712 = vsel %vm415, %v2584, %v404
      %v2713 = vsel %vm415, %v2585, %v405
      %v2714 = vsel %vm415, %v2586, %v406
      %v2715 = vsel %vm415, %v2587, %v407
      %v2716 = vsel %vm415, %v2588, %v408
      %v2717 = vsel %vm415, %v2589, %v409
      %v2718 = vsel %vm415, %v2590, %v410
      %v2719 = vsel %vm415, %v2591, %v411
      %v2720 = vsel %vm415, %v2592, %v412
      %v2721 = vpack.c.bf16 %v2594, %v2593
      %v2722 = vpack.c.bf16 %v2596, %v2595
      %v2723 = vpack.c.bf16 %v2598, %v2597
      %v2724 = vpack.c.bf16 %v2600, %v2599
      %v2725 = vpack.c.bf16 %v2602, %v2601
      %v2726 = vpack.c.bf16 %v2604, %v2603
      %v2727 = vpack.c.bf16 %v2606, %v2605
      %v2728 = vpack.c.bf16 %v2608, %v2607
      %v2729 = vpack.c.bf16 %v2610, %v2609
      %v2730 = vpack.c.bf16 %v2612, %v2611
      %v2731 = vpack.c.bf16 %v2614, %v2613
      %v2732 = vpack.c.bf16 %v2616, %v2615
      %v2733 = vpack.c.bf16 %v2618, %v2617
      %v2734 = vpack.c.bf16 %v2620, %v2619
      %v2735 = vpack.c.bf16 %v2622, %v2621
      %v2736 = vpack.c.bf16 %v2624, %v2623
      %v2737 = vpack.c.bf16 %v2626, %v2625
      %v2738 = vpack.c.bf16 %v2628, %v2627
      %v2739 = vpack.c.bf16 %v2630, %v2629
      %v2740 = vpack.c.bf16 %v2632, %v2631
      %v2741 = vpack.c.bf16 %v2634, %v2633
      %v2742 = vpack.c.bf16 %v2636, %v2635
      %v2743 = vpack.c.bf16 %v2638, %v2637
      %v2744 = vpack.c.bf16 %v2640, %v2639
      %v2745 = vpack.c.bf16 %v2642, %v2641
      %v2746 = vpack.c.bf16 %v2644, %v2643
      %v2747 = vpack.c.bf16 %v2646, %v2645
      %v2748 = vpack.c.bf16 %v2648, %v2647
      %v2749 = vpack.c.bf16 %v2650, %v2649
      %v2750 = vpack.c.bf16 %v2652, %v2651
      %v2751 = vpack.c.bf16 %v2654, %v2653
      %v2752 = vpack.c.bf16 %v2656, %v2655
      %v2753 = vpack.c.bf16 %v2658, %v2657
      %v2754 = vpack.c.bf16 %v2660, %v2659
      %v2755 = vpack.c.bf16 %v2662, %v2661
      %v2756 = vpack.c.bf16 %v2664, %v2663
      %v2757 = vpack.c.bf16 %v2666, %v2665
      %v2758 = vpack.c.bf16 %v2668, %v2667
      %v2759 = vpack.c.bf16 %v2670, %v2669
      %v2760 = vpack.c.bf16 %v2672, %v2671
      %v2761 = vpack.c.bf16 %v2674, %v2673
      %v2762 = vpack.c.bf16 %v2676, %v2675
      %v2763 = vpack.c.bf16 %v2678, %v2677
      %v2764 = vpack.c.bf16 %v2680, %v2679
      %v2765 = vpack.c.bf16 %v2682, %v2681
      %v2766 = vpack.c.bf16 %v2684, %v2683
      %v2767 = vpack.c.bf16 %v2686, %v2685
      %v2768 = vpack.c.bf16 %v2688, %v2687
      %v2769 = vpack.c.bf16 %v2690, %v2689
      %v2770 = vpack.c.bf16 %v2692, %v2691
      %v2771 = vpack.c.bf16 %v2694, %v2693
      %v2772 = vpack.c.bf16 %v2696, %v2695
      %v2773 = vpack.c.bf16 %v2698, %v2697
      %v2774 = vpack.c.bf16 %v2700, %v2699
      %v2775 = vpack.c.bf16 %v2702, %v2701
      %v2776 = vpack.c.bf16 %v2704, %v2703
      %v2777 = vpack.c.bf16 %v2706, %v2705
      %v2778 = vpack.c.bf16 %v2708, %v2707
      %v2779 = vpack.c.bf16 %v2710, %v2709
      %v2780 = vpack.c.bf16 %v2712, %v2711
      %v2781 = vpack.c.bf16 %v2714, %v2713
      %v2782 = vpack.c.bf16 %v2716, %v2715
      %v2783 = vpack.c.bf16 %v2718, %v2717
      %v2784 = vpack.c.bf16 %v2720, %v2719
      %v2785 = vld [vmem:[%s1] sm:$0xf]
      %v2786 = vld [vmem:[%s1 + $0x4] sm:$0xf]
      %v2787 = vld [vmem:[%s1 + $0x8] sm:$0x7]
      %v2788 = vld [vmem:[%s2] sm:$0x1]
      %v2790 = vperm.slane %v2788, 0
      %v2795 = vunpack.c.l.b16 %v2785
      %v2796 = vunpack.c.l.b16 %v2786
      %v2797 = vunpack.c.l.b16 %v2787
      %v2798 = vpack.c.b16 %v2796, %v2795
      %v2799 = vpack.c.b16 %v2797, %v2797
      %v2802 = vsel %vm672, %v2721, 0
      %v2805 = vsel %vm672, %v2722, 0
      %v2808 = vsel %vm672, %v2723, 0
      %v2811 = vsel %vm672, %v2724, 0
      %v2814 = vsel %vm672, %v2725, 0
      %v2817 = vsel %vm672, %v2726, 0
      %v2820 = vsel %vm672, %v2727, 0
      %v2823 = vsel %vm672, %v2728, 0
      %v2826 = vsel %vm672, %v2729, 0
      %v2829 = vsel %vm672, %v2730, 0
      %v2832 = vsel %vm672, %v2731, 0
      %v2835 = vsel %vm672, %v2732, 0
      %v2838 = vsel %vm672, %v2733, 0
      %v2841 = vsel %vm672, %v2734, 0
      %v2844 = vsel %vm672, %v2735, 0
      %v2847 = vsel %vm672, %v2736, 0
      %v2850 = vsel %vm672, %v2737, 0
      %v2853 = vsel %vm672, %v2738, 0
      %v2856 = vsel %vm672, %v2739, 0
      %v2859 = vsel %vm672, %v2740, 0
      %v2862 = vsel %vm672, %v2741, 0
      %v2865 = vsel %vm672, %v2742, 0
      %v2868 = vsel %vm672, %v2743, 0
      %v2871 = vsel %vm672, %v2744, 0
      %v2874 = vsel %vm672, %v2745, 0
      %v2877 = vsel %vm672, %v2746, 0
      %v2880 = vsel %vm672, %v2747, 0
      %v2883 = vsel %vm672, %v2748, 0
      %v2886 = vsel %vm672, %v2749, 0
      %v2889 = vsel %vm672, %v2750, 0
      %v2892 = vsel %vm672, %v2751, 0
      %v2895 = vsel %vm672, %v2752, 0
      %v2898 = vsel %vm672, %v2753, 0
      %v2901 = vsel %vm672, %v2754, 0
      %v2904 = vsel %vm672, %v2755, 0
      %v2907 = vsel %vm672, %v2756, 0
      %v2910 = vsel %vm672, %v2757, 0
      %v2913 = vsel %vm672, %v2758, 0
      %v2916 = vsel %vm672, %v2759, 0
      %v2919 = vsel %vm672, %v2760, 0
      %v2922 = vsel %vm672, %v2761, 0
      %v2925 = vsel %vm672, %v2762, 0
      %v2928 = vsel %vm672, %v2763, 0
      %v2931 = vsel %vm672, %v2764, 0
      %v2934 = vsel %vm672, %v2765, 0
      %v2937 = vsel %vm672, %v2766, 0
      %v2940 = vsel %vm672, %v2767, 0
      %v2943 = vsel %vm672, %v2768, 0
      %v2946 = vsel %vm672, %v2769, 0
      %v2949 = vsel %vm672, %v2770, 0
      %v2952 = vsel %vm672, %v2771, 0
      %v2955 = vsel %vm672, %v2772, 0
      %v2958 = vsel %vm672, %v2773, 0
      %v2961 = vsel %vm672, %v2774, 0
      %v2964 = vsel %vm672, %v2775, 0
      %v2967 = vsel %vm672, %v2776, 0
      %v2970 = vsel %vm672, %v2777, 0
      %v2973 = vsel %vm672, %v2778, 0
      %v2976 = vsel %vm672, %v2779, 0
      %v2979 = vsel %vm672, %v2780, 0
      %v2982 = vsel %vm672, %v2781, 0
      %v2985 = vsel %vm672, %v2782, 0
      %v2988 = vsel %vm672, %v2783, 0
      %v2991 = vsel %vm672, %v2784, 0
      %vm2993 = vcmask 1042432
      %v2995 = vsel %vm2993, %v2799, 0
      %2997 = vmatpush.bf16.msra.mxu0 0
      %2998 = vmatpush.bf16.msra.mxu0 0
      %2999 = vmatpush.bf16.msra.mxu0 0
      %3000 = vmatpush.bf16.msra.mxu0 0
      %3001 = vmatpush.bf16.msra.mxu0 0
      %3002 = vmatpush.bf16.msra.mxu0 0
      %3003 = vmatpush.bf16.msra.mxu0 %v2995
      %3004 = vmatpush.bf16.msra.mxu0 %v2798
      %3005 = vmatmul.bf16.gmra.mxu0 %v2802
      %v3006 = vpop.f32.mrf.mxu0
      %v3007 = vadd.f32 %v2790, %v3006
      %v3008 = vpop.f32.mrf.mxu0
      %v3009 = vadd.f32 %v2790, %v3008
      %3010 = vmatmul.bf16.gmra.mxu0 %v2805
      %v3011 = vpop.f32.mrf.mxu0
      %v3012 = vadd.f32 %v2790, %v3011
      %v3013 = vpop.f32.mrf.mxu0
      %v3014 = vadd.f32 %v2790, %v3013
      %3015 = vmatmul.bf16.gmra.mxu0 %v2808
      %v3016 = vpop.f32.mrf.mxu0
      %v3017 = vadd.f32 %v2790, %v3016
      %v3018 = vpop.f32.mrf.mxu0
      %v3019 = vadd.f32 %v2790, %v3018
      %3020 = vmatmul.bf16.gmra.mxu0 %v2811
      %v3021 = vpop.f32.mrf.mxu0
      %v3022 = vadd.f32 %v2790, %v3021
      %v3023 = vpop.f32.mrf.mxu0
      %v3024 = vadd.f32 %v2790, %v3023
      %3025 = vmatmul.bf16.gmra.mxu0 %v2814
      %v3026 = vpop.f32.mrf.mxu0
      %v3027 = vadd.f32 %v2790, %v3026
      %v3028 = vpop.f32.mrf.mxu0
      %v3029 = vadd.f32 %v2790, %v3028
      %3030 = vmatmul.bf16.gmra.mxu0 %v2817
      %v3031 = vpop.f32.mrf.mxu0
      %v3032 = vadd.f32 %v2790, %v3031
      %v3033 = vpop.f32.mrf.mxu0
      %v3034 = vadd.f32 %v2790, %v3033
      %3035 = vmatmul.bf16.gmra.mxu0 %v2820
      %v3036 = vpop.f32.mrf.mxu0
      %v3037 = vadd.f32 %v2790, %v3036
      %v3038 = vpop.f32.mrf.mxu0
      %v3039 = vadd.f32 %v2790, %v3038
      %3040 = vmatmul.bf16.gmra.mxu0 %v2823
      %v3041 = vpop.f32.mrf.mxu0
      %v3042 = vadd.f32 %v2790, %v3041
      %v3043 = vpop.f32.mrf.mxu0
      %v3044 = vadd.f32 %v2790, %v3043
      %3045 = vmatmul.bf16.gmra.mxu0 %v2826
      %v3046 = vpop.f32.mrf.mxu0
      %v3047 = vadd.f32 %v2790, %v3046
      %v3048 = vpop.f32.mrf.mxu0
      %v3049 = vadd.f32 %v2790, %v3048
      %3050 = vmatmul.bf16.gmra.mxu0 %v2829
      %v3051 = vpop.f32.mrf.mxu0
      %v3052 = vadd.f32 %v2790, %v3051
      %v3053 = vpop.f32.mrf.mxu0
      %v3054 = vadd.f32 %v2790, %v3053
      %3055 = vmatmul.bf16.gmra.mxu0 %v2832
      %v3056 = vpop.f32.mrf.mxu0
      %v3057 = vadd.f32 %v2790, %v3056
      %v3058 = vpop.f32.mrf.mxu0
      %v3059 = vadd.f32 %v2790, %v3058
      %3060 = vmatmul.bf16.gmra.mxu0 %v2835
      %v3061 = vpop.f32.mrf.mxu0
      %v3062 = vadd.f32 %v2790, %v3061
      %v3063 = vpop.f32.mrf.mxu0
      %v3064 = vadd.f32 %v2790, %v3063
      %3065 = vmatmul.bf16.gmra.mxu0 %v2838
      %v3066 = vpop.f32.mrf.mxu0
      %v3067 = vadd.f32 %v2790, %v3066
      %v3068 = vpop.f32.mrf.mxu0
      %v3069 = vadd.f32 %v2790, %v3068
      %3070 = vmatmul.bf16.gmra.mxu0 %v2841
      %v3071 = vpop.f32.mrf.mxu0
      %v3072 = vadd.f32 %v2790, %v3071
      %v3073 = vpop.f32.mrf.mxu0
      %v3074 = vadd.f32 %v2790, %v3073
      %3075 = vmatmul.bf16.gmra.mxu0 %v2844
      %v3076 = vpop.f32.mrf.mxu0
      %v3077 = vadd.f32 %v2790, %v3076
      %v3078 = vpop.f32.mrf.mxu0
      %v3079 = vadd.f32 %v2790, %v3078
      %3080 = vmatmul.bf16.gmra.mxu0 %v2847
      %v3081 = vpop.f32.mrf.mxu0
      %v3082 = vadd.f32 %v2790, %v3081
      %v3083 = vpop.f32.mrf.mxu0
      %v3084 = vadd.f32 %v2790, %v3083
      %3085 = vmatmul.bf16.gmra.mxu0 %v2850
      %v3086 = vpop.f32.mrf.mxu0
      %v3087 = vadd.f32 %v2790, %v3086
      %v3088 = vpop.f32.mrf.mxu0
      %v3089 = vadd.f32 %v2790, %v3088
      %3090 = vmatmul.bf16.gmra.mxu0 %v2853
      %v3091 = vpop.f32.mrf.mxu0
      %v3092 = vadd.f32 %v2790, %v3091
      %v3093 = vpop.f32.mrf.mxu0
      %v3094 = vadd.f32 %v2790, %v3093
      %3095 = vmatmul.bf16.gmra.mxu0 %v2856
      %v3096 = vpop.f32.mrf.mxu0
      %v3097 = vadd.f32 %v2790, %v3096
      %v3098 = vpop.f32.mrf.mxu0
      %v3099 = vadd.f32 %v2790, %v3098
      %3100 = vmatmul.bf16.gmra.mxu0 %v2859
      %v3101 = vpop.f32.mrf.mxu0
      %v3102 = vadd.f32 %v2790, %v3101
      %v3103 = vpop.f32.mrf.mxu0
      %v3104 = vadd.f32 %v2790, %v3103
      %3105 = vmatmul.bf16.gmra.mxu0 %v2862
      %v3106 = vpop.f32.mrf.mxu0
      %v3107 = vadd.f32 %v2790, %v3106
      %v3108 = vpop.f32.mrf.mxu0
      %v3109 = vadd.f32 %v2790, %v3108
      %3110 = vmatmul.bf16.gmra.mxu0 %v2865
      %v3111 = vpop.f32.mrf.mxu0
      %v3112 = vadd.f32 %v2790, %v3111
      %v3113 = vpop.f32.mrf.mxu0
      %v3114 = vadd.f32 %v2790, %v3113
      %3115 = vmatmul.bf16.gmra.mxu0 %v2868
      %v3116 = vpop.f32.mrf.mxu0
      %v3117 = vadd.f32 %v2790, %v3116
      %v3118 = vpop.f32.mrf.mxu0
      %v3119 = vadd.f32 %v2790, %v3118
      %3120 = vmatmul.bf16.gmra.mxu0 %v2871
      %v3121 = vpop.f32.mrf.mxu0
      %v3122 = vadd.f32 %v2790, %v3121
      %v3123 = vpop.f32.mrf.mxu0
      %v3124 = vadd.f32 %v2790, %v3123
      %3125 = vmatmul.bf16.gmra.mxu0 %v2874
      %v3126 = vpop.f32.mrf.mxu0
      %v3127 = vadd.f32 %v2790, %v3126
      %v3128 = vpop.f32.mrf.mxu0
      %v3129 = vadd.f32 %v2790, %v3128
      %3130 = vmatmul.bf16.gmra.mxu0 %v2877
      %v3131 = vpop.f32.mrf.mxu0
      %v3132 = vadd.f32 %v2790, %v3131
      %v3133 = vpop.f32.mrf.mxu0
      %v3134 = vadd.f32 %v2790, %v3133
      %3135 = vmatmul.bf16.gmra.mxu0 %v2880
      %v3136 = vpop.f32.mrf.mxu0
      %v3137 = vadd.f32 %v2790, %v3136
      %v3138 = vpop.f32.mrf.mxu0
      %v3139 = vadd.f32 %v2790, %v3138
      %3140 = vmatmul.bf16.gmra.mxu0 %v2883
      %v3141 = vpop.f32.mrf.mxu0
      %v3142 = vadd.f32 %v2790, %v3141
      %v3143 = vpop.f32.mrf.mxu0
      %v3144 = vadd.f32 %v2790, %v3143
      %3145 = vmatmul.bf16.gmra.mxu0 %v2886
      %v3146 = vpop.f32.mrf.mxu0
      %v3147 = vadd.f32 %v2790, %v3146
      %v3148 = vpop.f32.mrf.mxu0
      %v3149 = vadd.f32 %v2790, %v3148
      %3150 = vmatmul.bf16.gmra.mxu0 %v2889
      %v3151 = vpop.f32.mrf.mxu0
      %v3152 = vadd.f32 %v2790, %v3151
      %v3153 = vpop.f32.mrf.mxu0
      %v3154 = vadd.f32 %v2790, %v3153
      %3155 = vmatmul.bf16.gmra.mxu0 %v2892
      %v3156 = vpop.f32.mrf.mxu0
      %v3157 = vadd.f32 %v2790, %v3156
      %v3158 = vpop.f32.mrf.mxu0
      %v3159 = vadd.f32 %v2790, %v3158
      %3160 = vmatmul.bf16.gmra.mxu0 %v2895
      %v3161 = vpop.f32.mrf.mxu0
      %v3162 = vadd.f32 %v2790, %v3161
      %v3163 = vpop.f32.mrf.mxu0
      %v3164 = vadd.f32 %v2790, %v3163
      %3165 = vmatmul.bf16.gmra.mxu0 %v2898
      %v3166 = vpop.f32.mrf.mxu0
      %v3167 = vadd.f32 %v2790, %v3166
      %v3168 = vpop.f32.mrf.mxu0
      %v3169 = vadd.f32 %v2790, %v3168
      %3170 = vmatmul.bf16.gmra.mxu0 %v2901
      %v3171 = vpop.f32.mrf.mxu0
      %v3172 = vadd.f32 %v2790, %v3171
      %v3173 = vpop.f32.mrf.mxu0
      %v3174 = vadd.f32 %v2790, %v3173
      %3175 = vmatmul.bf16.gmra.mxu0 %v2904
      %v3176 = vpop.f32.mrf.mxu0
      %v3177 = vadd.f32 %v2790, %v3176
      %v3178 = vpop.f32.mrf.mxu0
      %v3179 = vadd.f32 %v2790, %v3178
      %3180 = vmatmul.bf16.gmra.mxu0 %v2907
      %v3181 = vpop.f32.mrf.mxu0
      %v3182 = vadd.f32 %v2790, %v3181
      %v3183 = vpop.f32.mrf.mxu0
      %v3184 = vadd.f32 %v2790, %v3183
      %3185 = vmatmul.bf16.gmra.mxu0 %v2910
      %v3186 = vpop.f32.mrf.mxu0
      %v3187 = vadd.f32 %v2790, %v3186
      %v3188 = vpop.f32.mrf.mxu0
      %v3189 = vadd.f32 %v2790, %v3188
      %3190 = vmatmul.bf16.gmra.mxu0 %v2913
      %v3191 = vpop.f32.mrf.mxu0
      %v3192 = vadd.f32 %v2790, %v3191
      %v3193 = vpop.f32.mrf.mxu0
      %v3194 = vadd.f32 %v2790, %v3193
      %3195 = vmatmul.bf16.gmra.mxu0 %v2916
      %v3196 = vpop.f32.mrf.mxu0
      %v3197 = vadd.f32 %v2790, %v3196
      %v3198 = vpop.f32.mrf.mxu0
      %v3199 = vadd.f32 %v2790, %v3198
      %3200 = vmatmul.bf16.gmra.mxu0 %v2919
      %v3201 = vpop.f32.mrf.mxu0
      %v3202 = vadd.f32 %v2790, %v3201
      %v3203 = vpop.f32.mrf.mxu0
      %v3204 = vadd.f32 %v2790, %v3203
      %3205 = vmatmul.bf16.gmra.mxu0 %v2922
      %v3206 = vpop.f32.mrf.mxu0
      %v3207 = vadd.f32 %v2790, %v3206
      %v3208 = vpop.f32.mrf.mxu0
      %v3209 = vadd.f32 %v2790, %v3208
      %3210 = vmatmul.bf16.gmra.mxu0 %v2925
      %v3211 = vpop.f32.mrf.mxu0
      %v3212 = vadd.f32 %v2790, %v3211
      %v3213 = vpop.f32.mrf.mxu0
      %v3214 = vadd.f32 %v2790, %v3213
      %3215 = vmatmul.bf16.gmra.mxu0 %v2928
      %v3216 = vpop.f32.mrf.mxu0
      %v3217 = vadd.f32 %v2790, %v3216
      %v3218 = vpop.f32.mrf.mxu0
      %v3219 = vadd.f32 %v2790, %v3218
      %3220 = vmatmul.bf16.gmra.mxu0 %v2931
      %v3221 = vpop.f32.mrf.mxu0
      %v3222 = vadd.f32 %v2790, %v3221
      %v3223 = vpop.f32.mrf.mxu0
      %v3224 = vadd.f32 %v2790, %v3223
      %3225 = vmatmul.bf16.gmra.mxu0 %v2934
      %v3226 = vpop.f32.mrf.mxu0
      %v3227 = vadd.f32 %v2790, %v3226
      %v3228 = vpop.f32.mrf.mxu0
      %v3229 = vadd.f32 %v2790, %v3228
      %3230 = vmatmul.bf16.gmra.mxu0 %v2937
      %v3231 = vpop.f32.mrf.mxu0
      %v3232 = vadd.f32 %v2790, %v3231
      %v3233 = vpop.f32.mrf.mxu0
      %v3234 = vadd.f32 %v2790, %v3233
      %3235 = vmatmul.bf16.gmra.mxu0 %v2940
      %v3236 = vpop.f32.mrf.mxu0
      %v3237 = vadd.f32 %v2790, %v3236
      %v3238 = vpop.f32.mrf.mxu0
      %v3239 = vadd.f32 %v2790, %v3238
      %3240 = vmatmul.bf16.gmra.mxu0 %v2943
      %v3241 = vpop.f32.mrf.mxu0
      %v3242 = vadd.f32 %v2790, %v3241
      %v3243 = vpop.f32.mrf.mxu0
      %v3244 = vadd.f32 %v2790, %v3243
      %3245 = vmatmul.bf16.gmra.mxu0 %v2946
      %v3246 = vpop.f32.mrf.mxu0
      %v3247 = vadd.f32 %v2790, %v3246
      %v3248 = vpop.f32.mrf.mxu0
      %v3249 = vadd.f32 %v2790, %v3248
      %3250 = vmatmul.bf16.gmra.mxu0 %v2949
      %v3251 = vpop.f32.mrf.mxu0
      %v3252 = vadd.f32 %v2790, %v3251
      %v3253 = vpop.f32.mrf.mxu0
      %v3254 = vadd.f32 %v2790, %v3253
      %3255 = vmatmul.bf16.gmra.mxu0 %v2952
      %v3256 = vpop.f32.mrf.mxu0
      %v3257 = vadd.f32 %v2790, %v3256
      %v3258 = vpop.f32.mrf.mxu0
      %v3259 = vadd.f32 %v2790, %v3258
      %3260 = vmatmul.bf16.gmra.mxu0 %v2955
      %v3261 = vpop.f32.mrf.mxu0
      %v3262 = vadd.f32 %v2790, %v3261
      %v3263 = vpop.f32.mrf.mxu0
      %v3264 = vadd.f32 %v2790, %v3263
      %3265 = vmatmul.bf16.gmra.mxu0 %v2958
      %v3266 = vpop.f32.mrf.mxu0
      %v3267 = vadd.f32 %v2790, %v3266
      %v3268 = vpop.f32.mrf.mxu0
      %v3269 = vadd.f32 %v2790, %v3268
      %3270 = vmatmul.bf16.gmra.mxu0 %v2961
      %v3271 = vpop.f32.mrf.mxu0
      %v3272 = vadd.f32 %v2790, %v3271
      %v3273 = vpop.f32.mrf.mxu0
      %v3274 = vadd.f32 %v2790, %v3273
      %3275 = vmatmul.bf16.gmra.mxu0 %v2964
      %v3276 = vpop.f32.mrf.mxu0
      %v3277 = vadd.f32 %v2790, %v3276
      %v3278 = vpop.f32.mrf.mxu0
      %v3279 = vadd.f32 %v2790, %v3278
      %3280 = vmatmul.bf16.gmra.mxu0 %v2967
      %v3281 = vpop.f32.mrf.mxu0
      %v3282 = vadd.f32 %v2790, %v3281
      %v3283 = vpop.f32.mrf.mxu0
      %v3284 = vadd.f32 %v2790, %v3283
      %3285 = vmatmul.bf16.gmra.mxu0 %v2970
      %v3286 = vpop.f32.mrf.mxu0
      %v3287 = vadd.f32 %v2790, %v3286
      %v3288 = vpop.f32.mrf.mxu0
      %v3289 = vadd.f32 %v2790, %v3288
      %3290 = vmatmul.bf16.gmra.mxu0 %v2973
      %v3291 = vpop.f32.mrf.mxu0
      %v3292 = vadd.f32 %v2790, %v3291
      %v3293 = vpop.f32.mrf.mxu0
      %v3294 = vadd.f32 %v2790, %v3293
      %3295 = vmatmul.bf16.gmra.mxu0 %v2976
      %v3296 = vpop.f32.mrf.mxu0
      %v3297 = vadd.f32 %v2790, %v3296
      %v3298 = vpop.f32.mrf.mxu0
      %v3299 = vadd.f32 %v2790, %v3298
      %3300 = vmatmul.bf16.gmra.mxu0 %v2979
      %v3301 = vpop.f32.mrf.mxu0
      %v3302 = vadd.f32 %v2790, %v3301
      %v3303 = vpop.f32.mrf.mxu0
      %v3304 = vadd.f32 %v2790, %v3303
      %3305 = vmatmul.bf16.gmra.mxu0 %v2982
      %v3306 = vpop.f32.mrf.mxu0
      %v3307 = vadd.f32 %v2790, %v3306
      %v3308 = vpop.f32.mrf.mxu0
      %v3309 = vadd.f32 %v2790, %v3308
      %3310 = vmatmul.bf16.gmra.mxu0 %v2985
      %v3311 = vpop.f32.mrf.mxu0
      %v3312 = vadd.f32 %v2790, %v3311
      %v3313 = vpop.f32.mrf.mxu0
      %v3314 = vadd.f32 %v2790, %v3313
      %3315 = vmatmul.bf16.gmra.mxu0 %v2988
      %v3316 = vpop.f32.mrf.mxu0
      %v3317 = vadd.f32 %v2790, %v3316
      %v3318 = vpop.f32.mrf.mxu0
      %v3319 = vadd.f32 %v2790, %v3318
      %3320 = vmatmul.bf16.gmra.mxu0 %v2991
      %v3321 = vpop.f32.mrf.mxu0
      %v3322 = vadd.f32 %v2790, %v3321
      %v3323 = vpop.f32.mrf.mxu0
      %v3324 = vadd.f32 %v2790, %v3323
      %3325 = vdwg.mxu0
      %vm3326 = vcmp.ge.f32.partialorder %v3007, 0.0
      %vm3327 = vcmp.ge.f32.partialorder %v3009, 0.0
      %vm3328 = vcmp.ge.f32.partialorder %v3012, 0.0
      %vm3329 = vcmp.ge.f32.partialorder %v3014, 0.0
      %vm3330 = vcmp.ge.f32.partialorder %v3017, 0.0
      %vm3331 = vcmp.ge.f32.partialorder %v3019, 0.0
      %vm3332 = vcmp.ge.f32.partialorder %v3022, 0.0
      %vm3333 = vcmp.ge.f32.partialorder %v3024, 0.0
      %vm3334 = vcmp.ge.f32.partialorder %v3027, 0.0
      %vm3335 = vcmp.ge.f32.partialorder %v3029, 0.0
      %vm3336 = vcmp.ge.f32.partialorder %v3032, 0.0
      %vm3337 = vcmp.ge.f32.partialorder %v3034, 0.0
      %vm3338 = vcmp.ge.f32.partialorder %v3037, 0.0
      %vm3339 = vcmp.ge.f32.partialorder %v3039, 0.0
      %vm3340 = vcmp.ge.f32.partialorder %v3042, 0.0
      %vm3341 = vcmp.ge.f32.partialorder %v3044, 0.0
      %vm3342 = vcmp.ge.f32.partialorder %v3047, 0.0
      %vm3343 = vcmp.ge.f32.partialorder %v3049, 0.0
      %vm3344 = vcmp.ge.f32.partialorder %v3052, 0.0
      %vm3345 = vcmp.ge.f32.partialorder %v3054, 0.0
      %vm3346 = vcmp.ge.f32.partialorder %v3057, 0.0
      %vm3347 = vcmp.ge.f32.partialorder %v3059, 0.0
      %vm3348 = vcmp.ge.f32.partialorder %v3062, 0.0
      %vm3349 = vcmp.ge.f32.partialorder %v3064, 0.0
      %vm3350 = vcmp.ge.f32.partialorder %v3067, 0.0
      %vm3351 = vcmp.ge.f32.partialorder %v3069, 0.0
      %vm3352 = vcmp.ge.f32.partialorder %v3072, 0.0
      %vm3353 = vcmp.ge.f32.partialorder %v3074, 0.0
      %vm3354 = vcmp.ge.f32.partialorder %v3077, 0.0
      %vm3355 = vcmp.ge.f32.partialorder %v3079, 0.0
      %vm3356 = vcmp.ge.f32.partialorder %v3082, 0.0
      %vm3357 = vcmp.ge.f32.partialorder %v3084, 0.0
      %vm3358 = vcmp.ge.f32.partialorder %v3087, 0.0
      %vm3359 = vcmp.ge.f32.partialorder %v3089, 0.0
      %vm3360 = vcmp.ge.f32.partialorder %v3092, 0.0
      %vm3361 = vcmp.ge.f32.partialorder %v3094, 0.0
      %vm3362 = vcmp.ge.f32.partialorder %v3097, 0.0
      %vm3363 = vcmp.ge.f32.partialorder %v3099, 0.0
      %vm3364 = vcmp.ge.f32.partialorder %v3102, 0.0
      %vm3365 = vcmp.ge.f32.partialorder %v3104, 0.0
      %vm3366 = vcmp.ge.f32.partialorder %v3107, 0.0
      %vm3367 = vcmp.ge.f32.partialorder %v3109, 0.0
      %vm3368 = vcmp.ge.f32.partialorder %v3112, 0.0
      %vm3369 = vcmp.ge.f32.partialorder %v3114, 0.0
      %vm3370 = vcmp.ge.f32.partialorder %v3117, 0.0
      %vm3371 = vcmp.ge.f32.partialorder %v3119, 0.0
      %vm3372 = vcmp.ge.f32.partialorder %v3122, 0.0
      %vm3373 = vcmp.ge.f32.partialorder %v3124, 0.0
      %vm3374 = vcmp.ge.f32.partialorder %v3127, 0.0
      %vm3375 = vcmp.ge.f32.partialorder %v3129, 0.0
      %vm3376 = vcmp.ge.f32.partialorder %v3132, 0.0
      %vm3377 = vcmp.ge.f32.partialorder %v3134, 0.0
      %vm3378 = vcmp.ge.f32.partialorder %v3137, 0.0
      %vm3379 = vcmp.ge.f32.partialorder %v3139, 0.0
      %vm3380 = vcmp.ge.f32.partialorder %v3142, 0.0
      %vm3381 = vcmp.ge.f32.partialorder %v3144, 0.0
      %vm3382 = vcmp.ge.f32.partialorder %v3147, 0.0
      %vm3383 = vcmp.ge.f32.partialorder %v3149, 0.0
      %vm3384 = vcmp.ge.f32.partialorder %v3152, 0.0
      %vm3385 = vcmp.ge.f32.partialorder %v3154, 0.0
      %vm3386 = vcmp.ge.f32.partialorder %v3157, 0.0
      %vm3387 = vcmp.ge.f32.partialorder %v3159, 0.0
      %vm3388 = vcmp.ge.f32.partialorder %v3162, 0.0
      %vm3389 = vcmp.ge.f32.partialorder %v3164, 0.0
      %vm3390 = vcmp.ge.f32.partialorder %v3167, 0.0
      %vm3391 = vcmp.ge.f32.partialorder %v3169, 0.0
      %vm3392 = vcmp.ge.f32.partialorder %v3172, 0.0
      %vm3393 = vcmp.ge.f32.partialorder %v3174, 0.0
      %vm3394 = vcmp.ge.f32.partialorder %v3177, 0.0
      %vm3395 = vcmp.ge.f32.partialorder %v3179, 0.0
      %vm3396 = vcmp.ge.f32.partialorder %v3182, 0.0
      %vm3397 = vcmp.ge.f32.partialorder %v3184, 0.0
      %vm3398 = vcmp.ge.f32.partialorder %v3187, 0.0
      %vm3399 = vcmp.ge.f32.partialorder %v3189, 0.0
      %vm3400 = vcmp.ge.f32.partialorder %v3192, 0.0
      %vm3401 = vcmp.ge.f32.partialorder %v3194, 0.0
      %vm3402 = vcmp.ge.f32.partialorder %v3197, 0.0
      %vm3403 = vcmp.ge.f32.partialorder %v3199, 0.0
      %vm3404 = vcmp.ge.f32.partialorder %v3202, 0.0
      %vm3405 = vcmp.ge.f32.partialorder %v3204, 0.0
      %vm3406 = vcmp.ge.f32.partialorder %v3207, 0.0
      %vm3407 = vcmp.ge.f32.partialorder %v3209, 0.0
      %vm3408 = vcmp.ge.f32.partialorder %v3212, 0.0
      %vm3409 = vcmp.ge.f32.partialorder %v3214, 0.0
      %vm3410 = vcmp.ge.f32.partialorder %v3217, 0.0
      %vm3411 = vcmp.ge.f32.partialorder %v3219, 0.0
      %vm3412 = vcmp.ge.f32.partialorder %v3222, 0.0
      %vm3413 = vcmp.ge.f32.partialorder %v3224, 0.0
      %vm3414 = vcmp.ge.f32.partialorder %v3227, 0.0
      %vm3415 = vcmp.ge.f32.partialorder %v3229, 0.0
      %vm3416 = vcmp.ge.f32.partialorder %v3232, 0.0
      %vm3417 = vcmp.ge.f32.partialorder %v3234, 0.0
      %vm3418 = vcmp.ge.f32.partialorder %v3237, 0.0
      %vm3419 = vcmp.ge.f32.partialorder %v3239, 0.0
      %vm3420 = vcmp.ge.f32.partialorder %v3242, 0.0
      %vm3421 = vcmp.ge.f32.partialorder %v3244, 0.0
      %vm3422 = vcmp.ge.f32.partialorder %v3247, 0.0
      %vm3423 = vcmp.ge.f32.partialorder %v3249, 0.0
      %vm3424 = vcmp.ge.f32.partialorder %v3252, 0.0
      %vm3425 = vcmp.ge.f32.partialorder %v3254, 0.0
      %vm3426 = vcmp.ge.f32.partialorder %v3257, 0.0
      %vm3427 = vcmp.ge.f32.partialorder %v3259, 0.0
      %vm3428 = vcmp.ge.f32.partialorder %v3262, 0.0
      %vm3429 = vcmp.ge.f32.partialorder %v3264, 0.0
      %vm3430 = vcmp.ge.f32.partialorder %v3267, 0.0
      %vm3431 = vcmp.ge.f32.partialorder %v3269, 0.0
      %vm3432 = vcmp.ge.f32.partialorder %v3272, 0.0
      %vm3433 = vcmp.ge.f32.partialorder %v3274, 0.0
      %vm3434 = vcmp.ge.f32.partialorder %v3277, 0.0
      %vm3435 = vcmp.ge.f32.partialorder %v3279, 0.0
      %vm3436 = vcmp.ge.f32.partialorder %v3282, 0.0
      %vm3437 = vcmp.ge.f32.partialorder %v3284, 0.0
      %vm3438 = vcmp.ge.f32.partialorder %v3287, 0.0
      %vm3439 = vcmp.ge.f32.partialorder %v3289, 0.0
      %vm3440 = vcmp.ge.f32.partialorder %v3292, 0.0
      %vm3441 = vcmp.ge.f32.partialorder %v3294, 0.0
      %vm3442 = vcmp.ge.f32.partialorder %v3297, 0.0
      %vm3443 = vcmp.ge.f32.partialorder %v3299, 0.0
      %vm3444 = vcmp.ge.f32.partialorder %v3302, 0.0
      %vm3445 = vcmp.ge.f32.partialorder %v3304, 0.0
      %vm3446 = vcmp.ge.f32.partialorder %v3307, 0.0
      %vm3447 = vcmp.ge.f32.partialorder %v3309, 0.0
      %vm3448 = vcmp.ge.f32.partialorder %v3312, 0.0
      %vm3449 = vcmp.ge.f32.partialorder %v3314, 0.0
      %vm3450 = vcmp.ge.f32.partialorder %v3317, 0.0
      %vm3451 = vcmp.ge.f32.partialorder %v3319, 0.0
      %vm3452 = vcmp.ge.f32.partialorder %v3322, 0.0
      %vm3453 = vcmp.ge.f32.partialorder %v3324, 0.0
      %v3454 = vmul.f32 %v3007, 0.01
      %v3455 = vmul.f32 %v3009, 0.01
      %v3456 = vmul.f32 %v3012, 0.01
      %v3457 = vmul.f32 %v3014, 0.01
      %v3458 = vmul.f32 %v3017, 0.01
      %v3459 = vmul.f32 %v3019, 0.01
      %v3460 = vmul.f32 %v3022, 0.01
      %v3461 = vmul.f32 %v3024, 0.01
      %v3462 = vmul.f32 %v3027, 0.01
      %v3463 = vmul.f32 %v3029, 0.01
      %v3464 = vmul.f32 %v3032, 0.01
      %v3465 = vmul.f32 %v3034, 0.01
      %v3466 = vmul.f32 %v3037, 0.01
      %v3467 = vmul.f32 %v3039, 0.01
      %v3468 = vmul.f32 %v3042, 0.01
      %v3469 = vmul.f32 %v3044, 0.01
      %v3470 = vmul.f32 %v3047, 0.01
      %v3471 = vmul.f32 %v3049, 0.01
      %v3472 = vmul.f32 %v3052, 0.01
      %v3473 = vmul.f32 %v3054, 0.01
      %v3474 = vmul.f32 %v3057, 0.01
      %v3475 = vmul.f32 %v3059, 0.01
      %v3476 = vmul.f32 %v3062, 0.01
      %v3477 = vmul.f32 %v3064, 0.01
      %v3478 = vmul.f32 %v3067, 0.01
      %v3479 = vmul.f32 %v3069, 0.01
      %v3480 = vmul.f32 %v3072, 0.01
      %v3481 = vmul.f32 %v3074, 0.01
      %v3482 = vmul.f32 %v3077, 0.01
      %v3483 = vmul.f32 %v3079, 0.01
      %v3484 = vmul.f32 %v3082, 0.01
      %v3485 = vmul.f32 %v3084, 0.01
      %v3486 = vmul.f32 %v3087, 0.01
      %v3487 = vmul.f32 %v3089, 0.01
      %v3488 = vmul.f32 %v3092, 0.01
      %v3489 = vmul.f32 %v3094, 0.01
      %v3490 = vmul.f32 %v3097, 0.01
      %v3491 = vmul.f32 %v3099, 0.01
      %v3492 = vmul.f32 %v3102, 0.01
      %v3493 = vmul.f32 %v3104, 0.01
      %v3494 = vmul.f32 %v3107, 0.01
      %v3495 = vmul.f32 %v3109, 0.01
      %v3496 = vmul.f32 %v3112, 0.01
      %v3497 = vmul.f32 %v3114, 0.01
      %v3498 = vmul.f32 %v3117, 0.01
      %v3499 = vmul.f32 %v3119, 0.01
      %v3500 = vmul.f32 %v3122, 0.01
      %v3501 = vmul.f32 %v3124, 0.01
      %v3502 = vmul.f32 %v3127, 0.01
      %v3503 = vmul.f32 %v3129, 0.01
      %v3504 = vmul.f32 %v3132, 0.01
      %v3505 = vmul.f32 %v3134, 0.01
      %v3506 = vmul.f32 %v3137, 0.01
      %v3507 = vmul.f32 %v3139, 0.01
      %v3508 = vmul.f32 %v3142, 0.01
      %v3509 = vmul.f32 %v3144, 0.01
      %v3510 = vmul.f32 %v3147, 0.01
      %v3511 = vmul.f32 %v3149, 0.01
      %v3512 = vmul.f32 %v3152, 0.01
      %v3513 = vmul.f32 %v3154, 0.01
      %v3514 = vmul.f32 %v3157, 0.01
      %v3515 = vmul.f32 %v3159, 0.01
      %v3516 = vmul.f32 %v3162, 0.01
      %v3517 = vmul.f32 %v3164, 0.01
      %v3518 = vmul.f32 %v3167, 0.01
      %v3519 = vmul.f32 %v3169, 0.01
      %v3520 = vmul.f32 %v3172, 0.01
      %v3521 = vmul.f32 %v3174, 0.01
      %v3522 = vmul.f32 %v3177, 0.01
      %v3523 = vmul.f32 %v3179, 0.01
      %v3524 = vmul.f32 %v3182, 0.01
      %v3525 = vmul.f32 %v3184, 0.01
      %v3526 = vmul.f32 %v3187, 0.01
      %v3527 = vmul.f32 %v3189, 0.01
      %v3528 = vmul.f32 %v3192, 0.01
      %v3529 = vmul.f32 %v3194, 0.01
      %v3530 = vmul.f32 %v3197, 0.01
      %v3531 = vmul.f32 %v3199, 0.01
      %v3532 = vmul.f32 %v3202, 0.01
      %v3533 = vmul.f32 %v3204, 0.01
      %v3534 = vmul.f32 %v3207, 0.01
      %v3535 = vmul.f32 %v3209, 0.01
      %v3536 = vmul.f32 %v3212, 0.01
      %v3537 = vmul.f32 %v3214, 0.01
      %v3538 = vmul.f32 %v3217, 0.01
      %v3539 = vmul.f32 %v3219, 0.01
      %v3540 = vmul.f32 %v3222, 0.01
      %v3541 = vmul.f32 %v3224, 0.01
      %v3542 = vmul.f32 %v3227, 0.01
      %v3543 = vmul.f32 %v3229, 0.01
      %v3544 = vmul.f32 %v3232, 0.01
      %v3545 = vmul.f32 %v3234, 0.01
      %v3546 = vmul.f32 %v3237, 0.01
      %v3547 = vmul.f32 %v3239, 0.01
      %v3548 = vmul.f32 %v3242, 0.01
      %v3549 = vmul.f32 %v3244, 0.01
      %v3550 = vmul.f32 %v3247, 0.01
      %v3551 = vmul.f32 %v3249, 0.01
      %v3552 = vmul.f32 %v3252, 0.01
      %v3553 = vmul.f32 %v3254, 0.01
      %v3554 = vmul.f32 %v3257, 0.01
      %v3555 = vmul.f32 %v3259, 0.01
      %v3556 = vmul.f32 %v3262, 0.01
      %v3557 = vmul.f32 %v3264, 0.01
      %v3558 = vmul.f32 %v3267, 0.01
      %v3559 = vmul.f32 %v3269, 0.01
      %v3560 = vmul.f32 %v3272, 0.01
      %v3561 = vmul.f32 %v3274, 0.01
      %v3562 = vmul.f32 %v3277, 0.01
      %v3563 = vmul.f32 %v3279, 0.01
      %v3564 = vmul.f32 %v3282, 0.01
      %v3565 = vmul.f32 %v3284, 0.01
      %v3566 = vmul.f32 %v3287, 0.01
      %v3567 = vmul.f32 %v3289, 0.01
      %v3568 = vmul.f32 %v3292, 0.01
      %v3569 = vmul.f32 %v3294, 0.01
      %v3570 = vmul.f32 %v3297, 0.01
      %v3571 = vmul.f32 %v3299, 0.01
      %v3572 = vmul.f32 %v3302, 0.01
      %v3573 = vmul.f32 %v3304, 0.01
      %v3574 = vmul.f32 %v3307, 0.01
      %v3575 = vmul.f32 %v3309, 0.01
      %v3576 = vmul.f32 %v3312, 0.01
      %v3577 = vmul.f32 %v3314, 0.01
      %v3578 = vmul.f32 %v3317, 0.01
      %v3579 = vmul.f32 %v3319, 0.01
      %v3580 = vmul.f32 %v3322, 0.01
      %v3581 = vmul.f32 %v3324, 0.01
      %v3582 = vsel %vm3326, %v3007, %v3454
      %v3583 = vsel %vm3327, %v3009, %v3455
      %v3584 = vsel %vm3328, %v3012, %v3456
      %v3585 = vsel %vm3329, %v3014, %v3457
      %v3586 = vsel %vm3330, %v3017, %v3458
      %v3587 = vsel %vm3331, %v3019, %v3459
      %v3588 = vsel %vm3332, %v3022, %v3460
      %v3589 = vsel %vm3333, %v3024, %v3461
      %v3590 = vsel %vm3334, %v3027, %v3462
      %v3591 = vsel %vm3335, %v3029, %v3463
      %v3592 = vsel %vm3336, %v3032, %v3464
      %v3593 = vsel %vm3337, %v3034, %v3465
      %v3594 = vsel %vm3338, %v3037, %v3466
      %v3595 = vsel %vm3339, %v3039, %v3467
      %v3596 = vsel %vm3340, %v3042, %v3468
      %v3597 = vsel %vm3341, %v3044, %v3469
      %v3598 = vsel %vm3342, %v3047, %v3470
      %v3599 = vsel %vm3343, %v3049, %v3471
      %v3600 = vsel %vm3344, %v3052, %v3472
      %v3601 = vsel %vm3345, %v3054, %v3473
      %v3602 = vsel %vm3346, %v3057, %v3474
      %v3603 = vsel %vm3347, %v3059, %v3475
      %v3604 = vsel %vm3348, %v3062, %v3476
      %v3605 = vsel %vm3349, %v3064, %v3477
      %v3606 = vsel %vm3350, %v3067, %v3478
      %v3607 = vsel %vm3351, %v3069, %v3479
      %v3608 = vsel %vm3352, %v3072, %v3480
      %v3609 = vsel %vm3353, %v3074, %v3481
      %v3610 = vsel %vm3354, %v3077, %v3482
      %v3611 = vsel %vm3355, %v3079, %v3483
      %v3612 = vsel %vm3356, %v3082, %v3484
      %v3613 = vsel %vm3357, %v3084, %v3485
      %v3614 = vsel %vm3358, %v3087, %v3486
      %v3615 = vsel %vm3359, %v3089, %v3487
      %v3616 = vsel %vm3360, %v3092, %v3488
      %v3617 = vsel %vm3361, %v3094, %v3489
      %v3618 = vsel %vm3362, %v3097, %v3490
      %v3619 = vsel %vm3363, %v3099, %v3491
      %v3620 = vsel %vm3364, %v3102, %v3492
      %v3621 = vsel %vm3365, %v3104, %v3493
      %v3622 = vsel %vm3366, %v3107, %v3494
      %v3623 = vsel %vm3367, %v3109, %v3495
      %v3624 = vsel %vm3368, %v3112, %v3496
      %v3625 = vsel %vm3369, %v3114, %v3497
      %v3626 = vsel %vm3370, %v3117, %v3498
      %v3627 = vsel %vm3371, %v3119, %v3499
      %v3628 = vsel %vm3372, %v3122, %v3500
      %v3629 = vsel %vm3373, %v3124, %v3501
      %v3630 = vsel %vm3374, %v3127, %v3502
      %v3631 = vsel %vm3375, %v3129, %v3503
      %v3632 = vsel %vm3376, %v3132, %v3504
      %v3633 = vsel %vm3377, %v3134, %v3505
      %v3634 = vsel %vm3378, %v3137, %v3506
      %v3635 = vsel %vm3379, %v3139, %v3507
      %v3636 = vsel %vm3380, %v3142, %v3508
      %v3637 = vsel %vm3381, %v3144, %v3509
      %v3638 = vsel %vm3382, %v3147, %v3510
      %v3639 = vsel %vm3383, %v3149, %v3511
      %v3640 = vsel %vm3384, %v3152, %v3512
      %v3641 = vsel %vm3385, %v3154, %v3513
      %v3642 = vsel %vm3386, %v3157, %v3514
      %v3643 = vsel %vm3387, %v3159, %v3515
      %v3644 = vsel %vm3388, %v3162, %v3516
      %v3645 = vsel %vm3389, %v3164, %v3517
      %v3646 = vsel %vm3390, %v3167, %v3518
      %v3647 = vsel %vm3391, %v3169, %v3519
      %v3648 = vsel %vm3392, %v3172, %v3520
      %v3649 = vsel %vm3393, %v3174, %v3521
      %v3650 = vsel %vm3394, %v3177, %v3522
      %v3651 = vsel %vm3395, %v3179, %v3523
      %v3652 = vsel %vm3396, %v3182, %v3524
      %v3653 = vsel %vm3397, %v3184, %v3525
      %v3654 = vsel %vm3398, %v3187, %v3526
      %v3655 = vsel %vm3399, %v3189, %v3527
      %v3656 = vsel %vm3400, %v3192, %v3528
      %v3657 = vsel %vm3401, %v3194, %v3529
      %v3658 = vsel %vm3402, %v3197, %v3530
      %v3659 = vsel %vm3403, %v3199, %v3531
      %v3660 = vsel %vm3404, %v3202, %v3532
      %v3661 = vsel %vm3405, %v3204, %v3533
      %v3662 = vsel %vm3406, %v3207, %v3534
      %v3663 = vsel %vm3407, %v3209, %v3535
      %v3664 = vsel %vm3408, %v3212, %v3536
      %v3665 = vsel %vm3409, %v3214, %v3537
      %v3666 = vsel %vm3410, %v3217, %v3538
      %v3667 = vsel %vm3411, %v3219, %v3539
      %v3668 = vsel %vm3412, %v3222, %v3540
      %v3669 = vsel %vm3413, %v3224, %v3541
      %v3670 = vsel %vm3414, %v3227, %v3542
      %v3671 = vsel %vm3415, %v3229, %v3543
      %v3672 = vsel %vm3416, %v3232, %v3544
      %v3673 = vsel %vm3417, %v3234, %v3545
      %v3674 = vsel %vm3418, %v3237, %v3546
      %v3675 = vsel %vm3419, %v3239, %v3547
      %v3676 = vsel %vm3420, %v3242, %v3548
      %v3677 = vsel %vm3421, %v3244, %v3549
      %v3678 = vsel %vm3422, %v3247, %v3550
      %v3679 = vsel %vm3423, %v3249, %v3551
      %v3680 = vsel %vm3424, %v3252, %v3552
      %v3681 = vsel %vm3425, %v3254, %v3553
      %v3682 = vsel %vm3426, %v3257, %v3554
      %v3683 = vsel %vm3427, %v3259, %v3555
      %v3684 = vsel %vm3428, %v3262, %v3556
      %v3685 = vsel %vm3429, %v3264, %v3557
      %v3686 = vsel %vm3430, %v3267, %v3558
      %v3687 = vsel %vm3431, %v3269, %v3559
      %v3688 = vsel %vm3432, %v3272, %v3560
      %v3689 = vsel %vm3433, %v3274, %v3561
      %v3690 = vsel %vm3434, %v3277, %v3562
      %v3691 = vsel %vm3435, %v3279, %v3563
      %v3692 = vsel %vm3436, %v3282, %v3564
      %v3693 = vsel %vm3437, %v3284, %v3565
      %v3694 = vsel %vm3438, %v3287, %v3566
      %v3695 = vsel %vm3439, %v3289, %v3567
      %v3696 = vsel %vm3440, %v3292, %v3568
      %v3697 = vsel %vm3441, %v3294, %v3569
      %v3698 = vsel %vm3442, %v3297, %v3570
      %v3699 = vsel %vm3443, %v3299, %v3571
      %v3700 = vsel %vm3444, %v3302, %v3572
      %v3701 = vsel %vm3445, %v3304, %v3573
      %v3702 = vsel %vm3446, %v3307, %v3574
      %v3703 = vsel %vm3447, %v3309, %v3575
      %v3704 = vsel %vm3448, %v3312, %v3576
      %v3705 = vsel %vm3449, %v3314, %v3577
      %v3706 = vsel %vm3450, %v3317, %v3578
      %v3707 = vsel %vm3451, %v3319, %v3579
      %v3708 = vsel %vm3452, %v3322, %v3580
      %v3709 = vsel %vm3453, %v3324, %v3581
      %v3710 = vpack.c.bf16 %v3583, %v3582
      %v3711 = vpack.c.bf16 %v3585, %v3584
      %v3712 = vpack.c.bf16 %v3587, %v3586
      %v3713 = vpack.c.bf16 %v3589, %v3588
      %v3714 = vpack.c.bf16 %v3591, %v3590
      %v3715 = vpack.c.bf16 %v3593, %v3592
      %v3716 = vpack.c.bf16 %v3595, %v3594
      %v3717 = vpack.c.bf16 %v3597, %v3596
      %v3718 = vpack.c.bf16 %v3599, %v3598
      %v3719 = vpack.c.bf16 %v3601, %v3600
      %v3720 = vpack.c.bf16 %v3603, %v3602
      %v3721 = vpack.c.bf16 %v3605, %v3604
      %v3722 = vpack.c.bf16 %v3607, %v3606
      %v3723 = vpack.c.bf16 %v3609, %v3608
      %v3724 = vpack.c.bf16 %v3611, %v3610
      %v3725 = vpack.c.bf16 %v3613, %v3612
      %v3726 = vpack.c.bf16 %v3615, %v3614
      %v3727 = vpack.c.bf16 %v3617, %v3616
      %v3728 = vpack.c.bf16 %v3619, %v3618
      %v3729 = vpack.c.bf16 %v3621, %v3620
      %v3730 = vpack.c.bf16 %v3623, %v3622
      %v3731 = vpack.c.bf16 %v3625, %v3624
      %v3732 = vpack.c.bf16 %v3627, %v3626
      %v3733 = vpack.c.bf16 %v3629, %v3628
      %v3734 = vpack.c.bf16 %v3631, %v3630
      %v3735 = vpack.c.bf16 %v3633, %v3632
      %v3736 = vpack.c.bf16 %v3635, %v3634
      %v3737 = vpack.c.bf16 %v3637, %v3636
      %v3738 = vpack.c.bf16 %v3639, %v3638
      %v3739 = vpack.c.bf16 %v3641, %v3640
      %v3740 = vpack.c.bf16 %v3643, %v3642
      %v3741 = vpack.c.bf16 %v3645, %v3644
      %v3742 = vpack.c.bf16 %v3647, %v3646
      %v3743 = vpack.c.bf16 %v3649, %v3648
      %v3744 = vpack.c.bf16 %v3651, %v3650
      %v3745 = vpack.c.bf16 %v3653, %v3652
      %v3746 = vpack.c.bf16 %v3655, %v3654
      %v3747 = vpack.c.bf16 %v3657, %v3656
      %v3748 = vpack.c.bf16 %v3659, %v3658
      %v3749 = vpack.c.bf16 %v3661, %v3660
      %v3750 = vpack.c.bf16 %v3663, %v3662
      %v3751 = vpack.c.bf16 %v3665, %v3664
      %v3752 = vpack.c.bf16 %v3667, %v3666
      %v3753 = vpack.c.bf16 %v3669, %v3668
      %v3754 = vpack.c.bf16 %v3671, %v3670
      %v3755 = vpack.c.bf16 %v3673, %v3672
      %v3756 = vpack.c.bf16 %v3675, %v3674
      %v3757 = vpack.c.bf16 %v3677, %v3676
      %v3758 = vpack.c.bf16 %v3679, %v3678
      %v3759 = vpack.c.bf16 %v3681, %v3680
      %v3760 = vpack.c.bf16 %v3683, %v3682
      %v3761 = vpack.c.bf16 %v3685, %v3684
      %v3762 = vpack.c.bf16 %v3687, %v3686
      %v3763 = vpack.c.bf16 %v3689, %v3688
      %v3764 = vpack.c.bf16 %v3691, %v3690
      %v3765 = vpack.c.bf16 %v3693, %v3692
      %v3766 = vpack.c.bf16 %v3695, %v3694
      %v3767 = vpack.c.bf16 %v3697, %v3696
      %v3768 = vpack.c.bf16 %v3699, %v3698
      %v3769 = vpack.c.bf16 %v3701, %v3700
      %v3770 = vpack.c.bf16 %v3703, %v3702
      %v3771 = vpack.c.bf16 %v3705, %v3704
      %v3772 = vpack.c.bf16 %v3707, %v3706
      %v3773 = vpack.c.bf16 %v3709, %v3708
      %v3774 = vld [vmem:[%s3] sm:$0xf]
      %v3775 = vld [vmem:[%s3 + $0x4] sm:$0xf]
      %v3776 = vld [vmem:[%s3 + $0x8] sm:$0xf]
      %v3777 = vld [vmem:[%s3 + $0xc] sm:$0xf]
      %v3778 = vld [vmem:[%s3 + $0x10] sm:$0xf]
      %v3779 = vld [vmem:[%s3 + $0x14] sm:$0xf]
      %v3780 = vld [vmem:[%s3 + $0x18] sm:$0xf]
      %v3781 = vld [vmem:[%s3 + $0x1c] sm:$0xf]
      %v3782 = vld [vmem:[%s4] sm:$0x1]
      %v3784 = vperm.slane %v3782, 0
      %v3794 = vunpack.c.l.b16 %v3774
      %v3795 = vunpack.c.l.b16 %v3775
      %v3796 = vunpack.c.l.b16 %v3776
      %v3797 = vunpack.c.l.b16 %v3777
      %v3798 = vunpack.c.l.b16 %v3778
      %v3799 = vunpack.c.l.b16 %v3779
      %v3800 = vunpack.c.l.b16 %v3780
      %v3801 = vunpack.c.l.b16 %v3781
      %v3802 = vpack.c.b16 %v3795, %v3794
      %v3803 = vpack.c.b16 %v3797, %v3796
      %v3804 = vpack.c.b16 %v3799, %v3798
      %v3805 = vpack.c.b16 %v3801, %v3800
      %vm3810 = vcmask 523264
      %v3812 = vsel %vm3810, %v3710, 0
      %v3815 = vsel %vm3810, %v3711, 0
      %v3818 = vsel %vm3810, %v3712, 0
      %v3821 = vsel %vm3810, %v3713, 0
      %v3824 = vsel %vm3810, %v3714, 0
      %v3827 = vsel %vm3810, %v3715, 0
      %v3830 = vsel %vm3810, %v3716, 0
      %v3833 = vsel %vm3810, %v3717, 0
      %v3836 = vsel %vm3810, %v3718, 0
      %v3839 = vsel %vm3810, %v3719, 0
      %v3842 = vsel %vm3810, %v3720, 0
      %v3845 = vsel %vm3810, %v3721, 0
      %v3848 = vsel %vm3810, %v3722, 0
      %v3851 = vsel %vm3810, %v3723, 0
      %v3854 = vsel %vm3810, %v3724, 0
      %v3857 = vsel %vm3810, %v3725, 0
      %v3860 = vsel %vm3810, %v3726, 0
      %v3863 = vsel %vm3810, %v3727, 0
      %v3866 = vsel %vm3810, %v3728, 0
      %v3869 = vsel %vm3810, %v3729, 0
      %v3872 = vsel %vm3810, %v3730, 0
      %v3875 = vsel %vm3810, %v3731, 0
      %v3878 = vsel %vm3810, %v3732, 0
      %v3881 = vsel %vm3810, %v3733, 0
      %v3884 = vsel %vm3810, %v3734, 0
      %v3887 = vsel %vm3810, %v3735, 0
      %v3890 = vsel %vm3810, %v3736, 0
      %v3893 = vsel %vm3810, %v3737, 0
      %v3896 = vsel %vm3810, %v3738, 0
      %v3899 = vsel %vm3810, %v3739, 0
      %v3902 = vsel %vm3810, %v3740, 0
      %v3905 = vsel %vm3810, %v3741, 0
      %v3908 = vsel %vm3810, %v3742, 0
      %v3911 = vsel %vm3810, %v3743, 0
      %v3914 = vsel %vm3810, %v3744, 0
      %v3917 = vsel %vm3810, %v3745, 0
      %v3920 = vsel %vm3810, %v3746, 0
      %v3923 = vsel %vm3810, %v3747, 0
      %v3926 = vsel %vm3810, %v3748, 0
      %v3929 = vsel %vm3810, %v3749, 0
      %v3932 = vsel %vm3810, %v3750, 0
      %v3935 = vsel %vm3810, %v3751, 0
      %v3938 = vsel %vm3810, %v3752, 0
      %v3941 = vsel %vm3810, %v3753, 0
      %v3944 = vsel %vm3810, %v3754, 0
      %v3947 = vsel %vm3810, %v3755, 0
      %v3950 = vsel %vm3810, %v3756, 0
      %v3953 = vsel %vm3810, %v3757, 0
      %v3956 = vsel %vm3810, %v3758, 0
      %v3959 = vsel %vm3810, %v3759, 0
      %v3962 = vsel %vm3810, %v3760, 0
      %v3965 = vsel %vm3810, %v3761, 0
      %v3968 = vsel %vm3810, %v3762, 0
      %v3971 = vsel %vm3810, %v3763, 0
      %v3974 = vsel %vm3810, %v3764, 0
      %v3977 = vsel %vm3810, %v3765, 0
      %v3980 = vsel %vm3810, %v3766, 0
      %v3983 = vsel %vm3810, %v3767, 0
      %v3986 = vsel %vm3810, %v3768, 0
      %v3989 = vsel %vm3810, %v3769, 0
      %v3992 = vsel %vm3810, %v3770, 0
      %v3995 = vsel %vm3810, %v3771, 0
      %v3998 = vsel %vm3810, %v3772, 0
      %v4001 = vsel %vm3810, %v3773, 0
      %4003 = vmatpush.bf16.msra.mxu0 0
      %4004 = vmatpush.bf16.msra.mxu0 0
      %4005 = vmatpush.bf16.msra.mxu0 0
      %4006 = vmatpush.bf16.msra.mxu0 0
      %4007 = vmatpush.bf16.msra.mxu0 %v3805
      %4008 = vmatpush.bf16.msra.mxu0 %v3804
      %4009 = vmatpush.bf16.msra.mxu0 %v3803
      %4010 = vmatpush.bf16.msra.mxu0 %v3802
      %4011 = vmatmul.bf16.gmra.mxu0 %v3812
      %v4012 = vpop.f32.mrf.mxu0
      %v4013 = vadd.f32 %v3784, %v4012
      %v4014 = vpop.f32.mrf.mxu0
      %v4015 = vadd.f32 %v3784, %v4014
      %4016 = vmatmul.bf16.gmra.mxu0 %v3815
      %v4017 = vpop.f32.mrf.mxu0
      %v4018 = vadd.f32 %v3784, %v4017
      %v4019 = vpop.f32.mrf.mxu0
      %v4020 = vadd.f32 %v3784, %v4019
      %4021 = vmatmul.bf16.gmra.mxu0 %v3818
      %v4022 = vpop.f32.mrf.mxu0
      %v4023 = vadd.f32 %v3784, %v4022
      %v4024 = vpop.f32.mrf.mxu0
      %v4025 = vadd.f32 %v3784, %v4024
      %4026 = vmatmul.bf16.gmra.mxu0 %v3821
      %v4027 = vpop.f32.mrf.mxu0
      %v4028 = vadd.f32 %v3784, %v4027
      %v4029 = vpop.f32.mrf.mxu0
      %v4030 = vadd.f32 %v3784, %v4029
      %4031 = vmatmul.bf16.gmra.mxu0 %v3824
      %v4032 = vpop.f32.mrf.mxu0
      %v4033 = vadd.f32 %v3784, %v4032
      %v4034 = vpop.f32.mrf.mxu0
      %v4035 = vadd.f32 %v3784, %v4034
      %4036 = vmatmul.bf16.gmra.mxu0 %v3827
      %v4037 = vpop.f32.mrf.mxu0
      %v4038 = vadd.f32 %v3784, %v4037
      %v4039 = vpop.f32.mrf.mxu0
      %v4040 = vadd.f32 %v3784, %v4039
      %4041 = vmatmul.bf16.gmra.mxu0 %v3830
      %v4042 = vpop.f32.mrf.mxu0
      %v4043 = vadd.f32 %v3784, %v4042
      %v4044 = vpop.f32.mrf.mxu0
      %v4045 = vadd.f32 %v3784, %v4044
      %4046 = vmatmul.bf16.gmra.mxu0 %v3833
      %v4047 = vpop.f32.mrf.mxu0
      %v4048 = vadd.f32 %v3784, %v4047
      %v4049 = vpop.f32.mrf.mxu0
      %v4050 = vadd.f32 %v3784, %v4049
      %4051 = vmatmul.bf16.gmra.mxu0 %v3836
      %v4052 = vpop.f32.mrf.mxu0
      %v4053 = vadd.f32 %v3784, %v4052
      %v4054 = vpop.f32.mrf.mxu0
      %v4055 = vadd.f32 %v3784, %v4054
      %4056 = vmatmul.bf16.gmra.mxu0 %v3839
      %v4057 = vpop.f32.mrf.mxu0
      %v4058 = vadd.f32 %v3784, %v4057
      %v4059 = vpop.f32.mrf.mxu0
      %v4060 = vadd.f32 %v3784, %v4059
      %4061 = vmatmul.bf16.gmra.mxu0 %v3842
      %v4062 = vpop.f32.mrf.mxu0
      %v4063 = vadd.f32 %v3784, %v4062
      %v4064 = vpop.f32.mrf.mxu0
      %v4065 = vadd.f32 %v3784, %v4064
      %4066 = vmatmul.bf16.gmra.mxu0 %v3845
      %v4067 = vpop.f32.mrf.mxu0
      %v4068 = vadd.f32 %v3784, %v4067
      %v4069 = vpop.f32.mrf.mxu0
      %v4070 = vadd.f32 %v3784, %v4069
      %4071 = vmatmul.bf16.gmra.mxu0 %v3848
      %v4072 = vpop.f32.mrf.mxu0
      %v4073 = vadd.f32 %v3784, %v4072
      %v4074 = vpop.f32.mrf.mxu0
      %v4075 = vadd.f32 %v3784, %v4074
      %4076 = vmatmul.bf16.gmra.mxu0 %v3851
      %v4077 = vpop.f32.mrf.mxu0
      %v4078 = vadd.f32 %v3784, %v4077
      %v4079 = vpop.f32.mrf.mxu0
      %v4080 = vadd.f32 %v3784, %v4079
      %4081 = vmatmul.bf16.gmra.mxu0 %v3854
      %v4082 = vpop.f32.mrf.mxu0
      %v4083 = vadd.f32 %v3784, %v4082
      %v4084 = vpop.f32.mrf.mxu0
      %v4085 = vadd.f32 %v3784, %v4084
      %4086 = vmatmul.bf16.gmra.mxu0 %v3857
      %v4087 = vpop.f32.mrf.mxu0
      %v4088 = vadd.f32 %v3784, %v4087
      %v4089 = vpop.f32.mrf.mxu0
      %v4090 = vadd.f32 %v3784, %v4089
      %4091 = vmatmul.bf16.gmra.mxu0 %v3860
      %v4092 = vpop.f32.mrf.mxu0
      %v4093 = vadd.f32 %v3784, %v4092
      %v4094 = vpop.f32.mrf.mxu0
      %v4095 = vadd.f32 %v3784, %v4094
      %4096 = vmatmul.bf16.gmra.mxu0 %v3863
      %v4097 = vpop.f32.mrf.mxu0
      %v4098 = vadd.f32 %v3784, %v4097
      %v4099 = vpop.f32.mrf.mxu0
      %v4100 = vadd.f32 %v3784, %v4099
      %4101 = vmatmul.bf16.gmra.mxu0 %v3866
      %v4102 = vpop.f32.mrf.mxu0
      %v4103 = vadd.f32 %v3784, %v4102
      %v4104 = vpop.f32.mrf.mxu0
      %v4105 = vadd.f32 %v3784, %v4104
      %4106 = vmatmul.bf16.gmra.mxu0 %v3869
      %v4107 = vpop.f32.mrf.mxu0
      %v4108 = vadd.f32 %v3784, %v4107
      %v4109 = vpop.f32.mrf.mxu0
      %v4110 = vadd.f32 %v3784, %v4109
      %4111 = vmatmul.bf16.gmra.mxu0 %v3872
      %v4112 = vpop.f32.mrf.mxu0
      %v4113 = vadd.f32 %v3784, %v4112
      %v4114 = vpop.f32.mrf.mxu0
      %v4115 = vadd.f32 %v3784, %v4114
      %4116 = vmatmul.bf16.gmra.mxu0 %v3875
      %v4117 = vpop.f32.mrf.mxu0
      %v4118 = vadd.f32 %v3784, %v4117
      %v4119 = vpop.f32.mrf.mxu0
      %v4120 = vadd.f32 %v3784, %v4119
      %4121 = vmatmul.bf16.gmra.mxu0 %v3878
      %v4122 = vpop.f32.mrf.mxu0
      %v4123 = vadd.f32 %v3784, %v4122
      %v4124 = vpop.f32.mrf.mxu0
      %v4125 = vadd.f32 %v3784, %v4124
      %4126 = vmatmul.bf16.gmra.mxu0 %v3881
      %v4127 = vpop.f32.mrf.mxu0
      %v4128 = vadd.f32 %v3784, %v4127
      %v4129 = vpop.f32.mrf.mxu0
      %v4130 = vadd.f32 %v3784, %v4129
      %4131 = vmatmul.bf16.gmra.mxu0 %v3884
      %v4132 = vpop.f32.mrf.mxu0
      %v4133 = vadd.f32 %v3784, %v4132
      %v4134 = vpop.f32.mrf.mxu0
      %v4135 = vadd.f32 %v3784, %v4134
      %4136 = vmatmul.bf16.gmra.mxu0 %v3887
      %v4137 = vpop.f32.mrf.mxu0
      %v4138 = vadd.f32 %v3784, %v4137
      %v4139 = vpop.f32.mrf.mxu0
      %v4140 = vadd.f32 %v3784, %v4139
      %4141 = vmatmul.bf16.gmra.mxu0 %v3890
      %v4142 = vpop.f32.mrf.mxu0
      %v4143 = vadd.f32 %v3784, %v4142
      %v4144 = vpop.f32.mrf.mxu0
      %v4145 = vadd.f32 %v3784, %v4144
      %4146 = vmatmul.bf16.gmra.mxu0 %v3893
      %v4147 = vpop.f32.mrf.mxu0
      %v4148 = vadd.f32 %v3784, %v4147
      %v4149 = vpop.f32.mrf.mxu0
      %v4150 = vadd.f32 %v3784, %v4149
      %4151 = vmatmul.bf16.gmra.mxu0 %v3896
      %v4152 = vpop.f32.mrf.mxu0
      %v4153 = vadd.f32 %v3784, %v4152
      %v4154 = vpop.f32.mrf.mxu0
      %v4155 = vadd.f32 %v3784, %v4154
      %4156 = vmatmul.bf16.gmra.mxu0 %v3899
      %v4157 = vpop.f32.mrf.mxu0
      %v4158 = vadd.f32 %v3784, %v4157
      %v4159 = vpop.f32.mrf.mxu0
      %v4160 = vadd.f32 %v3784, %v4159
      %4161 = vmatmul.bf16.gmra.mxu0 %v3902
      %v4162 = vpop.f32.mrf.mxu0
      %v4163 = vadd.f32 %v3784, %v4162
      %v4164 = vpop.f32.mrf.mxu0
      %v4165 = vadd.f32 %v3784, %v4164
      %4166 = vmatmul.bf16.gmra.mxu0 %v3905
      %v4167 = vpop.f32.mrf.mxu0
      %v4168 = vadd.f32 %v3784, %v4167
      %v4169 = vpop.f32.mrf.mxu0
      %v4170 = vadd.f32 %v3784, %v4169
      %4171 = vmatmul.bf16.gmra.mxu0 %v3908
      %v4172 = vpop.f32.mrf.mxu0
      %v4173 = vadd.f32 %v3784, %v4172
      %v4174 = vpop.f32.mrf.mxu0
      %v4175 = vadd.f32 %v3784, %v4174
      %4176 = vmatmul.bf16.gmra.mxu0 %v3911
      %v4177 = vpop.f32.mrf.mxu0
      %v4178 = vadd.f32 %v3784, %v4177
      %v4179 = vpop.f32.mrf.mxu0
      %v4180 = vadd.f32 %v3784, %v4179
      %4181 = vmatmul.bf16.gmra.mxu0 %v3914
      %v4182 = vpop.f32.mrf.mxu0
      %v4183 = vadd.f32 %v3784, %v4182
      %v4184 = vpop.f32.mrf.mxu0
      %v4185 = vadd.f32 %v3784, %v4184
      %4186 = vmatmul.bf16.gmra.mxu0 %v3917
      %v4187 = vpop.f32.mrf.mxu0
      %v4188 = vadd.f32 %v3784, %v4187
      %v4189 = vpop.f32.mrf.mxu0
      %v4190 = vadd.f32 %v3784, %v4189
      %4191 = vmatmul.bf16.gmra.mxu0 %v3920
      %v4192 = vpop.f32.mrf.mxu0
      %v4193 = vadd.f32 %v3784, %v4192
      %v4194 = vpop.f32.mrf.mxu0
      %v4195 = vadd.f32 %v3784, %v4194
      %4196 = vmatmul.bf16.gmra.mxu0 %v3923
      %v4197 = vpop.f32.mrf.mxu0
      %v4198 = vadd.f32 %v3784, %v4197
      %v4199 = vpop.f32.mrf.mxu0
      %v4200 = vadd.f32 %v3784, %v4199
      %4201 = vmatmul.bf16.gmra.mxu0 %v3926
      %v4202 = vpop.f32.mrf.mxu0
      %v4203 = vadd.f32 %v3784, %v4202
      %v4204 = vpop.f32.mrf.mxu0
      %v4205 = vadd.f32 %v3784, %v4204
      %4206 = vmatmul.bf16.gmra.mxu0 %v3929
      %v4207 = vpop.f32.mrf.mxu0
      %v4208 = vadd.f32 %v3784, %v4207
      %v4209 = vpop.f32.mrf.mxu0
      %v4210 = vadd.f32 %v3784, %v4209
      %4211 = vmatmul.bf16.gmra.mxu0 %v3932
      %v4212 = vpop.f32.mrf.mxu0
      %v4213 = vadd.f32 %v3784, %v4212
      %v4214 = vpop.f32.mrf.mxu0
      %v4215 = vadd.f32 %v3784, %v4214
      %4216 = vmatmul.bf16.gmra.mxu0 %v3935
      %v4217 = vpop.f32.mrf.mxu0
      %v4218 = vadd.f32 %v3784, %v4217
      %v4219 = vpop.f32.mrf.mxu0
      %v4220 = vadd.f32 %v3784, %v4219
      %4221 = vmatmul.bf16.gmra.mxu0 %v3938
      %v4222 = vpop.f32.mrf.mxu0
      %v4223 = vadd.f32 %v3784, %v4222
      %v4224 = vpop.f32.mrf.mxu0
      %v4225 = vadd.f32 %v3784, %v4224
      %4226 = vmatmul.bf16.gmra.mxu0 %v3941
      %v4227 = vpop.f32.mrf.mxu0
      %v4228 = vadd.f32 %v3784, %v4227
      %v4229 = vpop.f32.mrf.mxu0
      %v4230 = vadd.f32 %v3784, %v4229
      %4231 = vmatmul.bf16.gmra.mxu0 %v3944
      %v4232 = vpop.f32.mrf.mxu0
      %v4233 = vadd.f32 %v3784, %v4232
      %v4234 = vpop.f32.mrf.mxu0
      %v4235 = vadd.f32 %v3784, %v4234
      %4236 = vmatmul.bf16.gmra.mxu0 %v3947
      %v4237 = vpop.f32.mrf.mxu0
      %v4238 = vadd.f32 %v3784, %v4237
      %v4239 = vpop.f32.mrf.mxu0
      %v4240 = vadd.f32 %v3784, %v4239
      %4241 = vmatmul.bf16.gmra.mxu0 %v3950
      %v4242 = vpop.f32.mrf.mxu0
      %v4243 = vadd.f32 %v3784, %v4242
      %v4244 = vpop.f32.mrf.mxu0
      %v4245 = vadd.f32 %v3784, %v4244
      %4246 = vmatmul.bf16.gmra.mxu0 %v3953
      %v4247 = vpop.f32.mrf.mxu0
      %v4248 = vadd.f32 %v3784, %v4247
      %v4249 = vpop.f32.mrf.mxu0
      %v4250 = vadd.f32 %v3784, %v4249
      %4251 = vmatmul.bf16.gmra.mxu0 %v3956
      %v4252 = vpop.f32.mrf.mxu0
      %v4253 = vadd.f32 %v3784, %v4252
      %v4254 = vpop.f32.mrf.mxu0
      %v4255 = vadd.f32 %v3784, %v4254
      %4256 = vmatmul.bf16.gmra.mxu0 %v3959
      %v4257 = vpop.f32.mrf.mxu0
      %v4258 = vadd.f32 %v3784, %v4257
      %v4259 = vpop.f32.mrf.mxu0
      %v4260 = vadd.f32 %v3784, %v4259
      %4261 = vmatmul.bf16.gmra.mxu0 %v3962
      %v4262 = vpop.f32.mrf.mxu0
      %v4263 = vadd.f32 %v3784, %v4262
      %v4264 = vpop.f32.mrf.mxu0
      %v4265 = vadd.f32 %v3784, %v4264
      %4266 = vmatmul.bf16.gmra.mxu0 %v3965
      %v4267 = vpop.f32.mrf.mxu0
      %v4268 = vadd.f32 %v3784, %v4267
      %v4269 = vpop.f32.mrf.mxu0
      %v4270 = vadd.f32 %v3784, %v4269
      %4271 = vmatmul.bf16.gmra.mxu0 %v3968
      %v4272 = vpop.f32.mrf.mxu0
      %v4273 = vadd.f32 %v3784, %v4272
      %v4274 = vpop.f32.mrf.mxu0
      %v4275 = vadd.f32 %v3784, %v4274
      %4276 = vmatmul.bf16.gmra.mxu0 %v3971
      %v4277 = vpop.f32.mrf.mxu0
      %v4278 = vadd.f32 %v3784, %v4277
      %v4279 = vpop.f32.mrf.mxu0
      %v4280 = vadd.f32 %v3784, %v4279
      %4281 = vmatmul.bf16.gmra.mxu0 %v3974
      %v4282 = vpop.f32.mrf.mxu0
      %v4283 = vadd.f32 %v3784, %v4282
      %v4284 = vpop.f32.mrf.mxu0
      %v4285 = vadd.f32 %v3784, %v4284
      %4286 = vmatmul.bf16.gmra.mxu0 %v3977
      %v4287 = vpop.f32.mrf.mxu0
      %v4288 = vadd.f32 %v3784, %v4287
      %v4289 = vpop.f32.mrf.mxu0
      %v4290 = vadd.f32 %v3784, %v4289
      %4291 = vmatmul.bf16.gmra.mxu0 %v3980
      %v4292 = vpop.f32.mrf.mxu0
      %v4293 = vadd.f32 %v3784, %v4292
      %v4294 = vpop.f32.mrf.mxu0
      %v4295 = vadd.f32 %v3784, %v4294
      %4296 = vmatmul.bf16.gmra.mxu0 %v3983
      %v4297 = vpop.f32.mrf.mxu0
      %v4298 = vadd.f32 %v3784, %v4297
      %v4299 = vpop.f32.mrf.mxu0
      %v4300 = vadd.f32 %v3784, %v4299
      %4301 = vmatmul.bf16.gmra.mxu0 %v3986
      %v4302 = vpop.f32.mrf.mxu0
      %v4303 = vadd.f32 %v3784, %v4302
      %v4304 = vpop.f32.mrf.mxu0
      %v4305 = vadd.f32 %v3784, %v4304
      %4306 = vmatmul.bf16.gmra.mxu0 %v3989
      %v4307 = vpop.f32.mrf.mxu0
      %v4308 = vadd.f32 %v3784, %v4307
      %v4309 = vpop.f32.mrf.mxu0
      %v4310 = vadd.f32 %v3784, %v4309
      %4311 = vmatmul.bf16.gmra.mxu0 %v3992
      %v4312 = vpop.f32.mrf.mxu0
      %v4313 = vadd.f32 %v3784, %v4312
      %v4314 = vpop.f32.mrf.mxu0
      %v4315 = vadd.f32 %v3784, %v4314
      %4316 = vmatmul.bf16.gmra.mxu0 %v3995
      %v4317 = vpop.f32.mrf.mxu0
      %v4318 = vadd.f32 %v3784, %v4317
      %v4319 = vpop.f32.mrf.mxu0
      %v4320 = vadd.f32 %v3784, %v4319
      %4321 = vmatmul.bf16.gmra.mxu0 %v3998
      %v4322 = vpop.f32.mrf.mxu0
      %v4323 = vadd.f32 %v3784, %v4322
      %v4324 = vpop.f32.mrf.mxu0
      %v4325 = vadd.f32 %v3784, %v4324
      %4326 = vmatmul.bf16.gmra.mxu0 %v4001
      %v4327 = vpop.f32.mrf.mxu0
      %v4328 = vadd.f32 %v3784, %v4327
      %v4329 = vpop.f32.mrf.mxu0
      %v4330 = vadd.f32 %v3784, %v4329
      %4331 = vdwg.mxu0
      %vm4332 = vcmp.ge.f32.partialorder %v4013, 0.0
      %vm4333 = vcmp.ge.f32.partialorder %v4015, 0.0
      %vm4334 = vcmp.ge.f32.partialorder %v4018, 0.0
      %vm4335 = vcmp.ge.f32.partialorder %v4020, 0.0
      %vm4336 = vcmp.ge.f32.partialorder %v4023, 0.0
      %vm4337 = vcmp.ge.f32.partialorder %v4025, 0.0
      %vm4338 = vcmp.ge.f32.partialorder %v4028, 0.0
      %vm4339 = vcmp.ge.f32.partialorder %v4030, 0.0
      %vm4340 = vcmp.ge.f32.partialorder %v4033, 0.0
      %vm4341 = vcmp.ge.f32.partialorder %v4035, 0.0
      %vm4342 = vcmp.ge.f32.partialorder %v4038, 0.0
      %vm4343 = vcmp.ge.f32.partialorder %v4040, 0.0
      %vm4344 = vcmp.ge.f32.partialorder %v4043, 0.0
      %vm4345 = vcmp.ge.f32.partialorder %v4045, 0.0
      %vm4346 = vcmp.ge.f32.partialorder %v4048, 0.0
      %vm4347 = vcmp.ge.f32.partialorder %v4050, 0.0
      %vm4348 = vcmp.ge.f32.partialorder %v4053, 0.0
      %vm4349 = vcmp.ge.f32.partialorder %v4055, 0.0
      %vm4350 = vcmp.ge.f32.partialorder %v4058, 0.0
      %vm4351 = vcmp.ge.f32.partialorder %v4060, 0.0
      %vm4352 = vcmp.ge.f32.partialorder %v4063, 0.0
      %vm4353 = vcmp.ge.f32.partialorder %v4065, 0.0
      %vm4354 = vcmp.ge.f32.partialorder %v4068, 0.0
      %vm4355 = vcmp.ge.f32.partialorder %v4070, 0.0
      %vm4356 = vcmp.ge.f32.partialorder %v4073, 0.0
      %vm4357 = vcmp.ge.f32.partialorder %v4075, 0.0
      %vm4358 = vcmp.ge.f32.partialorder %v4078, 0.0
      %vm4359 = vcmp.ge.f32.partialorder %v4080, 0.0
      %vm4360 = vcmp.ge.f32.partialorder %v4083, 0.0
      %vm4361 = vcmp.ge.f32.partialorder %v4085, 0.0
      %vm4362 = vcmp.ge.f32.partialorder %v4088, 0.0
      %vm4363 = vcmp.ge.f32.partialorder %v4090, 0.0
      %vm4364 = vcmp.ge.f32.partialorder %v4093, 0.0
      %vm4365 = vcmp.ge.f32.partialorder %v4095, 0.0
      %vm4366 = vcmp.ge.f32.partialorder %v4098, 0.0
      %vm4367 = vcmp.ge.f32.partialorder %v4100, 0.0
      %vm4368 = vcmp.ge.f32.partialorder %v4103, 0.0
      %vm4369 = vcmp.ge.f32.partialorder %v4105, 0.0
      %vm4370 = vcmp.ge.f32.partialorder %v4108, 0.0
      %vm4371 = vcmp.ge.f32.partialorder %v4110, 0.0
      %vm4372 = vcmp.ge.f32.partialorder %v4113, 0.0
      %vm4373 = vcmp.ge.f32.partialorder %v4115, 0.0
      %vm4374 = vcmp.ge.f32.partialorder %v4118, 0.0
      %vm4375 = vcmp.ge.f32.partialorder %v4120, 0.0
      %vm4376 = vcmp.ge.f32.partialorder %v4123, 0.0
      %vm4377 = vcmp.ge.f32.partialorder %v4125, 0.0
      %vm4378 = vcmp.ge.f32.partialorder %v4128, 0.0
      %vm4379 = vcmp.ge.f32.partialorder %v4130, 0.0
      %vm4380 = vcmp.ge.f32.partialorder %v4133, 0.0
      %vm4381 = vcmp.ge.f32.partialorder %v4135, 0.0
      %vm4382 = vcmp.ge.f32.partialorder %v4138, 0.0
      %vm4383 = vcmp.ge.f32.partialorder %v4140, 0.0
      %vm4384 = vcmp.ge.f32.partialorder %v4143, 0.0
      %vm4385 = vcmp.ge.f32.partialorder %v4145, 0.0
      %vm4386 = vcmp.ge.f32.partialorder %v4148, 0.0
      %vm4387 = vcmp.ge.f32.partialorder %v4150, 0.0
      %vm4388 = vcmp.ge.f32.partialorder %v4153, 0.0
      %vm4389 = vcmp.ge.f32.partialorder %v4155, 0.0
      %vm4390 = vcmp.ge.f32.partialorder %v4158, 0.0
      %vm4391 = vcmp.ge.f32.partialorder %v4160, 0.0
      %vm4392 = vcmp.ge.f32.partialorder %v4163, 0.0
      %vm4393 = vcmp.ge.f32.partialorder %v4165, 0.0
      %vm4394 = vcmp.ge.f32.partialorder %v4168, 0.0
      %vm4395 = vcmp.ge.f32.partialorder %v4170, 0.0
      %vm4396 = vcmp.ge.f32.partialorder %v4173, 0.0
      %vm4397 = vcmp.ge.f32.partialorder %v4175, 0.0
      %vm4398 = vcmp.ge.f32.partialorder %v4178, 0.0
      %vm4399 = vcmp.ge.f32.partialorder %v4180, 0.0
      %vm4400 = vcmp.ge.f32.partialorder %v4183, 0.0
      %vm4401 = vcmp.ge.f32.partialorder %v4185, 0.0
      %vm4402 = vcmp.ge.f32.partialorder %v4188, 0.0
      %vm4403 = vcmp.ge.f32.partialorder %v4190, 0.0
      %vm4404 = vcmp.ge.f32.partialorder %v4193, 0.0
      %vm4405 = vcmp.ge.f32.partialorder %v4195, 0.0
      %vm4406 = vcmp.ge.f32.partialorder %v4198, 0.0
      %vm4407 = vcmp.ge.f32.partialorder %v4200, 0.0
      %vm4408 = vcmp.ge.f32.partialorder %v4203, 0.0
      %vm4409 = vcmp.ge.f32.partialorder %v4205, 0.0
      %vm4410 = vcmp.ge.f32.partialorder %v4208, 0.0
      %vm4411 = vcmp.ge.f32.partialorder %v4210, 0.0
      %vm4412 = vcmp.ge.f32.partialorder %v4213, 0.0
      %vm4413 = vcmp.ge.f32.partialorder %v4215, 0.0
      %vm4414 = vcmp.ge.f32.partialorder %v4218, 0.0
      %vm4415 = vcmp.ge.f32.partialorder %v4220, 0.0
      %vm4416 = vcmp.ge.f32.partialorder %v4223, 0.0
      %vm4417 = vcmp.ge.f32.partialorder %v4225, 0.0
      %vm4418 = vcmp.ge.f32.partialorder %v4228, 0.0
      %vm4419 = vcmp.ge.f32.partialorder %v4230, 0.0
      %vm4420 = vcmp.ge.f32.partialorder %v4233, 0.0
      %vm4421 = vcmp.ge.f32.partialorder %v4235, 0.0
      %vm4422 = vcmp.ge.f32.partialorder %v4238, 0.0
      %vm4423 = vcmp.ge.f32.partialorder %v4240, 0.0
      %vm4424 = vcmp.ge.f32.partialorder %v4243, 0.0
      %vm4425 = vcmp.ge.f32.partialorder %v4245, 0.0
      %vm4426 = vcmp.ge.f32.partialorder %v4248, 0.0
      %vm4427 = vcmp.ge.f32.partialorder %v4250, 0.0
      %vm4428 = vcmp.ge.f32.partialorder %v4253, 0.0
      %vm4429 = vcmp.ge.f32.partialorder %v4255, 0.0
      %vm4430 = vcmp.ge.f32.partialorder %v4258, 0.0
      %vm4431 = vcmp.ge.f32.partialorder %v4260, 0.0
      %vm4432 = vcmp.ge.f32.partialorder %v4263, 0.0
      %vm4433 = vcmp.ge.f32.partialorder %v4265, 0.0
      %vm4434 = vcmp.ge.f32.partialorder %v4268, 0.0
      %vm4435 = vcmp.ge.f32.partialorder %v4270, 0.0
      %vm4436 = vcmp.ge.f32.partialorder %v4273, 0.0
      %vm4437 = vcmp.ge.f32.partialorder %v4275, 0.0
      %vm4438 = vcmp.ge.f32.partialorder %v4278, 0.0
      %vm4439 = vcmp.ge.f32.partialorder %v4280, 0.0
      %vm4440 = vcmp.ge.f32.partialorder %v4283, 0.0
      %vm4441 = vcmp.ge.f32.partialorder %v4285, 0.0
      %vm4442 = vcmp.ge.f32.partialorder %v4288, 0.0
      %vm4443 = vcmp.ge.f32.partialorder %v4290, 0.0
      %vm4444 = vcmp.ge.f32.partialorder %v4293, 0.0
      %vm4445 = vcmp.ge.f32.partialorder %v4295, 0.0
      %vm4446 = vcmp.ge.f32.partialorder %v4298, 0.0
      %vm4447 = vcmp.ge.f32.partialorder %v4300, 0.0
      %vm4448 = vcmp.ge.f32.partialorder %v4303, 0.0
      %vm4449 = vcmp.ge.f32.partialorder %v4305, 0.0
      %vm4450 = vcmp.ge.f32.partialorder %v4308, 0.0
      %vm4451 = vcmp.ge.f32.partialorder %v4310, 0.0
      %vm4452 = vcmp.ge.f32.partialorder %v4313, 0.0
      %vm4453 = vcmp.ge.f32.partialorder %v4315, 0.0
      %vm4454 = vcmp.ge.f32.partialorder %v4318, 0.0
      %vm4455 = vcmp.ge.f32.partialorder %v4320, 0.0
      %vm4456 = vcmp.ge.f32.partialorder %v4323, 0.0
      %vm4457 = vcmp.ge.f32.partialorder %v4325, 0.0
      %vm4458 = vcmp.ge.f32.partialorder %v4328, 0.0
      %vm4459 = vcmp.ge.f32.partialorder %v4330, 0.0
      %v4460 = vmul.f32 %v4013, 0.01
      %v4461 = vmul.f32 %v4015, 0.01
      %v4462 = vmul.f32 %v4018, 0.01
      %v4463 = vmul.f32 %v4020, 0.01
      %v4464 = vmul.f32 %v4023, 0.01
      %v4465 = vmul.f32 %v4025, 0.01
      %v4466 = vmul.f32 %v4028, 0.01
      %v4467 = vmul.f32 %v4030, 0.01
      %v4468 = vmul.f32 %v4033, 0.01
      %v4469 = vmul.f32 %v4035, 0.01
      %v4470 = vmul.f32 %v4038, 0.01
      %v4471 = vmul.f32 %v4040, 0.01
      %v4472 = vmul.f32 %v4043, 0.01
      %v4473 = vmul.f32 %v4045, 0.01
      %v4474 = vmul.f32 %v4048, 0.01
      %v4475 = vmul.f32 %v4050, 0.01
      %v4476 = vmul.f32 %v4053, 0.01
      %v4477 = vmul.f32 %v4055, 0.01
      %v4478 = vmul.f32 %v4058, 0.01
      %v4479 = vmul.f32 %v4060, 0.01
      %v4480 = vmul.f32 %v4063, 0.01
      %v4481 = vmul.f32 %v4065, 0.01
      %v4482 = vmul.f32 %v4068, 0.01
      %v4483 = vmul.f32 %v4070, 0.01
      %v4484 = vmul.f32 %v4073, 0.01
      %v4485 = vmul.f32 %v4075, 0.01
      %v4486 = vmul.f32 %v4078, 0.01
      %v4487 = vmul.f32 %v4080, 0.01
      %v4488 = vmul.f32 %v4083, 0.01
      %v4489 = vmul.f32 %v4085, 0.01
      %v4490 = vmul.f32 %v4088, 0.01
      %v4491 = vmul.f32 %v4090, 0.01
      %v4492 = vmul.f32 %v4093, 0.01
      %v4493 = vmul.f32 %v4095, 0.01
      %v4494 = vmul.f32 %v4098, 0.01
      %v4495 = vmul.f32 %v4100, 0.01
      %v4496 = vmul.f32 %v4103, 0.01
      %v4497 = vmul.f32 %v4105, 0.01
      %v4498 = vmul.f32 %v4108, 0.01
      %v4499 = vmul.f32 %v4110, 0.01
      %v4500 = vmul.f32 %v4113, 0.01
      %v4501 = vmul.f32 %v4115, 0.01
      %v4502 = vmul.f32 %v4118, 0.01
      %v4503 = vmul.f32 %v4120, 0.01
      %v4504 = vmul.f32 %v4123, 0.01
      %v4505 = vmul.f32 %v4125, 0.01
      %v4506 = vmul.f32 %v4128, 0.01
      %v4507 = vmul.f32 %v4130, 0.01
      %v4508 = vmul.f32 %v4133, 0.01
      %v4509 = vmul.f32 %v4135, 0.01
      %v4510 = vmul.f32 %v4138, 0.01
      %v4511 = vmul.f32 %v4140, 0.01
      %v4512 = vmul.f32 %v4143, 0.01
      %v4513 = vmul.f32 %v4145, 0.01
      %v4514 = vmul.f32 %v4148, 0.01
      %v4515 = vmul.f32 %v4150, 0.01
      %v4516 = vmul.f32 %v4153, 0.01
      %v4517 = vmul.f32 %v4155, 0.01
      %v4518 = vmul.f32 %v4158, 0.01
      %v4519 = vmul.f32 %v4160, 0.01
      %v4520 = vmul.f32 %v4163, 0.01
      %v4521 = vmul.f32 %v4165, 0.01
      %v4522 = vmul.f32 %v4168, 0.01
      %v4523 = vmul.f32 %v4170, 0.01
      %v4524 = vmul.f32 %v4173, 0.01
      %v4525 = vmul.f32 %v4175, 0.01
      %v4526 = vmul.f32 %v4178, 0.01
      %v4527 = vmul.f32 %v4180, 0.01
      %v4528 = vmul.f32 %v4183, 0.01
      %v4529 = vmul.f32 %v4185, 0.01
      %v4530 = vmul.f32 %v4188, 0.01
      %v4531 = vmul.f32 %v4190, 0.01
      %v4532 = vmul.f32 %v4193, 0.01
      %v4533 = vmul.f32 %v4195, 0.01
      %v4534 = vmul.f32 %v4198, 0.01
      %v4535 = vmul.f32 %v4200, 0.01
      %v4536 = vmul.f32 %v4203, 0.01
      %v4537 = vmul.f32 %v4205, 0.01
      %v4538 = vmul.f32 %v4208, 0.01
      %v4539 = vmul.f32 %v4210, 0.01
      %v4540 = vmul.f32 %v4213, 0.01
      %v4541 = vmul.f32 %v4215, 0.01
      %v4542 = vmul.f32 %v4218, 0.01
      %v4543 = vmul.f32 %v4220, 0.01
      %v4544 = vmul.f32 %v4223, 0.01
      %v4545 = vmul.f32 %v4225, 0.01
      %v4546 = vmul.f32 %v4228, 0.01
      %v4547 = vmul.f32 %v4230, 0.01
      %v4548 = vmul.f32 %v4233, 0.01
      %v4549 = vmul.f32 %v4235, 0.01
      %v4550 = vmul.f32 %v4238, 0.01
      %v4551 = vmul.f32 %v4240, 0.01
      %v4552 = vmul.f32 %v4243, 0.01
      %v4553 = vmul.f32 %v4245, 0.01
      %v4554 = vmul.f32 %v4248, 0.01
      %v4555 = vmul.f32 %v4250, 0.01
      %v4556 = vmul.f32 %v4253, 0.01
      %v4557 = vmul.f32 %v4255, 0.01
      %v4558 = vmul.f32 %v4258, 0.01
      %v4559 = vmul.f32 %v4260, 0.01
      %v4560 = vmul.f32 %v4263, 0.01
      %v4561 = vmul.f32 %v4265, 0.01
      %v4562 = vmul.f32 %v4268, 0.01
      %v4563 = vmul.f32 %v4270, 0.01
      %v4564 = vmul.f32 %v4273, 0.01
      %v4565 = vmul.f32 %v4275, 0.01
      %v4566 = vmul.f32 %v4278, 0.01
      %v4567 = vmul.f32 %v4280, 0.01
      %v4568 = vmul.f32 %v4283, 0.01
      %v4569 = vmul.f32 %v4285, 0.01
      %v4570 = vmul.f32 %v4288, 0.01
      %v4571 = vmul.f32 %v4290, 0.01
      %v4572 = vmul.f32 %v4293, 0.01
      %v4573 = vmul.f32 %v4295, 0.01
      %v4574 = vmul.f32 %v4298, 0.01
      %v4575 = vmul.f32 %v4300, 0.01
      %v4576 = vmul.f32 %v4303, 0.01
      %v4577 = vmul.f32 %v4305, 0.01
      %v4578 = vmul.f32 %v4308, 0.01
      %v4579 = vmul.f32 %v4310, 0.01
      %v4580 = vmul.f32 %v4313, 0.01
      %v4581 = vmul.f32 %v4315, 0.01
      %v4582 = vmul.f32 %v4318, 0.01
      %v4583 = vmul.f32 %v4320, 0.01
      %v4584 = vmul.f32 %v4323, 0.01
      %v4585 = vmul.f32 %v4325, 0.01
      %v4586 = vmul.f32 %v4328, 0.01
      %v4587 = vmul.f32 %v4330, 0.01
      %v4588 = vsel %vm4332, %v4013, %v4460
      %v4589 = vsel %vm4333, %v4015, %v4461
      %v4590 = vsel %vm4334, %v4018, %v4462
      %v4591 = vsel %vm4335, %v4020, %v4463
      %v4592 = vsel %vm4336, %v4023, %v4464
      %v4593 = vsel %vm4337, %v4025, %v4465
      %v4594 = vsel %vm4338, %v4028, %v4466
      %v4595 = vsel %vm4339, %v4030, %v4467
      %v4596 = vsel %vm4340, %v4033, %v4468
      %v4597 = vsel %vm4341, %v4035, %v4469
      %v4598 = vsel %vm4342, %v4038, %v4470
      %v4599 = vsel %vm4343, %v4040, %v4471
      %v4600 = vsel %vm4344, %v4043, %v4472
      %v4601 = vsel %vm4345, %v4045, %v4473
      %v4602 = vsel %vm4346, %v4048, %v4474
      %v4603 = vsel %vm4347, %v4050, %v4475
      %v4604 = vsel %vm4348, %v4053, %v4476
      %v4605 = vsel %vm4349, %v4055, %v4477
      %v4606 = vsel %vm4350, %v4058, %v4478
      %v4607 = vsel %vm4351, %v4060, %v4479
      %v4608 = vsel %vm4352, %v4063, %v4480
      %v4609 = vsel %vm4353, %v4065, %v4481
      %v4610 = vsel %vm4354, %v4068, %v4482
      %v4611 = vsel %vm4355, %v4070, %v4483
      %v4612 = vsel %vm4356, %v4073, %v4484
      %v4613 = vsel %vm4357, %v4075, %v4485
      %v4614 = vsel %vm4358, %v4078, %v4486
      %v4615 = vsel %vm4359, %v4080, %v4487
      %v4616 = vsel %vm4360, %v4083, %v4488
      %v4617 = vsel %vm4361, %v4085, %v4489
      %v4618 = vsel %vm4362, %v4088, %v4490
      %v4619 = vsel %vm4363, %v4090, %v4491
      %v4620 = vsel %vm4364, %v4093, %v4492
      %v4621 = vsel %vm4365, %v4095, %v4493
      %v4622 = vsel %vm4366, %v4098, %v4494
      %v4623 = vsel %vm4367, %v4100, %v4495
      %v4624 = vsel %vm4368, %v4103, %v4496
      %v4625 = vsel %vm4369, %v4105, %v4497
      %v4626 = vsel %vm4370, %v4108, %v4498
      %v4627 = vsel %vm4371, %v4110, %v4499
      %v4628 = vsel %vm4372, %v4113, %v4500
      %v4629 = vsel %vm4373, %v4115, %v4501
      %v4630 = vsel %vm4374, %v4118, %v4502
      %v4631 = vsel %vm4375, %v4120, %v4503
      %v4632 = vsel %vm4376, %v4123, %v4504
      %v4633 = vsel %vm4377, %v4125, %v4505
      %v4634 = vsel %vm4378, %v4128, %v4506
      %v4635 = vsel %vm4379, %v4130, %v4507
      %v4636 = vsel %vm4380, %v4133, %v4508
      %v4637 = vsel %vm4381, %v4135, %v4509
      %v4638 = vsel %vm4382, %v4138, %v4510
      %v4639 = vsel %vm4383, %v4140, %v4511
      %v4640 = vsel %vm4384, %v4143, %v4512
      %v4641 = vsel %vm4385, %v4145, %v4513
      %v4642 = vsel %vm4386, %v4148, %v4514
      %v4643 = vsel %vm4387, %v4150, %v4515
      %v4644 = vsel %vm4388, %v4153, %v4516
      %v4645 = vsel %vm4389, %v4155, %v4517
      %v4646 = vsel %vm4390, %v4158, %v4518
      %v4647 = vsel %vm4391, %v4160, %v4519
      %v4648 = vsel %vm4392, %v4163, %v4520
      %v4649 = vsel %vm4393, %v4165, %v4521
      %v4650 = vsel %vm4394, %v4168, %v4522
      %v4651 = vsel %vm4395, %v4170, %v4523
      %v4652 = vsel %vm4396, %v4173, %v4524
      %v4653 = vsel %vm4397, %v4175, %v4525
      %v4654 = vsel %vm4398, %v4178, %v4526
      %v4655 = vsel %vm4399, %v4180, %v4527
      %v4656 = vsel %vm4400, %v4183, %v4528
      %v4657 = vsel %vm4401, %v4185, %v4529
      %v4658 = vsel %vm4402, %v4188, %v4530
      %v4659 = vsel %vm4403, %v4190, %v4531
      %v4660 = vsel %vm4404, %v4193, %v4532
      %v4661 = vsel %vm4405, %v4195, %v4533
      %v4662 = vsel %vm4406, %v4198, %v4534
      %v4663 = vsel %vm4407, %v4200, %v4535
      %v4664 = vsel %vm4408, %v4203, %v4536
      %v4665 = vsel %vm4409, %v4205, %v4537
      %v4666 = vsel %vm4410, %v4208, %v4538
      %v4667 = vsel %vm4411, %v4210, %v4539
      %v4668 = vsel %vm4412, %v4213, %v4540
      %v4669 = vsel %vm4413, %v4215, %v4541
      %v4670 = vsel %vm4414, %v4218, %v4542
      %v4671 = vsel %vm4415, %v4220, %v4543
      %v4672 = vsel %vm4416, %v4223, %v4544
      %v4673 = vsel %vm4417, %v4225, %v4545
      %v4674 = vsel %vm4418, %v4228, %v4546
      %v4675 = vsel %vm4419, %v4230, %v4547
      %v4676 = vsel %vm4420, %v4233, %v4548
      %v4677 = vsel %vm4421, %v4235, %v4549
      %v4678 = vsel %vm4422, %v4238, %v4550
      %v4679 = vsel %vm4423, %v4240, %v4551
      %v4680 = vsel %vm4424, %v4243, %v4552
      %v4681 = vsel %vm4425, %v4245, %v4553
      %v4682 = vsel %vm4426, %v4248, %v4554
      %v4683 = vsel %vm4427, %v4250, %v4555
      %v4684 = vsel %vm4428, %v4253, %v4556
      %v4685 = vsel %vm4429, %v4255, %v4557
      %v4686 = vsel %vm4430, %v4258, %v4558
      %v4687 = vsel %vm4431, %v4260, %v4559
      %v4688 = vsel %vm4432, %v4263, %v4560
      %v4689 = vsel %vm4433, %v4265, %v4561
      %v4690 = vsel %vm4434, %v4268, %v4562
      %v4691 = vsel %vm4435, %v4270, %v4563
      %v4692 = vsel %vm4436, %v4273, %v4564
      %v4693 = vsel %vm4437, %v4275, %v4565
      %v4694 = vsel %vm4438, %v4278, %v4566
      %v4695 = vsel %vm4439, %v4280, %v4567
      %v4696 = vsel %vm4440, %v4283, %v4568
      %v4697 = vsel %vm4441, %v4285, %v4569
      %v4698 = vsel %vm4442, %v4288, %v4570
      %v4699 = vsel %vm4443, %v4290, %v4571
      %v4700 = vsel %vm4444, %v4293, %v4572
      %v4701 = vsel %vm4445, %v4295, %v4573
      %v4702 = vsel %vm4446, %v4298, %v4574
      %v4703 = vsel %vm4447, %v4300, %v4575
      %v4704 = vsel %vm4448, %v4303, %v4576
      %v4705 = vsel %vm4449, %v4305, %v4577
      %v4706 = vsel %vm4450, %v4308, %v4578
      %v4707 = vsel %vm4451, %v4310, %v4579
      %v4708 = vsel %vm4452, %v4313, %v4580
      %v4709 = vsel %vm4453, %v4315, %v4581
      %v4710 = vsel %vm4454, %v4318, %v4582
      %v4711 = vsel %vm4455, %v4320, %v4583
      %v4712 = vsel %vm4456, %v4323, %v4584
      %v4713 = vsel %vm4457, %v4325, %v4585
      %v4714 = vsel %vm4458, %v4328, %v4586
      %v4715 = vsel %vm4459, %v4330, %v4587
      %v4716 = vpack.c.bf16 %v4589, %v4588
      %v4717 = vpack.c.bf16 %v4591, %v4590
      %v4718 = vpack.c.bf16 %v4593, %v4592
      %v4719 = vpack.c.bf16 %v4595, %v4594
      %v4720 = vpack.c.bf16 %v4597, %v4596
      %v4721 = vpack.c.bf16 %v4599, %v4598
      %v4722 = vpack.c.bf16 %v4601, %v4600
      %v4723 = vpack.c.bf16 %v4603, %v4602
      %v4724 = vpack.c.bf16 %v4605, %v4604
      %v4725 = vpack.c.bf16 %v4607, %v4606
      %v4726 = vpack.c.bf16 %v4609, %v4608
      %v4727 = vpack.c.bf16 %v4611, %v4610
      %v4728 = vpack.c.bf16 %v4613, %v4612
      %v4729 = vpack.c.bf16 %v4615, %v4614
      %v4730 = vpack.c.bf16 %v4617, %v4616
      %v4731 = vpack.c.bf16 %v4619, %v4618
      %v4732 = vpack.c.bf16 %v4621, %v4620
      %v4733 = vpack.c.bf16 %v4623, %v4622
      %v4734 = vpack.c.bf16 %v4625, %v4624
      %v4735 = vpack.c.bf16 %v4627, %v4626
      %v4736 = vpack.c.bf16 %v4629, %v4628
      %v4737 = vpack.c.bf16 %v4631, %v4630
      %v4738 = vpack.c.bf16 %v4633, %v4632
      %v4739 = vpack.c.bf16 %v4635, %v4634
      %v4740 = vpack.c.bf16 %v4637, %v4636
      %v4741 = vpack.c.bf16 %v4639, %v4638
      %v4742 = vpack.c.bf16 %v4641, %v4640
      %v4743 = vpack.c.bf16 %v4643, %v4642
      %v4744 = vpack.c.bf16 %v4645, %v4644
      %v4745 = vpack.c.bf16 %v4647, %v4646
      %v4746 = vpack.c.bf16 %v4649, %v4648
      %v4747 = vpack.c.bf16 %v4651, %v4650
      %v4748 = vpack.c.bf16 %v4653, %v4652
      %v4749 = vpack.c.bf16 %v4655, %v4654
      %v4750 = vpack.c.bf16 %v4657, %v4656
      %v4751 = vpack.c.bf16 %v4659, %v4658
      %v4752 = vpack.c.bf16 %v4661, %v4660
      %v4753 = vpack.c.bf16 %v4663, %v4662
      %v4754 = vpack.c.bf16 %v4665, %v4664
      %v4755 = vpack.c.bf16 %v4667, %v4666
      %v4756 = vpack.c.bf16 %v4669, %v4668
      %v4757 = vpack.c.bf16 %v4671, %v4670
      %v4758 = vpack.c.bf16 %v4673, %v4672
      %v4759 = vpack.c.bf16 %v4675, %v4674
      %v4760 = vpack.c.bf16 %v4677, %v4676
      %v4761 = vpack.c.bf16 %v4679, %v4678
      %v4762 = vpack.c.bf16 %v4681, %v4680
      %v4763 = vpack.c.bf16 %v4683, %v4682
      %v4764 = vpack.c.bf16 %v4685, %v4684
      %v4765 = vpack.c.bf16 %v4687, %v4686
      %v4766 = vpack.c.bf16 %v4689, %v4688
      %v4767 = vpack.c.bf16 %v4691, %v4690
      %v4768 = vpack.c.bf16 %v4693, %v4692
      %v4769 = vpack.c.bf16 %v4695, %v4694
      %v4770 = vpack.c.bf16 %v4697, %v4696
      %v4771 = vpack.c.bf16 %v4699, %v4698
      %v4772 = vpack.c.bf16 %v4701, %v4700
      %v4773 = vpack.c.bf16 %v4703, %v4702
      %v4774 = vpack.c.bf16 %v4705, %v4704
      %v4775 = vpack.c.bf16 %v4707, %v4706
      %v4776 = vpack.c.bf16 %v4709, %v4708
      %v4777 = vpack.c.bf16 %v4711, %v4710
      %v4778 = vpack.c.bf16 %v4713, %v4712
      %v4779 = vpack.c.bf16 %v4715, %v4714
      %v4780 = vld [vmem:[%s5] sm:$0xf]
      %v4781 = vld [vmem:[%s5 + $0x4] sm:$0xf]
      %v4782 = vld [vmem:[%s5 + $0x8] sm:$0xf]
      %v4783 = vld [vmem:[%s5 + $0xc] sm:$0xf]
      %v4784 = vld [vmem:[#allocation2] sm:$0x1]
      %v4786 = vperm.slane %v4784, 0
      %v4792 = vunpack.c.l.b16 %v4780
      %v4793 = vunpack.c.l.b16 %v4781
      %v4794 = vunpack.c.l.b16 %v4782
      %v4795 = vunpack.c.l.b16 %v4783
      %v4796 = vpack.c.b16 %v4793, %v4792
      %v4797 = vpack.c.b16 %v4795, %v4794
      %vm4800 = vcmask 261120
      %v4802 = vsel %vm4800, %v4716, 0
      %v4805 = vsel %vm4800, %v4717, 0
      %v4808 = vsel %vm4800, %v4718, 0
      %v4811 = vsel %vm4800, %v4719, 0
      %v4814 = vsel %vm4800, %v4720, 0
      %v4817 = vsel %vm4800, %v4721, 0
      %v4820 = vsel %vm4800, %v4722, 0
      %v4823 = vsel %vm4800, %v4723, 0
      %v4826 = vsel %vm4800, %v4724, 0
      %v4829 = vsel %vm4800, %v4725, 0
      %v4832 = vsel %vm4800, %v4726, 0
      %v4835 = vsel %vm4800, %v4727, 0
      %v4838 = vsel %vm4800, %v4728, 0
      %v4841 = vsel %vm4800, %v4729, 0
      %v4844 = vsel %vm4800, %v4730, 0
      %v4847 = vsel %vm4800, %v4731, 0
      %v4850 = vsel %vm4800, %v4732, 0
      %v4853 = vsel %vm4800, %v4733, 0
      %v4856 = vsel %vm4800, %v4734, 0
      %v4859 = vsel %vm4800, %v4735, 0
      %v4862 = vsel %vm4800, %v4736, 0
      %v4865 = vsel %vm4800, %v4737, 0
      %v4868 = vsel %vm4800, %v4738, 0
      %v4871 = vsel %vm4800, %v4739, 0
      %v4874 = vsel %vm4800, %v4740, 0
      %v4877 = vsel %vm4800, %v4741, 0
      %v4880 = vsel %vm4800, %v4742, 0
      %v4883 = vsel %vm4800, %v4743, 0
      %v4886 = vsel %vm4800, %v4744, 0
      %v4889 = vsel %vm4800, %v4745, 0
      %v4892 = vsel %vm4800, %v4746, 0
      %v4895 = vsel %vm4800, %v4747, 0
      %v4898 = vsel %vm4800, %v4748, 0
      %v4901 = vsel %vm4800, %v4749, 0
      %v4904 = vsel %vm4800, %v4750, 0
      %v4907 = vsel %vm4800, %v4751, 0
      %v4910 = vsel %vm4800, %v4752, 0
      %v4913 = vsel %vm4800, %v4753, 0
      %v4916 = vsel %vm4800, %v4754, 0
      %v4919 = vsel %vm4800, %v4755, 0
      %v4922 = vsel %vm4800, %v4756, 0
      %v4925 = vsel %vm4800, %v4757, 0
      %v4928 = vsel %vm4800, %v4758, 0
      %v4931 = vsel %vm4800, %v4759, 0
      %v4934 = vsel %vm4800, %v4760, 0
      %v4937 = vsel %vm4800, %v4761, 0
      %v4940 = vsel %vm4800, %v4762, 0
      %v4943 = vsel %vm4800, %v4763, 0
      %v4946 = vsel %vm4800, %v4764, 0
      %v4949 = vsel %vm4800, %v4765, 0
      %v4952 = vsel %vm4800, %v4766, 0
      %v4955 = vsel %vm4800, %v4767, 0
      %v4958 = vsel %vm4800, %v4768, 0
      %v4961 = vsel %vm4800, %v4769, 0
      %v4964 = vsel %vm4800, %v4770, 0
      %v4967 = vsel %vm4800, %v4771, 0
      %v4970 = vsel %vm4800, %v4772, 0
      %v4973 = vsel %vm4800, %v4773, 0
      %v4976 = vsel %vm4800, %v4774, 0
      %v4979 = vsel %vm4800, %v4775, 0
      %v4982 = vsel %vm4800, %v4776, 0
      %v4985 = vsel %vm4800, %v4777, 0
      %v4988 = vsel %vm4800, %v4778, 0
      %v4991 = vsel %vm4800, %v4779, 0
      %4993 = vmatpush.bf16.msra.mxu0 0
      %4994 = vmatpush.bf16.msra.mxu0 0
      %4995 = vmatpush.bf16.msra.mxu0 0
      %4996 = vmatpush.bf16.msra.mxu0 0
      %4997 = vmatpush.bf16.msra.mxu0 0
      %4998 = vmatpush.bf16.msra.mxu0 0
      %4999 = vmatpush.bf16.msra.mxu0 %v4797
      %5000 = vmatpush.bf16.msra.mxu0 %v4796
      %5001 = vmatmul.bf16.gmra.mxu0 %v4802
      %v5002 = vpop.f32.mrf.mxu0
      %v5003 = vadd.f32 %v4786, %v5002
      %v5004 = vpop.f32.mrf.mxu0
      %v5005 = vadd.f32 %v4786, %v5004
      %5006 = vmatmul.bf16.gmra.mxu0 %v4805
      %v5007 = vpop.f32.mrf.mxu0
      %v5008 = vadd.f32 %v4786, %v5007
      %v5009 = vpop.f32.mrf.mxu0
      %v5010 = vadd.f32 %v4786, %v5009
      %5011 = vmatmul.bf16.gmra.mxu0 %v4808
      %v5012 = vpop.f32.mrf.mxu0
      %v5013 = vadd.f32 %v4786, %v5012
      %v5014 = vpop.f32.mrf.mxu0
      %v5015 = vadd.f32 %v4786, %v5014
      %5016 = vmatmul.bf16.gmra.mxu0 %v4811
      %v5017 = vpop.f32.mrf.mxu0
      %v5018 = vadd.f32 %v4786, %v5017
      %v5019 = vpop.f32.mrf.mxu0
      %v5020 = vadd.f32 %v4786, %v5019
      %5021 = vmatmul.bf16.gmra.mxu0 %v4814
      %v5022 = vpop.f32.mrf.mxu0
      %v5023 = vadd.f32 %v4786, %v5022
      %v5024 = vpop.f32.mrf.mxu0
      %v5025 = vadd.f32 %v4786, %v5024
      %5026 = vmatmul.bf16.gmra.mxu0 %v4817
      %v5027 = vpop.f32.mrf.mxu0
      %v5028 = vadd.f32 %v4786, %v5027
      %v5029 = vpop.f32.mrf.mxu0
      %v5030 = vadd.f32 %v4786, %v5029
      %5031 = vmatmul.bf16.gmra.mxu0 %v4820
      %v5032 = vpop.f32.mrf.mxu0
      %v5033 = vadd.f32 %v4786, %v5032
      %v5034 = vpop.f32.mrf.mxu0
      %v5035 = vadd.f32 %v4786, %v5034
      %5036 = vmatmul.bf16.gmra.mxu0 %v4823
      %v5037 = vpop.f32.mrf.mxu0
      %v5038 = vadd.f32 %v4786, %v5037
      %v5039 = vpop.f32.mrf.mxu0
      %v5040 = vadd.f32 %v4786, %v5039
      %5041 = vmatmul.bf16.gmra.mxu0 %v4826
      %v5042 = vpop.f32.mrf.mxu0
      %v5043 = vadd.f32 %v4786, %v5042
      %v5044 = vpop.f32.mrf.mxu0
      %v5045 = vadd.f32 %v4786, %v5044
      %5046 = vmatmul.bf16.gmra.mxu0 %v4829
      %v5047 = vpop.f32.mrf.mxu0
      %v5048 = vadd.f32 %v4786, %v5047
      %v5049 = vpop.f32.mrf.mxu0
      %v5050 = vadd.f32 %v4786, %v5049
      %5051 = vmatmul.bf16.gmra.mxu0 %v4832
      %v5052 = vpop.f32.mrf.mxu0
      %v5053 = vadd.f32 %v4786, %v5052
      %v5054 = vpop.f32.mrf.mxu0
      %v5055 = vadd.f32 %v4786, %v5054
      %5056 = vmatmul.bf16.gmra.mxu0 %v4835
      %v5057 = vpop.f32.mrf.mxu0
      %v5058 = vadd.f32 %v4786, %v5057
      %v5059 = vpop.f32.mrf.mxu0
      %v5060 = vadd.f32 %v4786, %v5059
      %5061 = vmatmul.bf16.gmra.mxu0 %v4838
      %v5062 = vpop.f32.mrf.mxu0
      %v5063 = vadd.f32 %v4786, %v5062
      %v5064 = vpop.f32.mrf.mxu0
      %v5065 = vadd.f32 %v4786, %v5064
      %5066 = vmatmul.bf16.gmra.mxu0 %v4841
      %v5067 = vpop.f32.mrf.mxu0
      %v5068 = vadd.f32 %v4786, %v5067
      %v5069 = vpop.f32.mrf.mxu0
      %v5070 = vadd.f32 %v4786, %v5069
      %5071 = vmatmul.bf16.gmra.mxu0 %v4844
      %v5072 = vpop.f32.mrf.mxu0
      %v5073 = vadd.f32 %v4786, %v5072
      %v5074 = vpop.f32.mrf.mxu0
      %v5075 = vadd.f32 %v4786, %v5074
      %5076 = vmatmul.bf16.gmra.mxu0 %v4847
      %v5077 = vpop.f32.mrf.mxu0
      %v5078 = vadd.f32 %v4786, %v5077
      %v5079 = vpop.f32.mrf.mxu0
      %v5080 = vadd.f32 %v4786, %v5079
      %5081 = vmatmul.bf16.gmra.mxu0 %v4850
      %v5082 = vpop.f32.mrf.mxu0
      %v5083 = vadd.f32 %v4786, %v5082
      %v5084 = vpop.f32.mrf.mxu0
      %v5085 = vadd.f32 %v4786, %v5084
      %5086 = vmatmul.bf16.gmra.mxu0 %v4853
      %v5087 = vpop.f32.mrf.mxu0
      %v5088 = vadd.f32 %v4786, %v5087
      %v5089 = vpop.f32.mrf.mxu0
      %v5090 = vadd.f32 %v4786, %v5089
      %5091 = vmatmul.bf16.gmra.mxu0 %v4856
      %v5092 = vpop.f32.mrf.mxu0
      %v5093 = vadd.f32 %v4786, %v5092
      %v5094 = vpop.f32.mrf.mxu0
      %v5095 = vadd.f32 %v4786, %v5094
      %5096 = vmatmul.bf16.gmra.mxu0 %v4859
      %v5097 = vpop.f32.mrf.mxu0
      %v5098 = vadd.f32 %v4786, %v5097
      %v5099 = vpop.f32.mrf.mxu0
      %v5100 = vadd.f32 %v4786, %v5099
      %5101 = vmatmul.bf16.gmra.mxu0 %v4862
      %v5102 = vpop.f32.mrf.mxu0
      %v5103 = vadd.f32 %v4786, %v5102
      %v5104 = vpop.f32.mrf.mxu0
      %v5105 = vadd.f32 %v4786, %v5104
      %5106 = vmatmul.bf16.gmra.mxu0 %v4865
      %v5107 = vpop.f32.mrf.mxu0
      %v5108 = vadd.f32 %v4786, %v5107
      %v5109 = vpop.f32.mrf.mxu0
      %v5110 = vadd.f32 %v4786, %v5109
      %5111 = vmatmul.bf16.gmra.mxu0 %v4868
      %v5112 = vpop.f32.mrf.mxu0
      %v5113 = vadd.f32 %v4786, %v5112
      %v5114 = vpop.f32.mrf.mxu0
      %v5115 = vadd.f32 %v4786, %v5114
      %5116 = vmatmul.bf16.gmra.mxu0 %v4871
      %v5117 = vpop.f32.mrf.mxu0
      %v5118 = vadd.f32 %v4786, %v5117
      %v5119 = vpop.f32.mrf.mxu0
      %v5120 = vadd.f32 %v4786, %v5119
      %5121 = vmatmul.bf16.gmra.mxu0 %v4874
      %v5122 = vpop.f32.mrf.mxu0
      %v5123 = vadd.f32 %v4786, %v5122
      %v5124 = vpop.f32.mrf.mxu0
      %v5125 = vadd.f32 %v4786, %v5124
      %5126 = vmatmul.bf16.gmra.mxu0 %v4877
      %v5127 = vpop.f32.mrf.mxu0
      %v5128 = vadd.f32 %v4786, %v5127
      %v5129 = vpop.f32.mrf.mxu0
      %v5130 = vadd.f32 %v4786, %v5129
      %5131 = vmatmul.bf16.gmra.mxu0 %v4880
      %v5132 = vpop.f32.mrf.mxu0
      %v5133 = vadd.f32 %v4786, %v5132
      %v5134 = vpop.f32.mrf.mxu0
      %v5135 = vadd.f32 %v4786, %v5134
      %5136 = vmatmul.bf16.gmra.mxu0 %v4883
      %v5137 = vpop.f32.mrf.mxu0
      %v5138 = vadd.f32 %v4786, %v5137
      %v5139 = vpop.f32.mrf.mxu0
      %v5140 = vadd.f32 %v4786, %v5139
      %5141 = vmatmul.bf16.gmra.mxu0 %v4886
      %v5142 = vpop.f32.mrf.mxu0
      %v5143 = vadd.f32 %v4786, %v5142
      %v5144 = vpop.f32.mrf.mxu0
      %v5145 = vadd.f32 %v4786, %v5144
      %5146 = vmatmul.bf16.gmra.mxu0 %v4889
      %v5147 = vpop.f32.mrf.mxu0
      %v5148 = vadd.f32 %v4786, %v5147
      %v5149 = vpop.f32.mrf.mxu0
      %v5150 = vadd.f32 %v4786, %v5149
      %5151 = vmatmul.bf16.gmra.mxu0 %v4892
      %v5152 = vpop.f32.mrf.mxu0
      %v5153 = vadd.f32 %v4786, %v5152
      %v5154 = vpop.f32.mrf.mxu0
      %v5155 = vadd.f32 %v4786, %v5154
      %5156 = vmatmul.bf16.gmra.mxu0 %v4895
      %v5157 = vpop.f32.mrf.mxu0
      %v5158 = vadd.f32 %v4786, %v5157
      %v5159 = vpop.f32.mrf.mxu0
      %v5160 = vadd.f32 %v4786, %v5159
      %5161 = vmatmul.bf16.gmra.mxu0 %v4898
      %v5162 = vpop.f32.mrf.mxu0
      %v5163 = vadd.f32 %v4786, %v5162
      %v5164 = vpop.f32.mrf.mxu0
      %v5165 = vadd.f32 %v4786, %v5164
      %5166 = vmatmul.bf16.gmra.mxu0 %v4901
      %v5167 = vpop.f32.mrf.mxu0
      %v5168 = vadd.f32 %v4786, %v5167
      %v5169 = vpop.f32.mrf.mxu0
      %v5170 = vadd.f32 %v4786, %v5169
      %5171 = vmatmul.bf16.gmra.mxu0 %v4904
      %v5172 = vpop.f32.mrf.mxu0
      %v5173 = vadd.f32 %v4786, %v5172
      %v5174 = vpop.f32.mrf.mxu0
      %v5175 = vadd.f32 %v4786, %v5174
      %5176 = vmatmul.bf16.gmra.mxu0 %v4907
      %v5177 = vpop.f32.mrf.mxu0
      %v5178 = vadd.f32 %v4786, %v5177
      %v5179 = vpop.f32.mrf.mxu0
      %v5180 = vadd.f32 %v4786, %v5179
      %5181 = vmatmul.bf16.gmra.mxu0 %v4910
      %v5182 = vpop.f32.mrf.mxu0
      %v5183 = vadd.f32 %v4786, %v5182
      %v5184 = vpop.f32.mrf.mxu0
      %v5185 = vadd.f32 %v4786, %v5184
      %5186 = vmatmul.bf16.gmra.mxu0 %v4913
      %v5187 = vpop.f32.mrf.mxu0
      %v5188 = vadd.f32 %v4786, %v5187
      %v5189 = vpop.f32.mrf.mxu0
      %v5190 = vadd.f32 %v4786, %v5189
      %5191 = vmatmul.bf16.gmra.mxu0 %v4916
      %v5192 = vpop.f32.mrf.mxu0
      %v5193 = vadd.f32 %v4786, %v5192
      %v5194 = vpop.f32.mrf.mxu0
      %v5195 = vadd.f32 %v4786, %v5194
      %5196 = vmatmul.bf16.gmra.mxu0 %v4919
      %v5197 = vpop.f32.mrf.mxu0
      %v5198 = vadd.f32 %v4786, %v5197
      %v5199 = vpop.f32.mrf.mxu0
      %v5200 = vadd.f32 %v4786, %v5199
      %5201 = vmatmul.bf16.gmra.mxu0 %v4922
      %v5202 = vpop.f32.mrf.mxu0
      %v5203 = vadd.f32 %v4786, %v5202
      %v5204 = vpop.f32.mrf.mxu0
      %v5205 = vadd.f32 %v4786, %v5204
      %5206 = vmatmul.bf16.gmra.mxu0 %v4925
      %v5207 = vpop.f32.mrf.mxu0
      %v5208 = vadd.f32 %v4786, %v5207
      %v5209 = vpop.f32.mrf.mxu0
      %v5210 = vadd.f32 %v4786, %v5209
      %5211 = vmatmul.bf16.gmra.mxu0 %v4928
      %v5212 = vpop.f32.mrf.mxu0
      %v5213 = vadd.f32 %v4786, %v5212
      %v5214 = vpop.f32.mrf.mxu0
      %v5215 = vadd.f32 %v4786, %v5214
      %5216 = vmatmul.bf16.gmra.mxu0 %v4931
      %v5217 = vpop.f32.mrf.mxu0
      %v5218 = vadd.f32 %v4786, %v5217
      %v5219 = vpop.f32.mrf.mxu0
      %v5220 = vadd.f32 %v4786, %v5219
      %5221 = vmatmul.bf16.gmra.mxu0 %v4934
      %v5222 = vpop.f32.mrf.mxu0
      %v5223 = vadd.f32 %v4786, %v5222
      %v5224 = vpop.f32.mrf.mxu0
      %v5225 = vadd.f32 %v4786, %v5224
      %5226 = vmatmul.bf16.gmra.mxu0 %v4937
      %v5227 = vpop.f32.mrf.mxu0
      %v5228 = vadd.f32 %v4786, %v5227
      %v5229 = vpop.f32.mrf.mxu0
      %v5230 = vadd.f32 %v4786, %v5229
      %5231 = vmatmul.bf16.gmra.mxu0 %v4940
      %v5232 = vpop.f32.mrf.mxu0
      %v5233 = vadd.f32 %v4786, %v5232
      %v5234 = vpop.f32.mrf.mxu0
      %v5235 = vadd.f32 %v4786, %v5234
      %5236 = vmatmul.bf16.gmra.mxu0 %v4943
      %v5237 = vpop.f32.mrf.mxu0
      %v5238 = vadd.f32 %v4786, %v5237
      %v5239 = vpop.f32.mrf.mxu0
      %v5240 = vadd.f32 %v4786, %v5239
      %5241 = vmatmul.bf16.gmra.mxu0 %v4946
      %v5242 = vpop.f32.mrf.mxu0
      %v5243 = vadd.f32 %v4786, %v5242
      %v5244 = vpop.f32.mrf.mxu0
      %v5245 = vadd.f32 %v4786, %v5244
      %5246 = vmatmul.bf16.gmra.mxu0 %v4949
      %v5247 = vpop.f32.mrf.mxu0
      %v5248 = vadd.f32 %v4786, %v5247
      %v5249 = vpop.f32.mrf.mxu0
      %v5250 = vadd.f32 %v4786, %v5249
      %5251 = vmatmul.bf16.gmra.mxu0 %v4952
      %v5252 = vpop.f32.mrf.mxu0
      %v5253 = vadd.f32 %v4786, %v5252
      %v5254 = vpop.f32.mrf.mxu0
      %v5255 = vadd.f32 %v4786, %v5254
      %5256 = vmatmul.bf16.gmra.mxu0 %v4955
      %v5257 = vpop.f32.mrf.mxu0
      %v5258 = vadd.f32 %v4786, %v5257
      %v5259 = vpop.f32.mrf.mxu0
      %v5260 = vadd.f32 %v4786, %v5259
      %5261 = vmatmul.bf16.gmra.mxu0 %v4958
      %v5262 = vpop.f32.mrf.mxu0
      %v5263 = vadd.f32 %v4786, %v5262
      %v5264 = vpop.f32.mrf.mxu0
      %v5265 = vadd.f32 %v4786, %v5264
      %5266 = vmatmul.bf16.gmra.mxu0 %v4961
      %v5267 = vpop.f32.mrf.mxu0
      %v5268 = vadd.f32 %v4786, %v5267
      %v5269 = vpop.f32.mrf.mxu0
      %v5270 = vadd.f32 %v4786, %v5269
      %5271 = vmatmul.bf16.gmra.mxu0 %v4964
      %v5272 = vpop.f32.mrf.mxu0
      %v5273 = vadd.f32 %v4786, %v5272
      %v5274 = vpop.f32.mrf.mxu0
      %v5275 = vadd.f32 %v4786, %v5274
      %5276 = vmatmul.bf16.gmra.mxu0 %v4967
      %v5277 = vpop.f32.mrf.mxu0
      %v5278 = vadd.f32 %v4786, %v5277
      %v5279 = vpop.f32.mrf.mxu0
      %v5280 = vadd.f32 %v4786, %v5279
      %5281 = vmatmul.bf16.gmra.mxu0 %v4970
      %v5282 = vpop.f32.mrf.mxu0
      %v5283 = vadd.f32 %v4786, %v5282
      %v5284 = vpop.f32.mrf.mxu0
      %v5285 = vadd.f32 %v4786, %v5284
      %5286 = vmatmul.bf16.gmra.mxu0 %v4973
      %v5287 = vpop.f32.mrf.mxu0
      %v5288 = vadd.f32 %v4786, %v5287
      %v5289 = vpop.f32.mrf.mxu0
      %v5290 = vadd.f32 %v4786, %v5289
      %5291 = vmatmul.bf16.gmra.mxu0 %v4976
      %v5292 = vpop.f32.mrf.mxu0
      %v5293 = vadd.f32 %v4786, %v5292
      %v5294 = vpop.f32.mrf.mxu0
      %v5295 = vadd.f32 %v4786, %v5294
      %5296 = vmatmul.bf16.gmra.mxu0 %v4979
      %v5297 = vpop.f32.mrf.mxu0
      %v5298 = vadd.f32 %v4786, %v5297
      %v5299 = vpop.f32.mrf.mxu0
      %v5300 = vadd.f32 %v4786, %v5299
      %5301 = vmatmul.bf16.gmra.mxu0 %v4982
      %v5302 = vpop.f32.mrf.mxu0
      %v5303 = vadd.f32 %v4786, %v5302
      %v5304 = vpop.f32.mrf.mxu0
      %v5305 = vadd.f32 %v4786, %v5304
      %5306 = vmatmul.bf16.gmra.mxu0 %v4985
      %v5307 = vpop.f32.mrf.mxu0
      %v5308 = vadd.f32 %v4786, %v5307
      %v5309 = vpop.f32.mrf.mxu0
      %v5310 = vadd.f32 %v4786, %v5309
      %5311 = vmatmul.bf16.gmra.mxu0 %v4988
      %v5312 = vpop.f32.mrf.mxu0
      %v5313 = vadd.f32 %v4786, %v5312
      %v5314 = vpop.f32.mrf.mxu0
      %v5315 = vadd.f32 %v4786, %v5314
      %5316 = vmatmul.bf16.gmra.mxu0 %v4991
      %v5317 = vpop.f32.mrf.mxu0
      %v5318 = vadd.f32 %v4786, %v5317
      %v5319 = vpop.f32.mrf.mxu0
      %v5320 = vadd.f32 %v4786, %v5319
      %5321 = vdwg.mxu0
      %v5322 = vtanh.pop %v5003
      %v5323 = vtanh.pop %v5005
      %v5324 = vtanh.pop %v5008
      %v5325 = vtanh.pop %v5010
      %v5326 = vtanh.pop %v5013
      %v5327 = vtanh.pop %v5015
      %v5328 = vtanh.pop %v5018
      %v5329 = vtanh.pop %v5020
      %v5330 = vtanh.pop %v5023
      %v5331 = vtanh.pop %v5025
      %v5332 = vtanh.pop %v5028
      %v5333 = vtanh.pop %v5030
      %v5334 = vtanh.pop %v5033
      %v5335 = vtanh.pop %v5035
      %v5336 = vtanh.pop %v5038
      %v5337 = vtanh.pop %v5040
      %v5338 = vtanh.pop %v5043
      %v5339 = vtanh.pop %v5045
      %v5340 = vtanh.pop %v5048
      %v5341 = vtanh.pop %v5050
      %v5342 = vtanh.pop %v5053
      %v5343 = vtanh.pop %v5055
      %v5344 = vtanh.pop %v5058
      %v5345 = vtanh.pop %v5060
      %v5346 = vtanh.pop %v5063
      %v5347 = vtanh.pop %v5065
      %v5348 = vtanh.pop %v5068
      %v5349 = vtanh.pop %v5070
      %v5350 = vtanh.pop %v5073
      %v5351 = vtanh.pop %v5075
      %v5352 = vtanh.pop %v5078
      %v5353 = vtanh.pop %v5080
      %v5354 = vtanh.pop %v5083
      %v5355 = vtanh.pop %v5085
      %v5356 = vtanh.pop %v5088
      %v5357 = vtanh.pop %v5090
      %v5358 = vtanh.pop %v5093
      %v5359 = vtanh.pop %v5095
      %v5360 = vtanh.pop %v5098
      %v5361 = vtanh.pop %v5100
      %v5362 = vtanh.pop %v5103
      %v5363 = vtanh.pop %v5105
      %v5364 = vtanh.pop %v5108
      %v5365 = vtanh.pop %v5110
      %v5366 = vtanh.pop %v5113
      %v5367 = vtanh.pop %v5115
      %v5368 = vtanh.pop %v5118
      %v5369 = vtanh.pop %v5120
      %v5370 = vtanh.pop %v5123
      %v5371 = vtanh.pop %v5125
      %v5372 = vtanh.pop %v5128
      %v5373 = vtanh.pop %v5130
      %v5374 = vtanh.pop %v5133
      %v5375 = vtanh.pop %v5135
      %v5376 = vtanh.pop %v5138
      %v5377 = vtanh.pop %v5140
      %v5378 = vtanh.pop %v5143
      %v5379 = vtanh.pop %v5145
      %v5380 = vtanh.pop %v5148
      %v5381 = vtanh.pop %v5150
      %v5382 = vtanh.pop %v5153
      %v5383 = vtanh.pop %v5155
      %v5384 = vtanh.pop %v5158
      %v5385 = vtanh.pop %v5160
      %v5386 = vtanh.pop %v5163
      %v5387 = vtanh.pop %v5165
      %v5388 = vtanh.pop %v5168
      %v5389 = vtanh.pop %v5170
      %v5390 = vtanh.pop %v5173
      %v5391 = vtanh.pop %v5175
      %v5392 = vtanh.pop %v5178
      %v5393 = vtanh.pop %v5180
      %v5394 = vtanh.pop %v5183
      %v5395 = vtanh.pop %v5185
      %v5396 = vtanh.pop %v5188
      %v5397 = vtanh.pop %v5190
      %v5398 = vtanh.pop %v5193
      %v5399 = vtanh.pop %v5195
      %v5400 = vtanh.pop %v5198
      %v5401 = vtanh.pop %v5200
      %v5402 = vtanh.pop %v5203
      %v5403 = vtanh.pop %v5205
      %v5404 = vtanh.pop %v5208
      %v5405 = vtanh.pop %v5210
      %v5406 = vtanh.pop %v5213
      %v5407 = vtanh.pop %v5215
      %v5408 = vtanh.pop %v5218
      %v5409 = vtanh.pop %v5220
      %v5410 = vtanh.pop %v5223
      %v5411 = vtanh.pop %v5225
      %v5412 = vtanh.pop %v5228
      %v5413 = vtanh.pop %v5230
      %v5414 = vtanh.pop %v5233
      %v5415 = vtanh.pop %v5235
      %v5416 = vtanh.pop %v5238
      %v5417 = vtanh.pop %v5240
      %v5418 = vtanh.pop %v5243
      %v5419 = vtanh.pop %v5245
      %v5420 = vtanh.pop %v5248
      %v5421 = vtanh.pop %v5250
      %v5422 = vtanh.pop %v5253
      %v5423 = vtanh.pop %v5255
      %v5424 = vtanh.pop %v5258
      %v5425 = vtanh.pop %v5260
      %v5426 = vtanh.pop %v5263
      %v5427 = vtanh.pop %v5265
      %v5428 = vtanh.pop %v5268
      %v5429 = vtanh.pop %v5270
      %v5430 = vtanh.pop %v5273
      %v5431 = vtanh.pop %v5275
      %v5432 = vtanh.pop %v5278
      %v5433 = vtanh.pop %v5280
      %v5434 = vtanh.pop %v5283
      %v5435 = vtanh.pop %v5285
      %v5436 = vtanh.pop %v5288
      %v5437 = vtanh.pop %v5290
      %v5438 = vtanh.pop %v5293
      %v5439 = vtanh.pop %v5295
      %v5440 = vtanh.pop %v5298
      %v5441 = vtanh.pop %v5300
      %v5442 = vtanh.pop %v5303
      %v5443 = vtanh.pop %v5305
      %v5444 = vtanh.pop %v5308
      %v5445 = vtanh.pop %v5310
      %v5446 = vtanh.pop %v5313
      %v5447 = vtanh.pop %v5315
      %v5448 = vtanh.pop %v5318
      %v5449 = vtanh.pop %v5320
      %vm5450 = vcmask 7168
      %5451 = vst.msk [vmem:[%s282] sm:$0xff] %vm5450, %v5322
      %5452 = vst.msk [vmem:[%s282 + $0x8] sm:$0xff] %vm5450, %v5323
      %5453 = vst.msk [vmem:[%s282 + $0x10] sm:$0xff] %vm5450, %v5324
      %5454 = vst.msk [vmem:[%s282 + $0x18] sm:$0xff] %vm5450, %v5325
      %5455 = vst.msk [vmem:[%s282 + $0x20] sm:$0xff] %vm5450, %v5326
      %5456 = vst.msk [vmem:[%s282 + $0x28] sm:$0xff] %vm5450, %v5327
      %5457 = vst.msk [vmem:[%s282 + $0x30] sm:$0xff] %vm5450, %v5328
      %5458 = vst.msk [vmem:[%s282 + $0x38] sm:$0xff] %vm5450, %v5329
      %5459 = vst.msk [vmem:[%s282 + $0x40] sm:$0xff] %vm5450, %v5330
      %5460 = vst.msk [vmem:[%s282 + $0x48] sm:$0xff] %vm5450, %v5331
      %5461 = vst.msk [vmem:[%s282 + $0x50] sm:$0xff] %vm5450, %v5332
      %5462 = vst.msk [vmem:[%s282 + $0x58] sm:$0xff] %vm5450, %v5333
      %5463 = vst.msk [vmem:[%s282 + $0x60] sm:$0xff] %vm5450, %v5334
      %5464 = vst.msk [vmem:[%s282 + $0x68] sm:$0xff] %vm5450, %v5335
      %5465 = vst.msk [vmem:[%s282 + $0x70] sm:$0xff] %vm5450, %v5336
      %5466 = vst.msk [vmem:[%s282 + $0x78] sm:$0xff] %vm5450, %v5337
      %5467 = vst.msk [vmem:[%s282 + $0x80] sm:$0xff] %vm5450, %v5338
      %5468 = vst.msk [vmem:[%s282 + $0x88] sm:$0xff] %vm5450, %v5339
      %5469 = vst.msk [vmem:[%s282 + $0x90] sm:$0xff] %vm5450, %v5340
      %5470 = vst.msk [vmem:[%s282 + $0x98] sm:$0xff] %vm5450, %v5341
      %5471 = vst.msk [vmem:[%s282 + $0xa0] sm:$0xff] %vm5450, %v5342
      %5472 = vst.msk [vmem:[%s282 + $0xa8] sm:$0xff] %vm5450, %v5343
      %5473 = vst.msk [vmem:[%s282 + $0xb0] sm:$0xff] %vm5450, %v5344
      %5474 = vst.msk [vmem:[%s282 + $0xb8] sm:$0xff] %vm5450, %v5345
      %5475 = vst.msk [vmem:[%s282 + $0xc0] sm:$0xff] %vm5450, %v5346
      %5476 = vst.msk [vmem:[%s282 + $0xc8] sm:$0xff] %vm5450, %v5347
      %5477 = vst.msk [vmem:[%s282 + $0xd0] sm:$0xff] %vm5450, %v5348
      %5478 = vst.msk [vmem:[%s282 + $0xd8] sm:$0xff] %vm5450, %v5349
      %5479 = vst.msk [vmem:[%s282 + $0xe0] sm:$0xff] %vm5450, %v5350
      %5480 = vst.msk [vmem:[%s282 + $0xe8] sm:$0xff] %vm5450, %v5351
      %5481 = vst.msk [vmem:[%s282 + $0xf0] sm:$0xff] %vm5450, %v5352
      %5482 = vst.msk [vmem:[%s282 + $0xf8] sm:$0xff] %vm5450, %v5353
      %5483 = vst.msk [vmem:[%s282 + $0x100] sm:$0xff] %vm5450, %v5354
      %5484 = vst.msk [vmem:[%s282 + $0x108] sm:$0xff] %vm5450, %v5355
      %5485 = vst.msk [vmem:[%s282 + $0x110] sm:$0xff] %vm5450, %v5356
      %5486 = vst.msk [vmem:[%s282 + $0x118] sm:$0xff] %vm5450, %v5357
      %5487 = vst.msk [vmem:[%s282 + $0x120] sm:$0xff] %vm5450, %v5358
      %5488 = vst.msk [vmem:[%s282 + $0x128] sm:$0xff] %vm5450, %v5359
      %5489 = vst.msk [vmem:[%s282 + $0x130] sm:$0xff] %vm5450, %v5360
      %5490 = vst.msk [vmem:[%s282 + $0x138] sm:$0xff] %vm5450, %v5361
      %5491 = vst.msk [vmem:[%s282 + $0x140] sm:$0xff] %vm5450, %v5362
      %5492 = vst.msk [vmem:[%s282 + $0x148] sm:$0xff] %vm5450, %v5363
      %5493 = vst.msk [vmem:[%s282 + $0x150] sm:$0xff] %vm5450, %v5364
      %5494 = vst.msk [vmem:[%s282 + $0x158] sm:$0xff] %vm5450, %v5365
      %5495 = vst.msk [vmem:[%s282 + $0x160] sm:$0xff] %vm5450, %v5366
      %5496 = vst.msk [vmem:[%s282 + $0x168] sm:$0xff] %vm5450, %v5367
      %5497 = vst.msk [vmem:[%s282 + $0x170] sm:$0xff] %vm5450, %v5368
      %5498 = vst.msk [vmem:[%s282 + $0x178] sm:$0xff] %vm5450, %v5369
      %5499 = vst.msk [vmem:[%s282 + $0x180] sm:$0xff] %vm5450, %v5370
      %5500 = vst.msk [vmem:[%s282 + $0x188] sm:$0xff] %vm5450, %v5371
      %5501 = vst.msk [vmem:[%s282 + $0x190] sm:$0xff] %vm5450, %v5372
      %5502 = vst.msk [vmem:[%s282 + $0x198] sm:$0xff] %vm5450, %v5373
      %5503 = vst.msk [vmem:[%s282 + $0x1a0] sm:$0xff] %vm5450, %v5374
      %5504 = vst.msk [vmem:[%s282 + $0x1a8] sm:$0xff] %vm5450, %v5375
      %5505 = vst.msk [vmem:[%s282 + $0x1b0] sm:$0xff] %vm5450, %v5376
      %5506 = vst.msk [vmem:[%s282 + $0x1b8] sm:$0xff] %vm5450, %v5377
      %5507 = vst.msk [vmem:[%s282 + $0x1c0] sm:$0xff] %vm5450, %v5378
      %5508 = vst.msk [vmem:[%s282 + $0x1c8] sm:$0xff] %vm5450, %v5379
      %5509 = vst.msk [vmem:[%s282 + $0x1d0] sm:$0xff] %vm5450, %v5380
      %5510 = vst.msk [vmem:[%s282 + $0x1d8] sm:$0xff] %vm5450, %v5381
      %5511 = vst.msk [vmem:[%s282 + $0x1e0] sm:$0xff] %vm5450, %v5382
      %5512 = vst.msk [vmem:[%s282 + $0x1e8] sm:$0xff] %vm5450, %v5383
      %5513 = vst.msk [vmem:[%s282 + $0x1f0] sm:$0xff] %vm5450, %v5384
      %5514 = vst.msk [vmem:[%s282 + $0x1f8] sm:$0xff] %vm5450, %v5385
      %5515 = vst.msk [vmem:[%s282 + $0x200] sm:$0xff] %vm5450, %v5386
      %5516 = vst.msk [vmem:[%s282 + $0x208] sm:$0xff] %vm5450, %v5387
      %5517 = vst.msk [vmem:[%s282 + $0x210] sm:$0xff] %vm5450, %v5388
      %5518 = vst.msk [vmem:[%s282 + $0x218] sm:$0xff] %vm5450, %v5389
      %5519 = vst.msk [vmem:[%s282 + $0x220] sm:$0xff] %vm5450, %v5390
      %5520 = vst.msk [vmem:[%s282 + $0x228] sm:$0xff] %vm5450, %v5391
      %5521 = vst.msk [vmem:[%s282 + $0x230] sm:$0xff] %vm5450, %v5392
      %5522 = vst.msk [vmem:[%s282 + $0x238] sm:$0xff] %vm5450, %v5393
      %5523 = vst.msk [vmem:[%s282 + $0x240] sm:$0xff] %vm5450, %v5394
      %5524 = vst.msk [vmem:[%s282 + $0x248] sm:$0xff] %vm5450, %v5395
      %5525 = vst.msk [vmem:[%s282 + $0x250] sm:$0xff] %vm5450, %v5396
      %5526 = vst.msk [vmem:[%s282 + $0x258] sm:$0xff] %vm5450, %v5397
      %5527 = vst.msk [vmem:[%s282 + $0x260] sm:$0xff] %vm5450, %v5398
      %5528 = vst.msk [vmem:[%s282 + $0x268] sm:$0xff] %vm5450, %v5399
      %5529 = vst.msk [vmem:[%s282 + $0x270] sm:$0xff] %vm5450, %v5400
      %5530 = vst.msk [vmem:[%s282 + $0x278] sm:$0xff] %vm5450, %v5401
      %5531 = vst.msk [vmem:[%s282 + $0x280] sm:$0xff] %vm5450, %v5402
      %5532 = vst.msk [vmem:[%s282 + $0x288] sm:$0xff] %vm5450, %v5403
      %5533 = vst.msk [vmem:[%s282 + $0x290] sm:$0xff] %vm5450, %v5404
      %5534 = vst.msk [vmem:[%s282 + $0x298] sm:$0xff] %vm5450, %v5405
      %5535 = vst.msk [vmem:[%s282 + $0x2a0] sm:$0xff] %vm5450, %v5406
      %5536 = vst.msk [vmem:[%s282 + $0x2a8] sm:$0xff] %vm5450, %v5407
      %5537 = vst.msk [vmem:[%s282 + $0x2b0] sm:$0xff] %vm5450, %v5408
      %5538 = vst.msk [vmem:[%s282 + $0x2b8] sm:$0xff] %vm5450, %v5409
      %5539 = vst.msk [vmem:[%s282 + $0x2c0] sm:$0xff] %vm5450, %v5410
      %5540 = vst.msk [vmem:[%s282 + $0x2c8] sm:$0xff] %vm5450, %v5411
      %5541 = vst.msk [vmem:[%s282 + $0x2d0] sm:$0xff] %vm5450, %v5412
      %5542 = vst.msk [vmem:[%s282 + $0x2d8] sm:$0xff] %vm5450, %v5413
      %5543 = vst.msk [vmem:[%s282 + $0x2e0] sm:$0xff] %vm5450, %v5414
      %5544 = vst.msk [vmem:[%s282 + $0x2e8] sm:$0xff] %vm5450, %v5415
      %5545 = vst.msk [vmem:[%s282 + $0x2f0] sm:$0xff] %vm5450, %v5416
      %5546 = vst.msk [vmem:[%s282 + $0x2f8] sm:$0xff] %vm5450, %v5417
      %5547 = vst.msk [vmem:[%s282 + $0x300] sm:$0xff] %vm5450, %v5418
      %5548 = vst.msk [vmem:[%s282 + $0x308] sm:$0xff] %vm5450, %v5419
      %5549 = vst.msk [vmem:[%s282 + $0x310] sm:$0xff] %vm5450, %v5420
      %5550 = vst.msk [vmem:[%s282 + $0x318] sm:$0xff] %vm5450, %v5421
      %5551 = vst.msk [vmem:[%s282 + $0x320] sm:$0xff] %vm5450, %v5422
      %5552 = vst.msk [vmem:[%s282 + $0x328] sm:$0xff] %vm5450, %v5423
      %5553 = vst.msk [vmem:[%s282 + $0x330] sm:$0xff] %vm5450, %v5424
      %5554 = vst.msk [vmem:[%s282 + $0x338] sm:$0xff] %vm5450, %v5425
      %5555 = vst.msk [vmem:[%s282 + $0x340] sm:$0xff] %vm5450, %v5426
      %5556 = vst.msk [vmem:[%s282 + $0x348] sm:$0xff] %vm5450, %v5427
      %5557 = vst.msk [vmem:[%s282 + $0x350] sm:$0xff] %vm5450, %v5428
      %5558 = vst.msk [vmem:[%s282 + $0x358] sm:$0xff] %vm5450, %v5429
      %5559 = vst.msk [vmem:[%s282 + $0x360] sm:$0xff] %vm5450, %v5430
      %5560 = vst.msk [vmem:[%s282 + $0x368] sm:$0xff] %vm5450, %v5431
      %5561 = vst.msk [vmem:[%s282 + $0x370] sm:$0xff] %vm5450, %v5432
      %5562 = vst.msk [vmem:[%s282 + $0x378] sm:$0xff] %vm5450, %v5433
      %5563 = vst.msk [vmem:[%s282 + $0x380] sm:$0xff] %vm5450, %v5434
      %5564 = vst.msk [vmem:[%s282 + $0x388] sm:$0xff] %vm5450, %v5435
      %5565 = vst.msk [vmem:[%s282 + $0x390] sm:$0xff] %vm5450, %v5436
      %5566 = vst.msk [vmem:[%s282 + $0x398] sm:$0xff] %vm5450, %v5437
      %5567 = vst.msk [vmem:[%s282 + $0x3a0] sm:$0xff] %vm5450, %v5438
      %5568 = vst.msk [vmem:[%s282 + $0x3a8] sm:$0xff] %vm5450, %v5439
      %5569 = vst.msk [vmem:[%s282 + $0x3b0] sm:$0xff] %vm5450, %v5440
      %5570 = vst.msk [vmem:[%s282 + $0x3b8] sm:$0xff] %vm5450, %v5441
      %5571 = vst.msk [vmem:[%s282 + $0x3c0] sm:$0xff] %vm5450, %v5442
      %5572 = vst.msk [vmem:[%s282 + $0x3c8] sm:$0xff] %vm5450, %v5443
      %5573 = vst.msk [vmem:[%s282 + $0x3d0] sm:$0xff] %vm5450, %v5444
      %5574 = vst.msk [vmem:[%s282 + $0x3d8] sm:$0xff] %vm5450, %v5445
      %5575 = vst.msk [vmem:[%s282 + $0x3e0] sm:$0xff] %vm5450, %v5446
      %5576 = vst.msk [vmem:[%s282 + $0x3e8] sm:$0xff] %vm5450, %v5447
      %5577 = vst.msk [vmem:[%s282 + $0x3f0] sm:$0xff] %vm5450, %v5448
      %5578 = vst.msk [vmem:[%s282 + $0x3f8] sm:$0xff] %vm5450, %v5449
      %s5579 = smul.u32 128, %s20
      %p5580 = scmp.lt.s32.totalorder %s5579, 255
      %s5581 = scalar_select %p5580, %s5579, 255
      %s5582 = smul.addr %s5581, 8
      %s5583 = scalar_lea.vmem %s7, %s5582
      // Predicated region
      $region49: #{tpu_custom_call.1} parent=47 // pred_check
        %p5584 = pneg %p190
      $region50: #{tpu_custom_call.1} parent=47 // pred_check_branch
        %5586 = sbr.rel (%p5584) target = $region52
      $region51: #{tpu_custom_call.1} parent=47 // pred_region
        %s5587 = smul.u32 128, %s20
      $region52: #{tpu_custom_call.1} parent=47 // pred_fallthru
        _
    $region48: #{tpu_custom_call.1} parent=5 // pred_fallthru
      _
    %p5588 = scmp.le.s32.totalorder 2, %s15
    // Predicated region
    $region53: #{tpu_custom_call.1} parent=5 // pred_check
      %p5589 = pneg %p5588
    $region54: #{tpu_custom_call.1} parent=5 // pred_check_branch
      %5591 = sbr.rel (%p5589) target = $region56
    $region55: #{tpu_custom_call.1} parent=5 // pred_region
      %s5592 = ssub.s32 %s15, 2
      // Predicated region
      $region57: #{tpu_custom_call.1} parent=55 // pred_check
        %p5593 = pneg %p196
      $region58: #{tpu_custom_call.1} parent=55 // pred_check_branch
        %5595 = sbr.rel (%p5593) target = $region60
      $region59: #{tpu_custom_call.1} parent=55 // pred_region
        %s5596 = smul.u32 128, %s21
        %p5597 = scmp.lt.s32.totalorder %s5596, 255
        %s5598 = scalar_select %p5597, %s5596, 255
        %s5599 = smul.addr %s5598, 8
        %s5600 = scalar_lea.vmem %s7, %s5599
      $region60: #{tpu_custom_call.1} parent=55 // pred_fallthru
        _
    $region56: #{tpu_custom_call.1} parent=5 // pred_fallthru
      _
  $region6: #{tpu_custom_call.1} parent=0 // loop_footer
    %s19 = sadd.s32 1, %s15
  $region7: #{tpu_custom_call.1} parent=0 // loop_footer_branch
    %14 = sbr.rel target = $region3
  $region8: #{tpu_custom_call.1} parent=0 // loop_exit
    _

</llo_original>
